<compile_context>
chip_gen: v7x
topology: tpu7x:2x2x1
jax: 0.10.0
libtpu: 0.0.40
codegen_flags: <defaults>
</compile_context>

<pallas_src>
import functools
import math

import jax
import jax.numpy as jnp
from jax.experimental import pallas as pl
from jax.experimental.pallas import tpu as pltpu


# weight slabs fed to MXU dots (candidates for bf16 storage)
MATMUL_WEIGHTS = ("patch_w", "w_qkv", "w_o", "w_ff1", "w_ff2")


# ----------------------------------------------------------------------------
# in-kernel helpers
# ----------------------------------------------------------------------------
def _layernorm(x, g, b, eps):
    """x: (M, D) f32; g, b: (1, D)."""
    g = g.astype(jnp.float32)
    b = b.astype(jnp.float32)
    mu = jnp.mean(x, axis=-1, keepdims=True)
    xc = x - mu
    var = jnp.mean(xc * xc, axis=-1, keepdims=True)
    return xc * jax.lax.rsqrt(var + eps) * g + b


def _gelu_exact(x):
    # exact (erf-based) GELU, matching torch.nn.GELU() default.
    # TODO(synk): at production mlp_dim the tanh-approx GELU moves this to the EUP slot,
    # but it changes numerics vs the torch default, so we keep erf here.
    return 0.5 * x * (1.0 + jax.lax.erf(x * (1.0 / math.sqrt(2.0))))


# ----------------------------------------------------------------------------
# fused ViT kernel: one pallas_call covers patch embedding + all transformer layers
# ----------------------------------------------------------------------------
def _vit_kernel(
    # inputs (blocks)
    patches_ref, pos_ref,                                            # per-batch-block / shared
    pln1g_ref, pln1b_ref, pw_ref, pb_ref, pln2g_ref, pln2b_ref,      # patch embed params
    ln1g_ref, ln1b_ref, wqkv_ref, wo_ref, bo_ref,                    # per-layer attention
    ln2g_ref, ln2b_ref, wf1_ref, bf1_ref, wf2_ref, bf2_ref,          # per-layer feed-fwd
    # output + scratch
    o_ref, x_vmem, ctx_vmem,
    *, bt, n, heads, dim_head, eps):
    layer = pl.program_id(1)
    n_layers = pl.num_programs(1)
    rows = bt * n                          # matmul M dimension (batch folded into rows)
    inner = heads * dim_head
    cdt = wqkv_ref.dtype                   # MXU operand dtype (bf16 fast path / f32 parity)

    def mm(a, w):
        # activation @ weight with operands in the weight dtype; f32 MXU accumulation.
        return jnp.dot(a.astype(w.dtype), w, preferred_element_type=jnp.float32)

    # --- patch embedding + learned-3D positional add: once per batch block ---------
    @pl.when(layer == 0)
    def _():
        p = patches_ref[...].reshape(rows, patches_ref.shape[-1]).astype(jnp.float32)
        y = _layernorm(p, pln1g_ref[...], pln1b_ref[...], eps)
        y = mm(y, pw_ref[...]) + pb_ref[...].astype(jnp.float32)
        y = _layernorm(y, pln2g_ref[...], pln2b_ref[...], eps)
        pos = pos_ref[...].astype(jnp.float32)                       # (n, dim), shared
        pos_full = jnp.broadcast_to(pos[None], (bt, n, pos.shape[-1])
                                    ).reshape(rows, pos.shape[-1])
        x_vmem[...] = y + pos_full

    x = x_vmem[...]                                                   # (rows, dim) f32
    scale = dim_head ** -0.5

    # --- attention block (PreNorm) ---------------------------------------------------
    y = _layernorm(x, ln1g_ref[0], ln1b_ref[0], eps)
    qkv = mm(y, wqkv_ref[0])                                          # (rows, 3*inner) f32
    # TODO(synk): at production heads / sequence lengths convert these static loops to
    # lax.fori_loop to bound live ranges; at bt*heads this small the unroll is fine.
    for b in range(bt):
        r0 = b * n
        for h in range(heads):
            c0 = h * dim_head
            q = qkv[r0:r0 + n, c0:c0 + dim_head]
            k = qkv[r0:r0 + n, inner + c0:inner + c0 + dim_head]
            v = qkv[r0:r0 + n, 2 * inner + c0:2 * inner + c0 + dim_head]
            s = jax.lax.dot_general(q.astype(cdt), k.astype(cdt),
                                    (((1,), (1,)), ((), ())),
                                    preferred_element_type=jnp.float32) * scale
            s = s - jnp.max(s, axis=-1, keepdims=True)
            p = jnp.exp(s)
            p = p * pl.reciprocal(jnp.sum(p, axis=-1, keepdims=True), approx=True)
            ctx_vmem[r0:r0 + n, c0:c0 + dim_head] = jnp.dot(
                p.astype(cdt), v.astype(cdt), preferred_element_type=jnp.float32)
    # concat over heads followed by to_out == one lane-dense (rows, inner) @ (inner, dim)
    x = x + mm(ctx_vmem[...], wo_ref[0]) + bo_ref[0].astype(jnp.float32)

    # --- feed-forward block (PreNorm) --------------------------------------------------
    y = _layernorm(x, ln2g_ref[0], ln2b_ref[0], eps)
    h1 = mm(y, wf1_ref[0]) + bf1_ref[0].astype(jnp.float32)
    h1 = _gelu_exact(h1)
    x = x + mm(h1, wf2_ref[0]) + bf2_ref[0].astype(jnp.float32)

    x_vmem[...] = x

    @pl.when(layer == n_layers - 1)
    def _():
        o_ref[...] = x.reshape(bt, n, x.shape[-1]).astype(o_ref.dtype)


# ----------------------------------------------------------------------------
# plain-JAX glue
# ----------------------------------------------------------------------------
def patchify(video, patch_h, patch_w, patch_f):
    """einops: 'b c (h p1) (w p2) (f pf) -> b (h w f) (p1 p2 pf c)'."""
    # TODO(synk): at production video sizes fold this rearrange into the kernel (row-gather
    # BlockSpec) or pad the patch feature dim to a lane multiple; kept as XLA glue here.
    B, C, H, W, D = video.shape
    h, w, f = H // patch_h, W // patch_w, D // patch_f
    x = video.reshape(B, C, h, patch_h, w, patch_w, f, patch_f)
    x = jnp.transpose(x, (0, 2, 4, 6, 3, 5, 7, 1))                    # b h w f p1 p2 pf c
    return x.reshape(B, h * w * f, patch_h * patch_w * patch_f * C)


def position_embedding_learned_3d(row_tab, col_tab, dep_tab, h, w, f):
    """PositionEmbeddingLearned3d semantics: (N, 3*npf) interpolated learned table."""
    def get_embed(coord, table):
        floor = jnp.floor(coord)
        delta = (coord - floor)[:, None]
        fi = floor.astype(jnp.int32)
        ci = jnp.minimum(fi + 1, table.shape[0] - 1)
        return table[fi] * (1.0 - delta) + table[ci] * delta

    i = (jnp.arange(h, dtype=jnp.float32) + 1.0) / h * row_tab.shape[0] - 0.5
    j = (jnp.arange(w, dtype=jnp.float32) + 1.0) / w * col_tab.shape[0] - 0.5
    k = (jnp.arange(f, dtype=jnp.float32) + 1.0) / f * dep_tab.shape[0] - 0.5
    x_emb = get_embed(i, row_tab)                                     # (h, npf)
    y_emb = get_embed(j, col_tab)                                     # (w, npf)
    z_emb = get_embed(k, dep_tab)                                     # (f, npf)
    npf = row_tab.shape[1]
    pos = jnp.concatenate([
        jnp.broadcast_to(x_emb[:, None, None, :], (h, w, f, npf)),
        jnp.broadcast_to(y_emb[None, :, None, :], (h, w, f, npf)),
        jnp.broadcast_to(z_emb[None, None, :, :], (h, w, f, npf)),
    ], axis=-1).reshape(h * w * f, 3 * npf)
    return pos


def _pick_batch_block(B, n_patches, max_rows=256):
    """Largest divisor of B that keeps <= max_rows matmul rows per block, preferring to
    leave >= 2 blocks on the 'parallel' grid axis (v7x has 2 TensorCores)."""
    divs = [d for d in range(1, B + 1) if B % d == 0 and d * n_patches <= max_rows]
    if not divs:
        return 1
    pref = [d for d in divs if B // d >= 2]
    return max(pref) if pref else max(divs)


def vit_forward(params, video, *, patch_h, patch_w, patch_f, heads, dim_head,
                eps=1e-5, batch_block=None):
    B, C, H, W, D = video.shape
    h, w, f = H // patch_h, W // patch_w, D // patch_f

    # TODO(synk): the einops patch Rearrange and the PositionEmbeddingLearned3d table
    # interpolation (gathers) stay in plain JAX glue; only the pos *add* is fused in-kernel.
    patches = patchify(video, patch_h, patch_w, patch_f)              # (B, N, patch_dim)
    pos_tab = position_embedding_learned_3d(
        params["pos_row"], params["pos_col"], params["pos_dep"], h, w, f
    ).astype(patches.dtype)                                           # (N, dim)

    _, N, patch_dim = patches.shape
    dim = params["patch_w"].shape[1]
    depth = params["ln1_g"].shape[0]
    inner = heads * dim_head

    if batch_block is None:
        batch_block = _pick_batch_block(B, N)
    assert B % batch_block == 0, (B, batch_block)
    bt = batch_block

    def bcast_spec(a):       # parameter shared by every grid step (DMA'd once)
        return pl.BlockSpec(a.shape, lambda b, l, nd=a.ndim: (0,) * nd)

    def batch_spec(a):       # one block of `bt` batch elements
        return pl.BlockSpec((bt,) + a.shape[1:],
                            lambda b, l, nd=a.ndim: (b,) + (0,) * (nd - 1))

    def layer_spec(a):       # one block per transformer layer (pipelined over l)
        return pl.BlockSpec((1,) + a.shape[1:],
                            lambda b, l, nd=a.ndim: (l,) + (0,) * (nd - 1))

    kernel = functools.partial(_vit_kernel, bt=bt, n=N, heads=heads,
                               dim_head=dim_head, eps=eps)
    x = pl.pallas_call(
        kernel,
        out_shape=jax.ShapeDtypeStruct((B, N, dim), patches.dtype),
        grid=(B // bt, depth),
        in_specs=[
            batch_spec(patches), bcast_spec(pos_tab),
            bcast_spec(params["patch_ln1_g"]), bcast_spec(params["patch_ln1_b"]),
            bcast_spec(params["patch_w"]), bcast_spec(params["patch_b"]),
            bcast_spec(params["patch_ln2_g"]), bcast_spec(params["patch_ln2_b"]),
            layer_spec(params["ln1_g"]), layer_spec(params["ln1_b"]),
            layer_spec(params["w_qkv"]), layer_spec(params["w_o"]), layer_spec(params["b_o"]),
            layer_spec(params["ln2_g"]), layer_spec(params["ln2_b"]),
            layer_spec(params["w_ff1"]), layer_spec(params["b_ff1"]),
            layer_spec(params["w_ff2"]), layer_spec(params["b_ff2"]),
        ],
        out_specs=pl.BlockSpec((bt, N, dim), lambda b, l: (b, 0, 0)),
        scratch_shapes=[pltpu.VMEM((bt * N, dim), jnp.float32),       # carried activation
                        pltpu.VMEM((bt * N, inner), jnp.float32)],    # concat(head) context
        compiler_params=pltpu.CompilerParams(
            dimension_semantics=("parallel", "arbitrary"),
            # Explicit scoped-VMEM budget (safe on v5e/v6e 128 MiB and v7x 64 MiB physical).
            # TODO(synk): at production dims (dim~768, mlp~3072) keep weights bf16 and/or
            # tile w_ff1/w_ff2 over mlp_dim so the double-buffered layer slab fits v7x.
            vmem_limit_bytes=48 * 1024 * 1024),
    )(patches, pos_tab,
      params["patch_ln1_g"], params["patch_ln1_b"],
      params["patch_w"], params["patch_b"],
      params["patch_ln2_g"], params["patch_ln2_b"],
      params["ln1_g"], params["ln1_b"],
      params["w_qkv"], params["w_o"], params["b_o"],
      params["ln2_g"], params["ln2_b"],
      params["w_ff1"], params["b_ff1"],
      params["w_ff2"], params["b_ff2"])
    # module contract returns a per-batch pos tensor; the kernel never sees this broadcast.
    pos = jnp.broadcast_to(pos_tab[None], (B, N, dim))
    return x, pos


# ----------------------------------------------------------------------------
# pure-JAX reference (same semantics, XLA ops) for a self-check
# ----------------------------------------------------------------------------
def vit_forward_reference(params, video, *, patch_h, patch_w, patch_f, heads, dim_head,
                          eps=1e-5):
    B, C, H, W, D = video.shape
    h, w, f = H // patch_h, W // patch_w, D // patch_f
    hp = jax.lax.Precision.HIGHEST

    def ln(t, g, b):
        mu = jnp.mean(t, -1, keepdims=True)
        var = jnp.mean((t - mu) ** 2, -1, keepdims=True)
        return (t - mu) * jax.lax.rsqrt(var + eps) * g + b

    x = patchify(video, patch_h, patch_w, patch_f)
    pos_tab = position_embedding_learned_3d(
        params["pos_row"], params["pos_col"], params["pos_dep"], h, w, f).astype(x.dtype)
    x = ln(x, params["patch_ln1_g"], params["patch_ln1_b"])
    x = jnp.dot(x, params["patch_w"], precision=hp) + params["patch_b"]
    x = ln(x, params["patch_ln2_g"], params["patch_ln2_b"])
    x = x + pos_tab[None]

    depth = params["ln1_g"].shape[0]
    n = x.shape[1]
    inner = heads * dim_head
    scale = dim_head ** -0.5
    for l in range(depth):
        y = ln(x, params["ln1_g"][l], params["ln1_b"][l])
        qkv = jnp.dot(y, params["w_qkv"][l], precision=hp)            # (B, n, 3*inner)
        q, k, v = jnp.split(qkv, 3, axis=-1)

        def heads_first(t):
            return t.reshape(B, n, heads, dim_head).transpose(0, 2, 1, 3)

        q, k, v = heads_first(q), heads_first(k), heads_first(v)
        s = jnp.einsum("bhqd,bhkd->bhqk", q, k, precision=hp) * scale
        a = jax.nn.softmax(s, axis=-1)
        o = jnp.einsum("bhqk,bhkd->bhqd", a, v, precision=hp)
        o = o.transpose(0, 2, 1, 3).reshape(B, n, inner)
        x = x + jnp.dot(o, params["w_o"][l], precision=hp) + params["b_o"][l]
        y = ln(x, params["ln2_g"][l], params["ln2_b"][l])
        h1 = jnp.dot(y, params["w_ff1"][l], precision=hp) + params["b_ff1"][l]
        h1 = 0.5 * h1 * (1.0 + jax.lax.erf(h1 * (1.0 / math.sqrt(2.0))))
        x = x + jnp.dot(h1, params["w_ff2"][l], precision=hp) + params["b_ff2"][l]
    pos = jnp.broadcast_to(pos_tab[None], (B, n, pos_tab.shape[-1]))
    return x, pos


# ----------------------------------------------------------------------------
# parameter init (deterministic)
# ----------------------------------------------------------------------------
def init_params(key, *, patch_dim, dim, depth, heads, dim_head, mlp_dim, h, w, f,
                weight_dtype=jnp.float32):
    inner = heads * dim_head
    npf = dim // 3
    ks = jax.random.split(key, 20)

    def dense(k, shape, scale=0.02):
        return jax.random.normal(k, shape, jnp.float32) * scale

    def wcast(a):               # matmul weight slabs in the MXU operand dtype
        return a.astype(weight_dtype)

    return {
        # to_patch_embedding: LN(patch_dim) -> Linear(patch_dim, dim) -> LN(dim)
        "patch_ln1_g": 1.0 + dense(ks[2], (1, patch_dim)),
        "patch_ln1_b": dense(ks[3], (1, patch_dim)),
        "patch_w": wcast(dense(ks[4], (patch_dim, dim))),
        "patch_b": dense(ks[5], (1, dim)),
        "patch_ln2_g": 1.0 + dense(ks[6], (1, dim)),
        "patch_ln2_b": dense(ks[7], (1, dim)),
        # PositionEmbeddingLearned3d tables (nn.init.uniform_ -> U[0,1))
        "pos_row": jax.random.uniform(ks[8], (h, npf), jnp.float32),
        "pos_col": jax.random.uniform(ks[9], (w, npf), jnp.float32),
        "pos_dep": jax.random.uniform(ks[10], (f, npf), jnp.float32),
        # transformer layers, stacked along a leading depth axis; fused lane-dense slabs
        # (stored transposed vs torch.nn.Linear.weight: kernel computes x @ W + b)
        "ln1_g": 1.0 + dense(ks[11], (depth, 1, dim)),
        "ln1_b": dense(ks[12], (depth, 1, dim)),
        "w_qkv": wcast(dense(ks[0], (depth, dim, 3 * inner))),         # to_qkv fused
        "w_o": wcast(dense(ks[1], (depth, inner, dim))),               # to_out
        "b_o": dense(ks[13], (depth, 1, dim)),
        "ln2_g": 1.0 + dense(ks[14], (depth, 1, dim)),
        "ln2_b": dense(ks[15], (depth, 1, dim)),
        "w_ff1": wcast(dense(ks[16], (depth, dim, mlp_dim))),
        "b_ff1": dense(ks[17], (depth, 1, mlp_dim)),
        "w_ff2": wcast(dense(ks[18], (depth, mlp_dim, dim))),
        "b_ff2": dense(ks[19], (depth, 1, dim)),
    }


# ----------------------------------------------------------------------------
# main
# ----------------------------------------------------------------------------
if __name__ == "__main__":
    # small ViT config (consistent with the module's constraints):
    #   image_size=(8,8), image_patch_size=4, frames=4, frame_patch_size=2,
    #   dim=48 (divisible by 3 for the learned 3-D pos embedding), depth=2,
    #   heads=4, dim_head=16, mlp_dim=96, channels=3, batch=4
    B, C = 4, 3
    H = W = 8
    frames = 4
    patch_h = patch_w = 4
    patch_f = 2
    dim, depth, heads, dim_head, mlp_dim = 48, 2, 4, 16, 96
    assert dim % 3 == 0
    h, w, f = H // patch_h, W // patch_w, frames // patch_f
    num_patches = h * w * f                        # 8
    patch_dim = C * patch_h * patch_w * patch_f    # 96

    key = jax.random.PRNGKey(0)
    k_param, k_data = jax.random.split(key)
    params = init_params(k_param, patch_dim=patch_dim, dim=dim, depth=depth,
                         heads=heads, dim_head=dim_head, mlp_dim=mlp_dim,
                         h=h, w=w, f=f, weight_dtype=jnp.float32)
    video = jax.random.normal(k_data, (B, C, H, W, frames), dtype=jnp.float32)

    fwd = jax.jit(functools.partial(vit_forward, patch_h=patch_h, patch_w=patch_w,
                                    patch_f=patch_f, heads=heads, dim_head=dim_head,
                                    batch_block=2))   # grid=(2, depth): 2 parallel blocks
    x, pos = fwd(params, video)
    jax.block_until_ready(x)
    jax.block_until_ready(pos)

    assert x.shape == (B, num_patches, dim), x.shape
    assert pos.shape == (B, num_patches, dim), pos.shape
    assert bool(jnp.all(jnp.isfinite(x))) and bool(jnp.all(jnp.isfinite(pos)))

    # self-check (f32 parity path) against a plain-JAX reference of the same module
    x_exp, pos_exp = vit_forward_reference(params, video, patch_h=patch_h,
                                           patch_w=patch_w, patch_f=patch_f,
                                           heads=heads, dim_head=dim_head)
    assert bool(jnp.allclose(pos, pos_exp, atol=1e-5, rtol=1e-5))
    max_err = float(jnp.max(jnp.abs(x - x_exp)))
    assert max_err < 2e-2, f"f32 max |pallas - reference| = {max_err}"

    # bf16 MXU fast path (production-style weight storage); compared against an f32
    # reference that uses the SAME bf16-rounded weights, so the delta is only the
    # in-kernel bf16 operand casts.
    params_bf16 = {k: (v.astype(jnp.bfloat16) if k in MATMUL_WEIGHTS else v)
                   for k, v in params.items()}
    fwd_bf16 = jax.jit(functools.partial(vit_forward, patch_h=patch_h, patch_w=patch_w,
                                         patch_f=patch_f, heads=heads, dim_head=dim_head,
                                         batch_block=2))
    x_bf, _ = fwd_bf16(params_bf16, video)
    jax.block_until_ready(x_bf)
    params_bf16_f32 = {k: v.astype(jnp.float32) for k, v in params_bf16.items()}
    x_bf_exp, _ = vit_forward_reference(params_bf16_f32, video, patch_h=patch_h,
                                        patch_w=patch_w, patch_f=patch_f,
                                        heads=heads, dim_head=dim_head)
    assert bool(jnp.all(jnp.isfinite(x_bf)))
    bf_err = float(jnp.max(jnp.abs(x_bf.astype(jnp.float32) - x_bf_exp)))
    assert bf_err < 0.25, f"bf16 max |pallas - reference| = {bf_err}"

    print("KERNEL_OK")
</pallas_src>

<mosaic_0001>
module attributes {stable_mosaic.version = 11 : i64} {
  func.func @_vit_kernel(%arg0: i32, %arg1: i32, %arg2: memref<2x8x96xf32, #tpu.memory_space<vmem>>, %arg3: memref<8x48xf32, #tpu.memory_space<vmem>>, %arg4: memref<1x96xf32, #tpu.memory_space<vmem>>, %arg5: memref<1x96xf32, #tpu.memory_space<vmem>>, %arg6: memref<96x48xf32, #tpu.memory_space<vmem>>, %arg7: memref<1x48xf32, #tpu.memory_space<vmem>>, %arg8: memref<1x48xf32, #tpu.memory_space<vmem>>, %arg9: memref<1x48xf32, #tpu.memory_space<vmem>>, %arg10: memref<1x1x48xf32, #tpu.memory_space<vmem>>, %arg11: memref<1x1x48xf32, #tpu.memory_space<vmem>>, %arg12: memref<1x48x192xf32, #tpu.memory_space<vmem>>, %arg13: memref<1x64x48xf32, #tpu.memory_space<vmem>>, %arg14: memref<1x1x48xf32, #tpu.memory_space<vmem>>, %arg15: memref<1x1x48xf32, #tpu.memory_space<vmem>>, %arg16: memref<1x1x48xf32, #tpu.memory_space<vmem>>, %arg17: memref<1x48x96xf32, #tpu.memory_space<vmem>>, %arg18: memref<1x1x96xf32, #tpu.memory_space<vmem>>, %arg19: memref<1x96x48xf32, #tpu.memory_space<vmem>>, %arg20: memref<1x1x48xf32, #tpu.memory_space<vmem>>, %arg21: memref<2x8x48xf32, #tpu.memory_space<vmem>>, %arg22: memref<16x48xf32, #tpu.memory_space<vmem>>, %arg23: memref<16x64xf32, #tpu.memory_space<vmem>>) attributes {dimension_semantics = [#tpu.dimension_semantics<parallel>, #tpu.dimension_semantics<arbitrary>], iteration_bounds = array<i64: 2, 2>, scalar_prefetch = 0 : i64, scratch_operands = 2 : i64, tpu.core_type = #tpu.core_type<tc>, window_params = [{transform_indices = @transform_0, window_bounds = array<i64: 2, 8, 96>}, {pipeline_mode = #tpu.pipeline_mode<synchronous>, transform_indices = @transform_1, window_bounds = array<i64: 8, 48>}, {pipeline_mode = #tpu.pipeline_mode<synchronous>, transform_indices = @transform_2, window_bounds = array<i64: 1, 96>}, {pipeline_mode = #tpu.pipeline_mode<synchronous>, transform_indices = @transform_3, window_bounds = array<i64: 1, 96>}, {pipeline_mode = #tpu.pipeline_mode<synchronous>, transform_indices = @transform_4, window_bounds = array<i64: 96, 48>}, {pipeline_mode = #tpu.pipeline_mode<synchronous>, transform_indices = @transform_5, window_bounds = array<i64: 1, 48>}, {pipeline_mode = #tpu.pipeline_mode<synchronous>, transform_indices = @transform_6, window_bounds = array<i64: 1, 48>}, {pipeline_mode = #tpu.pipeline_mode<synchronous>, transform_indices = @transform_7, window_bounds = array<i64: 1, 48>}, {transform_indices = @transform_8, window_bounds = array<i64: 1, 1, 48>}, {transform_indices = @transform_9, window_bounds = array<i64: 1, 1, 48>}, {transform_indices = @transform_10, window_bounds = array<i64: 1, 48, 192>}, {transform_indices = @transform_11, window_bounds = array<i64: 1, 64, 48>}, {transform_indices = @transform_12, window_bounds = array<i64: 1, 1, 48>}, {transform_indices = @transform_13, window_bounds = array<i64: 1, 1, 48>}, {transform_indices = @transform_14, window_bounds = array<i64: 1, 1, 48>}, {transform_indices = @transform_15, window_bounds = array<i64: 1, 48, 96>}, {transform_indices = @transform_16, window_bounds = array<i64: 1, 1, 96>}, {transform_indices = @transform_17, window_bounds = array<i64: 1, 96, 48>}, {transform_indices = @transform_18, window_bounds = array<i64: 1, 1, 48>}, {transform_indices = @transform_19, window_bounds = array<i64: 2, 8, 48>}]} {
    %c0_i32 = arith.constant 0 : i32
    %0 = arith.cmpi eq, %arg1, %c0_i32 : i32
    %1 = arith.extui %0 : i1 to i32
    %c0_i32_0 = arith.constant 0 : i32
    %2 = arith.cmpi ne, %1, %c0_i32_0 : i32
    scf.if %2 {
      %c0_108 = arith.constant 0 : index
      %c0_109 = arith.constant 0 : index
      %c0_110 = arith.constant 0 : index
      %235 = vector.load %arg2[%c0_108, %c0_109, %c0_110] : memref<2x8x96xf32, #tpu.memory_space<vmem>>, vector<2x8x96xf32>
      %236 = vector.shape_cast %235 : vector<2x8x96xf32> to vector<16x96xf32>
      %c0_111 = arith.constant 0 : index
      %c0_112 = arith.constant 0 : index
      %237 = vector.load %arg4[%c0_111, %c0_112] : memref<1x96xf32, #tpu.memory_space<vmem>>, vector<1x96xf32>
      %c0_113 = arith.constant 0 : index
      %c0_114 = arith.constant 0 : index
      %238 = vector.load %arg5[%c0_113, %c0_114] : memref<1x96xf32, #tpu.memory_space<vmem>>, vector<1x96xf32>
      %cst_115 = arith.constant dense<0.000000e+00> : vector<16xf32>
      %239 = vector.multi_reduction <add>, %236, %cst_115 [1] : vector<16x96xf32> to vector<16xf32>
      %240 = vector.shape_cast %239 : vector<16xf32> to vector<16x1xf32>
      %cst_116 = arith.constant 9.600000e+01 : f32
      %241 = vector.broadcast %cst_116 : f32 to vector<16x1xf32>
      %242 = arith.divf %240, %241 : vector<16x1xf32>
      %243 = vector.broadcast %242 : vector<16x1xf32> to vector<16x96xf32>
      %244 = arith.subf %236, %243 : vector<16x96xf32>
      %245 = arith.mulf %244, %244 : vector<16x96xf32>
      %cst_117 = arith.constant dense<0.000000e+00> : vector<16xf32>
      %246 = vector.multi_reduction <add>, %245, %cst_117 [1] : vector<16x96xf32> to vector<16xf32>
      %247 = vector.shape_cast %246 : vector<16xf32> to vector<16x1xf32>
      %cst_118 = arith.constant 9.600000e+01 : f32
      %248 = vector.broadcast %cst_118 : f32 to vector<16x1xf32>
      %249 = arith.divf %247, %248 : vector<16x1xf32>
      %cst_119 = arith.constant 9.99999974E-6 : f32
      %250 = vector.broadcast %cst_119 : f32 to vector<16x1xf32>
      %251 = arith.addf %249, %250 : vector<16x1xf32>
      %252 = math.rsqrt %251 : vector<16x1xf32>
      %253 = vector.broadcast %252 : vector<16x1xf32> to vector<16x96xf32>
      %254 = arith.mulf %244, %253 : vector<16x96xf32>
      %255 = vector.broadcast %237 : vector<1x96xf32> to vector<16x96xf32>
      %256 = arith.mulf %254, %255 : vector<16x96xf32>
      %257 = vector.broadcast %238 : vector<1x96xf32> to vector<16x96xf32>
      %258 = arith.addf %256, %257 : vector<16x96xf32>
      %c0_120 = arith.constant 0 : index
      %c0_121 = arith.constant 0 : index
      %259 = vector.load %arg6[%c0_120, %c0_121] : memref<96x48xf32, #tpu.memory_space<vmem>>, vector<96x48xf32>
      %cst_122 = arith.constant dense<0.000000e+00> : vector<16x48xf32>
      %260 = tpu.matmul %258, %259, %cst_122 {dimension_numbers = #tpu.dot_dimension_numbers<[1], [0], [0], [1], [0, 0, 1, 1], [], []>} : vector<16x96xf32>, vector<96x48xf32>, vector<16x48xf32> -> vector<16x48xf32>
      %c0_123 = arith.constant 0 : index
      %c0_124 = arith.constant 0 : index
      %261 = vector.load %arg7[%c0_123, %c0_124] : memref<1x48xf32, #tpu.memory_space<vmem>>, vector<1x48xf32>
      %262 = vector.broadcast %261 : vector<1x48xf32> to vector<16x48xf32>
      %263 = arith.addf %260, %262 : vector<16x48xf32>
      %c0_125 = arith.constant 0 : index
      %c0_126 = arith.constant 0 : index
      %264 = vector.load %arg8[%c0_125, %c0_126] : memref<1x48xf32, #tpu.memory_space<vmem>>, vector<1x48xf32>
      %c0_127 = arith.constant 0 : index
      %c0_128 = arith.constant 0 : index
      %265 = vector.load %arg9[%c0_127, %c0_128] : memref<1x48xf32, #tpu.memory_space<vmem>>, vector<1x48xf32>
      %cst_129 = arith.constant dense<0.000000e+00> : vector<16xf32>
      %266 = vector.multi_reduction <add>, %263, %cst_129 [1] : vector<16x48xf32> to vector<16xf32>
      %267 = vector.shape_cast %266 : vector<16xf32> to vector<16x1xf32>
      %cst_130 = arith.constant 4.800000e+01 : f32
      %268 = vector.broadcast %cst_130 : f32 to vector<16x1xf32>
      %269 = arith.divf %267, %268 : vector<16x1xf32>
      %270 = vector.broadcast %269 : vector<16x1xf32> to vector<16x48xf32>
      %271 = arith.subf %263, %270 : vector<16x48xf32>
      %272 = arith.mulf %271, %271 : vector<16x48xf32>
      %cst_131 = arith.constant dense<0.000000e+00> : vector<16xf32>
      %273 = vector.multi_reduction <add>, %272, %cst_131 [1] : vector<16x48xf32> to vector<16xf32>
      %274 = vector.shape_cast %273 : vector<16xf32> to vector<16x1xf32>
      %cst_132 = arith.constant 4.800000e+01 : f32
      %275 = vector.broadcast %cst_132 : f32 to vector<16x1xf32>
      %276 = arith.divf %274, %275 : vector<16x1xf32>
      %cst_133 = arith.constant 9.99999974E-6 : f32
      %277 = vector.broadcast %cst_133 : f32 to vector<16x1xf32>
      %278 = arith.addf %276, %277 : vector<16x1xf32>
      %279 = math.rsqrt %278 : vector<16x1xf32>
      %280 = vector.broadcast %279 : vector<16x1xf32> to vector<16x48xf32>
      %281 = arith.mulf %271, %280 : vector<16x48xf32>
      %282 = vector.broadcast %264 : vector<1x48xf32> to vector<16x48xf32>
      %283 = arith.mulf %281, %282 : vector<16x48xf32>
      %284 = vector.broadcast %265 : vector<1x48xf32> to vector<16x48xf32>
      %285 = arith.addf %283, %284 : vector<16x48xf32>
      %c0_134 = arith.constant 0 : index
      %c0_135 = arith.constant 0 : index
      %286 = vector.load %arg3[%c0_134, %c0_135] : memref<8x48xf32, #tpu.memory_space<vmem>>, vector<8x48xf32>
      %287 = vector.shape_cast %286 : vector<8x48xf32> to vector<1x8x48xf32>
      %288 = vector.shape_cast %287 : vector<1x8x48xf32> to vector<1x8x48xf32>
      %289 = vector.broadcast %288 : vector<1x8x48xf32> to vector<2x8x48xf32>
      %290 = vector.shape_cast %289 : vector<2x8x48xf32> to vector<16x48xf32>
      %291 = arith.addf %285, %290 : vector<16x48xf32>
      %c0_136 = arith.constant 0 : index
      %c0_137 = arith.constant 0 : index
      %292 = vector.load %arg22[%c0_136, %c0_137] : memref<16x48xf32, #tpu.memory_space<vmem>>, vector<16x48xf32>
      tpu.vector_store %arg22[%c0_136, %c0_137], %291 {strides = array<i32>} : memref<16x48xf32, #tpu.memory_space<vmem>>, vector<16x48xf32>,
    } else {
    }
    %c0 = arith.constant 0 : index
    %c0_1 = arith.constant 0 : index
    %3 = vector.load %arg22[%c0, %c0_1] : memref<16x48xf32, #tpu.memory_space<vmem>>, vector<16x48xf32>
    %c0_2 = arith.constant 0 : index
    %c0_3 = arith.constant 0 : index
    %c0_4 = arith.constant 0 : index
    %4 = vector.load %arg10[%c0_2, %c0_3, %c0_4] : memref<1x1x48xf32, #tpu.memory_space<vmem>>, vector<1x1x48xf32>
    %5 = vector.shape_cast %4 : vector<1x1x48xf32> to vector<1x48xf32>
    %c0_5 = arith.constant 0 : index
    %c0_6 = arith.constant 0 : index
    %c0_7 = arith.constant 0 : index
    %6 = vector.load %arg11[%c0_5, %c0_6, %c0_7] : memref<1x1x48xf32, #tpu.memory_space<vmem>>, vector<1x1x48xf32>
    %7 = vector.shape_cast %6 : vector<1x1x48xf32> to vector<1x48xf32>
    %cst = arith.constant dense<0.000000e+00> : vector<16xf32>
    %8 = vector.multi_reduction <add>, %3, %cst [1] : vector<16x48xf32> to vector<16xf32>
    %9 = vector.shape_cast %8 : vector<16xf32> to vector<16x1xf32>
    %cst_8 = arith.constant 4.800000e+01 : f32
    %10 = vector.broadcast %cst_8 : f32 to vector<16x1xf32>
    %11 = arith.divf %9, %10 : vector<16x1xf32>
    %12 = vector.broadcast %11 : vector<16x1xf32> to vector<16x48xf32>
    %13 = arith.subf %3, %12 : vector<16x48xf32>
    %14 = arith.mulf %13, %13 : vector<16x48xf32>
    %cst_9 = arith.constant dense<0.000000e+00> : vector<16xf32>
    %15 = vector.multi_reduction <add>, %14, %cst_9 [1] : vector<16x48xf32> to vector<16xf32>
    %16 = vector.shape_cast %15 : vector<16xf32> to vector<16x1xf32>
    %cst_10 = arith.constant 4.800000e+01 : f32
    %17 = vector.broadcast %cst_10 : f32 to vector<16x1xf32>
    %18 = arith.divf %16, %17 : vector<16x1xf32>
    %cst_11 = arith.constant 9.99999974E-6 : f32
    %19 = vector.broadcast %cst_11 : f32 to vector<16x1xf32>
    %20 = arith.addf %18, %19 : vector<16x1xf32>
    %21 = math.rsqrt %20 : vector<16x1xf32>
    %22 = vector.broadcast %21 : vector<16x1xf32> to vector<16x48xf32>
    %23 = arith.mulf %13, %22 : vector<16x48xf32>
    %24 = vector.broadcast %5 : vector<1x48xf32> to vector<16x48xf32>
    %25 = arith.mulf %23, %24 : vector<16x48xf32>
    %26 = vector.broadcast %7 : vector<1x48xf32> to vector<16x48xf32>
    %27 = arith.addf %25, %26 : vector<16x48xf32>
    %c0_12 = arith.constant 0 : index
    %c0_13 = arith.constant 0 : index
    %c0_14 = arith.constant 0 : index
    %28 = vector.load %arg12[%c0_12, %c0_13, %c0_14] : memref<1x48x192xf32, #tpu.memory_space<vmem>>, vector<1x48x192xf32>
    %29 = vector.shape_cast %28 : vector<1x48x192xf32> to vector<48x192xf32>
    %cst_15 = arith.constant dense<0.000000e+00> : vector<16x192xf32>
    %30 = tpu.matmul %27, %29, %cst_15 {dimension_numbers = #tpu.dot_dimension_numbers<[1], [0], [0], [1], [0, 0, 1, 1], [], []>} : vector<16x48xf32>, vector<48x192xf32>, vector<16x192xf32> -> vector<16x192xf32>
    %31 = vector.extract_strided_slice %30 {offsets = [0, 0], sizes = [8, 16], strides = [1, 1]} : vector<16x192xf32> to vector<8x16xf32>
    %32 = vector.extract_strided_slice %30 {offsets = [0, 64], sizes = [8, 16], strides = [1, 1]} : vector<16x192xf32> to vector<8x16xf32>
    %33 = vector.extract_strided_slice %30 {offsets = [0, 128], sizes = [8, 16], strides = [1, 1]} : vector<16x192xf32> to vector<8x16xf32>
    %cst_16 = arith.constant dense<0.000000e+00> : vector<8x8xf32>
    %34 = tpu.matmul %31, %32, %cst_16 {dimension_numbers = #tpu.dot_dimension_numbers<[1], [1], [0], [0], [0, 0, 1, 0], [], []>} : vector<8x16xf32>, vector<8x16xf32>, vector<8x8xf32> -> vector<8x8xf32>
    %cst_17 = arith.constant 2.500000e-01 : f32
    %35 = vector.broadcast %cst_17 : f32 to vector<8x8xf32>
    %36 = arith.mulf %34, %35 : vector<8x8xf32>
    %cst_18 = arith.constant dense<0xFF800000> : vector<8xf32>
    %37 = vector.multi_reduction <maximumf>, %36, %cst_18 [1] : vector<8x8xf32> to vector<8xf32>
    %38 = vector.shape_cast %37 : vector<8xf32> to vector<8x1xf32>
    %39 = vector.broadcast %38 : vector<8x1xf32> to vector<8x8xf32>
    %40 = arith.subf %36, %39 : vector<8x8xf32>
    %41 = math.exp %40 : vector<8x8xf32>
    %cst_19 = arith.constant dense<0.000000e+00> : vector<8xf32>
    %42 = vector.multi_reduction <add>, %41, %cst_19 [1] : vector<8x8xf32> to vector<8xf32>
    %43 = vector.shape_cast %42 : vector<8xf32> to vector<8x1xf32>
    %44 = tpu.reciprocal %43 {approx = true} : vector<8x1xf32> -> vector<8x1xf32>
    %45 = vector.broadcast %44 : vector<8x1xf32> to vector<8x8xf32>
    %46 = arith.mulf %41, %45 : vector<8x8xf32>
    %cst_20 = arith.constant dense<0.000000e+00> : vector<8x16xf32>
    %47 = tpu.matmul %46, %33, %cst_20 {dimension_numbers = #tpu.dot_dimension_numbers<[1], [0], [0], [1], [0, 0, 1, 1], [], []>} : vector<8x8xf32>, vector<8x16xf32>, vector<8x16xf32> -> vector<8x16xf32>
    %c0_21 = arith.constant 0 : index
    %c0_22 = arith.constant 0 : index
    %48 = vector.load %arg23[%c0_21, %c0_22] : memref<16x64xf32, #tpu.memory_space<vmem>>, vector<8x16xf32>
    tpu.vector_store %arg23[%c0_21, %c0_22], %47 {strides = array<i32>} : memref<16x64xf32, #tpu.memory_space<vmem>>, vector<8x16xf32>,
    %49 = vector.extract_strided_slice %30 {offsets = [0, 16], sizes = [8, 16], strides = [1, 1]} : vector<16x192xf32> to vector<8x16xf32>
    %50 = vector.extract_strided_slice %30 {offsets = [0, 80], sizes = [8, 16], strides = [1, 1]} : vector<16x192xf32> to vector<8x16xf32>
    %51 = vector.extract_strided_slice %30 {offsets = [0, 144], sizes = [8, 16], strides = [1, 1]} : vector<16x192xf32> to vector<8x16xf32>
    %cst_23 = arith.constant dense<0.000000e+00> : vector<8x8xf32>
    %52 = tpu.matmul %49, %50, %cst_23 {dimension_numbers = #tpu.dot_dimension_numbers<[1], [1], [0], [0], [0, 0, 1, 0], [], []>} : vector<8x16xf32>, vector<8x16xf32>, vector<8x8xf32> -> vector<8x8xf32>
    %cst_24 = arith.constant 2.500000e-01 : f32
    %53 = vector.broadcast %cst_24 : f32 to vector<8x8xf32>
    %54 = arith.mulf %52, %53 : vector<8x8xf32>
    %cst_25 = arith.constant dense<0xFF800000> : vector<8xf32>
    %55 = vector.multi_reduction <maximumf>, %54, %cst_25 [1] : vector<8x8xf32> to vector<8xf32>
    %56 = vector.shape_cast %55 : vector<8xf32> to vector<8x1xf32>
    %57 = vector.broadcast %56 : vector<8x1xf32> to vector<8x8xf32>
    %58 = arith.subf %54, %57 : vector<8x8xf32>
    %59 = math.exp %58 : vector<8x8xf32>
    %cst_26 = arith.constant dense<0.000000e+00> : vector<8xf32>
    %60 = vector.multi_reduction <add>, %59, %cst_26 [1] : vector<8x8xf32> to vector<8xf32>
    %61 = vector.shape_cast %60 : vector<8xf32> to vector<8x1xf32>
    %62 = tpu.reciprocal %61 {approx = true} : vector<8x1xf32> -> vector<8x1xf32>
    %63 = vector.broadcast %62 : vector<8x1xf32> to vector<8x8xf32>
    %64 = arith.mulf %59, %63 : vector<8x8xf32>
    %cst_27 = arith.constant dense<0.000000e+00> : vector<8x16xf32>
    %65 = tpu.matmul %64, %51, %cst_27 {dimension_numbers = #tpu.dot_dimension_numbers<[1], [0], [0], [1], [0, 0, 1, 1], [], []>} : vector<8x8xf32>, vector<8x16xf32>, vector<8x16xf32> -> vector<8x16xf32>
    %c0_28 = arith.constant 0 : index
    %c16 = arith.constant 16 : index
    %66 = vector.load %arg23[%c0_28, %c16] : memref<16x64xf32, #tpu.memory_space<vmem>>, vector<8x16xf32>
    tpu.vector_store %arg23[%c0_28, %c16], %65 {strides = array<i32>} : memref<16x64xf32, #tpu.memory_space<vmem>>, vector<8x16xf32>,
    %67 = vector.extract_strided_slice %30 {offsets = [0, 32], sizes = [8, 16], strides = [1, 1]} : vector<16x192xf32> to vector<8x16xf32>
    %68 = vector.extract_strided_slice %30 {offsets = [0, 96], sizes = [8, 16], strides = [1, 1]} : vector<16x192xf32> to vector<8x16xf32>
    %69 = vector.extract_strided_slice %30 {offsets = [0, 160], sizes = [8, 16], strides = [1, 1]} : vector<16x192xf32> to vector<8x16xf32>
    %cst_29 = arith.constant dense<0.000000e+00> : vector<8x8xf32>
    %70 = tpu.matmul %67, %68, %cst_29 {dimension_numbers = #tpu.dot_dimension_numbers<[1], [1], [0], [0], [0, 0, 1, 0], [], []>} : vector<8x16xf32>, vector<8x16xf32>, vector<8x8xf32> -> vector<8x8xf32>
    %cst_30 = arith.constant 2.500000e-01 : f32
    %71 = vector.broadcast %cst_30 : f32 to vector<8x8xf32>
    %72 = arith.mulf %70, %71 : vector<8x8xf32>
    %cst_31 = arith.constant dense<0xFF800000> : vector<8xf32>
    %73 = vector.multi_reduction <maximumf>, %72, %cst_31 [1] : vector<8x8xf32> to vector<8xf32>
    %74 = vector.shape_cast %73 : vector<8xf32> to vector<8x1xf32>
    %75 = vector.broadcast %74 : vector<8x1xf32> to vector<8x8xf32>
    %76 = arith.subf %72, %75 : vector<8x8xf32>
    %77 = math.exp %76 : vector<8x8xf32>
    %cst_32 = arith.constant dense<0.000000e+00> : vector<8xf32>
    %78 = vector.multi_reduction <add>, %77, %cst_32 [1] : vector<8x8xf32> to vector<8xf32>
    %79 = vector.shape_cast %78 : vector<8xf32> to vector<8x1xf32>
    %80 = tpu.reciprocal %79 {approx = true} : vector<8x1xf32> -> vector<8x1xf32>
    %81 = vector.broadcast %80 : vector<8x1xf32> to vector<8x8xf32>
    %82 = arith.mulf %77, %81 : vector<8x8xf32>
    %cst_33 = arith.constant dense<0.000000e+00> : vector<8x16xf32>
    %83 = tpu.matmul %82, %69, %cst_33 {dimension_numbers = #tpu.dot_dimension_numbers<[1], [0], [0], [1], [0, 0, 1, 1], [], []>} : vector<8x8xf32>, vector<8x16xf32>, vector<8x16xf32> -> vector<8x16xf32>
    %c0_34 = arith.constant 0 : index
    %c32 = arith.constant 32 : index
    %84 = vector.load %arg23[%c0_34, %c32] : memref<16x64xf32, #tpu.memory_space<vmem>>, vector<8x16xf32>
    tpu.vector_store %arg23[%c0_34, %c32], %83 {strides = array<i32>} : memref<16x64xf32, #tpu.memory_space<vmem>>, vector<8x16xf32>,
    %85 = vector.extract_strided_slice %30 {offsets = [0, 48], sizes = [8, 16], strides = [1, 1]} : vector<16x192xf32> to vector<8x16xf32>
    %86 = vector.extract_strided_slice %30 {offsets = [0, 112], sizes = [8, 16], strides = [1, 1]} : vector<16x192xf32> to vector<8x16xf32>
    %87 = vector.extract_strided_slice %30 {offsets = [0, 176], sizes = [8, 16], strides = [1, 1]} : vector<16x192xf32> to vector<8x16xf32>
    %cst_35 = arith.constant dense<0.000000e+00> : vector<8x8xf32>
    %88 = tpu.matmul %85, %86, %cst_35 {dimension_numbers = #tpu.dot_dimension_numbers<[1], [1], [0], [0], [0, 0, 1, 0], [], []>} : vector<8x16xf32>, vector<8x16xf32>, vector<8x8xf32> -> vector<8x8xf32>
    %cst_36 = arith.constant 2.500000e-01 : f32
    %89 = vector.broadcast %cst_36 : f32 to vector<8x8xf32>
    %90 = arith.mulf %88, %89 : vector<8x8xf32>
    %cst_37 = arith.constant dense<0xFF800000> : vector<8xf32>
    %91 = vector.multi_reduction <maximumf>, %90, %cst_37 [1] : vector<8x8xf32> to vector<8xf32>
    %92 = vector.shape_cast %91 : vector<8xf32> to vector<8x1xf32>
    %93 = vector.broadcast %92 : vector<8x1xf32> to vector<8x8xf32>
    %94 = arith.subf %90, %93 : vector<8x8xf32>
    %95 = math.exp %94 : vector<8x8xf32>
    %cst_38 = arith.constant dense<0.000000e+00> : vector<8xf32>
    %96 = vector.multi_reduction <add>, %95, %cst_38 [1] : vector<8x8xf32> to vector<8xf32>
    %97 = vector.shape_cast %96 : vector<8xf32> to vector<8x1xf32>
    %98 = tpu.reciprocal %97 {approx = true} : vector<8x1xf32> -> vector<8x1xf32>
    %99 = vector.broadcast %98 : vector<8x1xf32> to vector<8x8xf32>
    %100 = arith.mulf %95, %99 : vector<8x8xf32>
    %cst_39 = arith.constant dense<0.000000e+00> : vector<8x16xf32>
    %101 = tpu.matmul %100, %87, %cst_39 {dimension_numbers = #tpu.dot_dimension_numbers<[1], [0], [0], [1], [0, 0, 1, 1], [], []>} : vector<8x8xf32>, vector<8x16xf32>, vector<8x16xf32> -> vector<8x16xf32>
    %c0_40 = arith.constant 0 : index
    %c48 = arith.constant 48 : index
    %102 = vector.load %arg23[%c0_40, %c48] : memref<16x64xf32, #tpu.memory_space<vmem>>, vector<8x16xf32>
    tpu.vector_store %arg23[%c0_40, %c48], %101 {strides = array<i32>} : memref<16x64xf32, #tpu.memory_space<vmem>>, vector<8x16xf32>,
    %103 = vector.extract_strided_slice %30 {offsets = [8, 0], sizes = [8, 16], strides = [1, 1]} : vector<16x192xf32> to vector<8x16xf32>
    %104 = vector.extract_strided_slice %30 {offsets = [8, 64], sizes = [8, 16], strides = [1, 1]} : vector<16x192xf32> to vector<8x16xf32>
    %105 = vector.extract_strided_slice %30 {offsets = [8, 128], sizes = [8, 16], strides = [1, 1]} : vector<16x192xf32> to vector<8x16xf32>
    %cst_41 = arith.constant dense<0.000000e+00> : vector<8x8xf32>
    %106 = tpu.matmul %103, %104, %cst_41 {dimension_numbers = #tpu.dot_dimension_numbers<[1], [1], [0], [0], [0, 0, 1, 0], [], []>} : vector<8x16xf32>, vector<8x16xf32>, vector<8x8xf32> -> vector<8x8xf32>
    %cst_42 = arith.constant 2.500000e-01 : f32
    %107 = vector.broadcast %cst_42 : f32 to vector<8x8xf32>
    %108 = arith.mulf %106, %107 : vector<8x8xf32>
    %cst_43 = arith.constant dense<0xFF800000> : vector<8xf32>
    %109 = vector.multi_reduction <maximumf>, %108, %cst_43 [1] : vector<8x8xf32> to vector<8xf32>
    %110 = vector.shape_cast %109 : vector<8xf32> to vector<8x1xf32>
    %111 = vector.broadcast %110 : vector<8x1xf32> to vector<8x8xf32>
    %112 = arith.subf %108, %111 : vector<8x8xf32>
    %113 = math.exp %112 : vector<8x8xf32>
    %cst_44 = arith.constant dense<0.000000e+00> : vector<8xf32>
    %114 = vector.multi_reduction <add>, %113, %cst_44 [1] : vector<8x8xf32> to vector<8xf32>
    %115 = vector.shape_cast %114 : vector<8xf32> to vector<8x1xf32>
    %116 = tpu.reciprocal %115 {approx = true} : vector<8x1xf32> -> vector<8x1xf32>
    %117 = vector.broadcast %116 : vector<8x1xf32> to vector<8x8xf32>
    %118 = arith.mulf %113, %117 : vector<8x8xf32>
    %cst_45 = arith.constant dense<0.000000e+00> : vector<8x16xf32>
    %119 = tpu.matmul %118, %105, %cst_45 {dimension_numbers = #tpu.dot_dimension_numbers<[1], [0], [0], [1], [0, 0, 1, 1], [], []>} : vector<8x8xf32>, vector<8x16xf32>, vector<8x16xf32> -> vector<8x16xf32>
    %c8 = arith.constant 8 : index
    %c0_46 = arith.constant 0 : index
    %120 = vector.load %arg23[%c8, %c0_46] : memref<16x64xf32, #tpu.memory_space<vmem>>, vector<8x16xf32>
    tpu.vector_store %arg23[%c8, %c0_46], %119 {strides = array<i32>} : memref<16x64xf32, #tpu.memory_space<vmem>>, vector<8x16xf32>,
    %121 = vector.extract_strided_slice %30 {offsets = [8, 16], sizes = [8, 16], strides = [1, 1]} : vector<16x192xf32> to vector<8x16xf32>
    %122 = vector.extract_strided_slice %30 {offsets = [8, 80], sizes = [8, 16], strides = [1, 1]} : vector<16x192xf32> to vector<8x16xf32>
    %123 = vector.extract_strided_slice %30 {offsets = [8, 144], sizes = [8, 16], strides = [1, 1]} : vector<16x192xf32> to vector<8x16xf32>
    %cst_47 = arith.constant dense<0.000000e+00> : vector<8x8xf32>
    %124 = tpu.matmul %121, %122, %cst_47 {dimension_numbers = #tpu.dot_dimension_numbers<[1], [1], [0], [0], [0, 0, 1, 0], [], []>} : vector<8x16xf32>, vector<8x16xf32>, vector<8x8xf32> -> vector<8x8xf32>
    %cst_48 = arith.constant 2.500000e-01 : f32
    %125 = vector.broadcast %cst_48 : f32 to vector<8x8xf32>
    %126 = arith.mulf %124, %125 : vector<8x8xf32>
    %cst_49 = arith.constant dense<0xFF800000> : vector<8xf32>
    %127 = vector.multi_reduction <maximumf>, %126, %cst_49 [1] : vector<8x8xf32> to vector<8xf32>
    %128 = vector.shape_cast %127 : vector<8xf32> to vector<8x1xf32>
    %129 = vector.broadcast %128 : vector<8x1xf32> to vector<8x8xf32>
    %130 = arith.subf %126, %129 : vector<8x8xf32>
    %131 = math.exp %130 : vector<8x8xf32>
    %cst_50 = arith.constant dense<0.000000e+00> : vector<8xf32>
    %132 = vector.multi_reduction <add>, %131, %cst_50 [1] : vector<8x8xf32> to vector<8xf32>
    %133 = vector.shape_cast %132 : vector<8xf32> to vector<8x1xf32>
    %134 = tpu.reciprocal %133 {approx = true} : vector<8x1xf32> -> vector<8x1xf32>
    %135 = vector.broadcast %134 : vector<8x1xf32> to vector<8x8xf32>
    %136 = arith.mulf %131, %135 : vector<8x8xf32>
    %cst_51 = arith.constant dense<0.000000e+00> : vector<8x16xf32>
    %137 = tpu.matmul %136, %123, %cst_51 {dimension_numbers = #tpu.dot_dimension_numbers<[1], [0], [0], [1], [0, 0, 1, 1], [], []>} : vector<8x8xf32>, vector<8x16xf32>, vector<8x16xf32> -> vector<8x16xf32>
    %c8_52 = arith.constant 8 : index
    %c16_53 = arith.constant 16 : index
    %138 = vector.load %arg23[%c8_52, %c16_53] : memref<16x64xf32, #tpu.memory_space<vmem>>, vector<8x16xf32>
    tpu.vector_store %arg23[%c8_52, %c16_53], %137 {strides = array<i32>} : memref<16x64xf32, #tpu.memory_space<vmem>>, vector<8x16xf32>,
    %139 = vector.extract_strided_slice %30 {offsets = [8, 32], sizes = [8, 16], strides = [1, 1]} : vector<16x192xf32> to vector<8x16xf32>
    %140 = vector.extract_strided_slice %30 {offsets = [8, 96], sizes = [8, 16], strides = [1, 1]} : vector<16x192xf32> to vector<8x16xf32>
    %141 = vector.extract_strided_slice %30 {offsets = [8, 160], sizes = [8, 16], strides = [1, 1]} : vector<16x192xf32> to vector<8x16xf32>
    %cst_54 = arith.constant dense<0.000000e+00> : vector<8x8xf32>
    %142 = tpu.matmul %139, %140, %cst_54 {dimension_numbers = #tpu.dot_dimension_numbers<[1], [1], [0], [0], [0, 0, 1, 0], [], []>} : vector<8x16xf32>, vector<8x16xf32>, vector<8x8xf32> -> vector<8x8xf32>
    %cst_55 = arith.constant 2.500000e-01 : f32
    %143 = vector.broadcast %cst_55 : f32 to vector<8x8xf32>
    %144 = arith.mulf %142, %143 : vector<8x8xf32>
    %cst_56 = arith.constant dense<0xFF800000> : vector<8xf32>
    %145 = vector.multi_reduction <maximumf>, %144, %cst_56 [1] : vector<8x8xf32> to vector<8xf32>
    %146 = vector.shape_cast %145 : vector<8xf32> to vector<8x1xf32>
    %147 = vector.broadcast %146 : vector<8x1xf32> to vector<8x8xf32>
    %148 = arith.subf %144, %147 : vector<8x8xf32>
    %149 = math.exp %148 : vector<8x8xf32>
    %cst_57 = arith.constant dense<0.000000e+00> : vector<8xf32>
    %150 = vector.multi_reduction <add>, %149, %cst_57 [1] : vector<8x8xf32> to vector<8xf32>
    %151 = vector.shape_cast %150 : vector<8xf32> to vector<8x1xf32>
    %152 = tpu.reciprocal %151 {approx = true} : vector<8x1xf32> -> vector<8x1xf32>
    %153 = vector.broadcast %152 : vector<8x1xf32> to vector<8x8xf32>
    %154 = arith.mulf %149, %153 : vector<8x8xf32>
    %cst_58 = arith.constant dense<0.000000e+00> : vector<8x16xf32>
    %155 = tpu.matmul %154, %141, %cst_58 {dimension_numbers = #tpu.dot_dimension_numbers<[1], [0], [0], [1], [0, 0, 1, 1], [], []>} : vector<8x8xf32>, vector<8x16xf32>, vector<8x16xf32> -> vector<8x16xf32>
    %c8_59 = arith.constant 8 : index
    %c32_60 = arith.constant 32 : index
    %156 = vector.load %arg23[%c8_59, %c32_60] : memref<16x64xf32, #tpu.memory_space<vmem>>, vector<8x16xf32>
    tpu.vector_store %arg23[%c8_59, %c32_60], %155 {strides = array<i32>} : memref<16x64xf32, #tpu.memory_space<vmem>>, vector<8x16xf32>,
    %157 = vector.extract_strided_slice %30 {offsets = [8, 48], sizes = [8, 16], strides = [1, 1]} : vector<16x192xf32> to vector<8x16xf32>
    %158 = vector.extract_strided_slice %30 {offsets = [8, 112], sizes = [8, 16], strides = [1, 1]} : vector<16x192xf32> to vector<8x16xf32>
    %159 = vector.extract_strided_slice %30 {offsets = [8, 176], sizes = [8, 16], strides = [1, 1]} : vector<16x192xf32> to vector<8x16xf32>
    %cst_61 = arith.constant dense<0.000000e+00> : vector<8x8xf32>
    %160 = tpu.matmul %157, %158, %cst_61 {dimension_numbers = #tpu.dot_dimension_numbers<[1], [1], [0], [0], [0, 0, 1, 0], [], []>} : vector<8x16xf32>, vector<8x16xf32>, vector<8x8xf32> -> vector<8x8xf32>
    %cst_62 = arith.constant 2.500000e-01 : f32
    %161 = vector.broadcast %cst_62 : f32 to vector<8x8xf32>
    %162 = arith.mulf %160, %161 : vector<8x8xf32>
    %cst_63 = arith.constant dense<0xFF800000> : vector<8xf32>
    %163 = vector.multi_reduction <maximumf>, %162, %cst_63 [1] : vector<8x8xf32> to vector<8xf32>
    %164 = vector.shape_cast %163 : vector<8xf32> to vector<8x1xf32>
    %165 = vector.broadcast %164 : vector<8x1xf32> to vector<8x8xf32>
    %166 = arith.subf %162, %165 : vector<8x8xf32>
    %167 = math.exp %166 : vector<8x8xf32>
    %cst_64 = arith.constant dense<0.000000e+00> : vector<8xf32>
    %168 = vector.multi_reduction <add>, %167, %cst_64 [1] : vector<8x8xf32> to vector<8xf32>
    %169 = vector.shape_cast %168 : vector<8xf32> to vector<8x1xf32>
    %170 = tpu.reciprocal %169 {approx = true} : vector<8x1xf32> -> vector<8x1xf32>
    %171 = vector.broadcast %170 : vector<8x1xf32> to vector<8x8xf32>
    %172 = arith.mulf %167, %171 : vector<8x8xf32>
    %cst_65 = arith.constant dense<0.000000e+00> : vector<8x16xf32>
    %173 = tpu.matmul %172, %159, %cst_65 {dimension_numbers = #tpu.dot_dimension_numbers<[1], [0], [0], [1], [0, 0, 1, 1], [], []>} : vector<8x8xf32>, vector<8x16xf32>, vector<8x16xf32> -> vector<8x16xf32>
    %c8_66 = arith.constant 8 : index
    %c48_67 = arith.constant 48 : index
    %174 = vector.load %arg23[%c8_66, %c48_67] : memref<16x64xf32, #tpu.memory_space<vmem>>, vector<8x16xf32>
    tpu.vector_store %arg23[%c8_66, %c48_67], %173 {strides = array<i32>} : memref<16x64xf32, #tpu.memory_space<vmem>>, vector<8x16xf32>,
    %c0_68 = arith.constant 0 : index
    %c0_69 = arith.constant 0 : index
    %175 = vector.load %arg23[%c0_68, %c0_69] : memref<16x64xf32, #tpu.memory_space<vmem>>, vector<16x64xf32>
    %c0_70 = arith.constant 0 : index
    %c0_71 = arith.constant 0 : index
    %c0_72 = arith.constant 0 : index
    %176 = vector.load %arg13[%c0_70, %c0_71, %c0_72] : memref<1x64x48xf32, #tpu.memory_space<vmem>>, vector<1x64x48xf32>
    %177 = vector.shape_cast %176 : vector<1x64x48xf32> to vector<64x48xf32>
    %cst_73 = arith.constant dense<0.000000e+00> : vector<16x48xf32>
    %178 = tpu.matmul %175, %177, %cst_73 {dimension_numbers = #tpu.dot_dimension_numbers<[1], [0], [0], [1], [0, 0, 1, 1], [], []>} : vector<16x64xf32>, vector<64x48xf32>, vector<16x48xf32> -> vector<16x48xf32>
    %179 = arith.addf %3, %178 : vector<16x48xf32>
    %c0_74 = arith.constant 0 : index
    %c0_75 = arith.constant 0 : index
    %c0_76 = arith.constant 0 : index
    %180 = vector.load %arg14[%c0_74, %c0_75, %c0_76] : memref<1x1x48xf32, #tpu.memory_space<vmem>>, vector<1x1x48xf32>
    %181 = vector.shape_cast %180 : vector<1x1x48xf32> to vector<1x48xf32>
    %182 = vector.broadcast %181 : vector<1x48xf32> to vector<16x48xf32>
    %183 = arith.addf %179, %182 : vector<16x48xf32>
    %c0_77 = arith.constant 0 : index
    %c0_78 = arith.constant 0 : index
    %c0_79 = arith.constant 0 : index
    %184 = vector.load %arg15[%c0_77, %c0_78, %c0_79] : memref<1x1x48xf32, #tpu.memory_space<vmem>>, vector<1x1x48xf32>
    %185 = vector.shape_cast %184 : vector<1x1x48xf32> to vector<1x48xf32>
    %c0_80 = arith.constant 0 : index
    %c0_81 = arith.constant 0 : index
    %c0_82 = arith.constant 0 : index
    %186 = vector.load %arg16[%c0_80, %c0_81, %c0_82] : memref<1x1x48xf32, #tpu.memory_space<vmem>>, vector<1x1x48xf32>
    %187 = vector.shape_cast %186 : vector<1x1x48xf32> to vector<1x48xf32>
    %cst_83 = arith.constant dense<0.000000e+00> : vector<16xf32>
    %188 = vector.multi_reduction <add>, %183, %cst_83 [1] : vector<16x48xf32> to vector<16xf32>
    %189 = vector.shape_cast %188 : vector<16xf32> to vector<16x1xf32>
    %cst_84 = arith.constant 4.800000e+01 : f32
    %190 = vector.broadcast %cst_84 : f32 to vector<16x1xf32>
    %191 = arith.divf %189, %190 : vector<16x1xf32>
    %192 = vector.broadcast %191 : vector<16x1xf32> to vector<16x48xf32>
    %193 = arith.subf %183, %192 : vector<16x48xf32>
    %194 = arith.mulf %193, %193 : vector<16x48xf32>
    %cst_85 = arith.constant dense<0.000000e+00> : vector<16xf32>
    %195 = vector.multi_reduction <add>, %194, %cst_85 [1] : vector<16x48xf32> to vector<16xf32>
    %196 = vector.shape_cast %195 : vector<16xf32> to vector<16x1xf32>
    %cst_86 = arith.constant 4.800000e+01 : f32
    %197 = vector.broadcast %cst_86 : f32 to vector<16x1xf32>
    %198 = arith.divf %196, %197 : vector<16x1xf32>
    %cst_87 = arith.constant 9.99999974E-6 : f32
    %199 = vector.broadcast %cst_87 : f32 to vector<16x1xf32>
    %200 = arith.addf %198, %199 : vector<16x1xf32>
    %201 = math.rsqrt %200 : vector<16x1xf32>
    %202 = vector.broadcast %201 : vector<16x1xf32> to vector<16x48xf32>
    %203 = arith.mulf %193, %202 : vector<16x48xf32>
    %204 = vector.broadcast %185 : vector<1x48xf32> to vector<16x48xf32>
    %205 = arith.mulf %203, %204 : vector<16x48xf32>
    %206 = vector.broadcast %187 : vector<1x48xf32> to vector<16x48xf32>
    %207 = arith.addf %205, %206 : vector<16x48xf32>
    %c0_88 = arith.constant 0 : index
    %c0_89 = arith.constant 0 : index
    %c0_90 = arith.constant 0 : index
    %208 = vector.load %arg17[%c0_88, %c0_89, %c0_90] : memref<1x48x96xf32, #tpu.memory_space<vmem>>, vector<1x48x96xf32>
    %209 = vector.shape_cast %208 : vector<1x48x96xf32> to vector<48x96xf32>
    %cst_91 = arith.constant dense<0.000000e+00> : vector<16x96xf32>
    %210 = tpu.matmul %207, %209, %cst_91 {dimension_numbers = #tpu.dot_dimension_numbers<[1], [0], [0], [1], [0, 0, 1, 1], [], []>} : vector<16x48xf32>, vector<48x96xf32>, vector<16x96xf32> -> vector<16x96xf32>
    %c0_92 = arith.constant 0 : index
    %c0_93 = arith.constant 0 : index
    %c0_94 = arith.constant 0 : index
    %211 = vector.load %arg18[%c0_92, %c0_93, %c0_94] : memref<1x1x96xf32, #tpu.memory_space<vmem>>, vector<1x1x96xf32>
    %212 = vector.shape_cast %211 : vector<1x1x96xf32> to vector<1x96xf32>
    %213 = vector.broadcast %212 : vector<1x96xf32> to vector<16x96xf32>
    %214 = arith.addf %210, %213 : vector<16x96xf32>
    %cst_95 = arith.constant 5.000000e-01 : f32
    %215 = vector.broadcast %cst_95 : f32 to vector<16x96xf32>
    %216 = arith.mulf %215, %214 : vector<16x96xf32>
    %cst_96 = arith.constant 0.707106769 : f32
    %217 = vector.broadcast %cst_96 : f32 to vector<16x96xf32>
    %218 = arith.mulf %214, %217 : vector<16x96xf32>
    %219 = math.erf %218 : vector<16x96xf32>
    %cst_97 = arith.constant 1.000000e+00 : f32
    %220 = vector.broadcast %cst_97 : f32 to vector<16x96xf32>
    %221 = arith.addf %220, %219 : vector<16x96xf32>
    %222 = arith.mulf %216, %221 : vector<16x96xf32>
    %c0_98 = arith.constant 0 : index
    %c0_99 = arith.constant 0 : index
    %c0_100 = arith.constant 0 : index
    %223 = vector.load %arg19[%c0_98, %c0_99, %c0_100] : memref<1x96x48xf32, #tpu.memory_space<vmem>>, vector<1x96x48xf32>
    %224 = vector.shape_cast %223 : vector<1x96x48xf32> to vector<96x48xf32>
    %cst_101 = arith.constant dense<0.000000e+00> : vector<16x48xf32>
    %225 = tpu.matmul %222, %224, %cst_101 {dimension_numbers = #tpu.dot_dimension_numbers<[1], [0], [0], [1], [0, 0, 1, 1], [], []>} : vector<16x96xf32>, vector<96x48xf32>, vector<16x48xf32> -> vector<16x48xf32>
    %226 = arith.addf %183, %225 : vector<16x48xf32>
    %c0_102 = arith.constant 0 : index
    %c0_103 = arith.constant 0 : index
    %c0_104 = arith.constant 0 : index
    %227 = vector.load %arg20[%c0_102, %c0_103, %c0_104] : memref<1x1x48xf32, #tpu.memory_space<vmem>>, vector<1x1x48xf32>
    %228 = vector.shape_cast %227 : vector<1x1x48xf32> to vector<1x48xf32>
    %229 = vector.broadcast %228 : vector<1x48xf32> to vector<16x48xf32>
    %230 = arith.addf %226, %229 : vector<16x48xf32>
    %c0_105 = arith.constant 0 : index
    %c0_106 = arith.constant 0 : index
    %231 = vector.load %arg22[%c0_105, %c0_106] : memref<16x48xf32, #tpu.memory_space<vmem>>, vector<16x48xf32>
    tpu.vector_store %arg22[%c0_105, %c0_106], %230 {strides = array<i32>} : memref<16x48xf32, #tpu.memory_space<vmem>>, vector<16x48xf32>,
    %c1_i32 = arith.constant 1 : i32
    %232 = arith.cmpi eq, %arg1, %c1_i32 : i32
    %233 = arith.extui %232 : i1 to i32
    %c0_i32_107 = arith.constant 0 : i32
    %234 = arith.cmpi ne, %233, %c0_i32_107 : i32
    scf.if %234 {
      %235 = vector.shape_cast %230 : vector<16x48xf32> to vector<2x8x48xf32>
      %c0_108 = arith.constant 0 : index
      %c0_109 = arith.constant 0 : index
      %c0_110 = arith.constant 0 : index
      %236 = vector.load %arg21[%c0_108, %c0_109, %c0_110] : memref<2x8x48xf32, #tpu.memory_space<vmem>>, vector<2x8x48xf32>
      tpu.vector_store %arg21[%c0_108, %c0_109, %c0_110], %235 {strides = array<i32>} : memref<2x8x48xf32, #tpu.memory_space<vmem>>, vector<2x8x48xf32>,
    } else {
    }
    return
  }
  func.func @transform_0(%arg0: i32, %arg1: i32) -> (i32, i32, i32) {
    %c0_i32 = arith.constant 0 : i32
    %c0_i32_0 = arith.constant 0 : i32
    %c0_i32_1 = arith.constant 0 : i32
    return %arg0, %c0_i32, %c0_i32_0 : i32, i32, i32
  }
  func.func @transform_1(%arg0: i32, %arg1: i32) -> (i32, i32) {
    %c0_i32 = arith.constant 0 : i32
    %c0_i32_0 = arith.constant 0 : i32
    %c0_i32_1 = arith.constant 0 : i32
    return %c0_i32, %c0_i32_0 : i32, i32
  }
  func.func @transform_2(%arg0: i32, %arg1: i32) -> (i32, i32) {
    %c0_i32 = arith.constant 0 : i32
    %c0_i32_0 = arith.constant 0 : i32
    %c0_i32_1 = arith.constant 0 : i32
    return %c0_i32, %c0_i32_0 : i32, i32
  }
  func.func @transform_3(%arg0: i32, %arg1: i32) -> (i32, i32) {
    %c0_i32 = arith.constant 0 : i32
    %c0_i32_0 = arith.constant 0 : i32
    %c0_i32_1 = arith.constant 0 : i32
    return %c0_i32, %c0_i32_0 : i32, i32
  }
  func.func @transform_4(%arg0: i32, %arg1: i32) -> (i32, i32) {
    %c0_i32 = arith.constant 0 : i32
    %c0_i32_0 = arith.constant 0 : i32
    %c0_i32_1 = arith.constant 0 : i32
    return %c0_i32, %c0_i32_0 : i32, i32
  }
  func.func @transform_5(%arg0: i32, %arg1: i32) -> (i32, i32) {
    %c0_i32 = arith.constant 0 : i32
    %c0_i32_0 = arith.constant 0 : i32
    %c0_i32_1 = arith.constant 0 : i32
    return %c0_i32, %c0_i32_0 : i32, i32
  }
  func.func @transform_6(%arg0: i32, %arg1: i32) -> (i32, i32) {
    %c0_i32 = arith.constant 0 : i32
    %c0_i32_0 = arith.constant 0 : i32
    %c0_i32_1 = arith.constant 0 : i32
    return %c0_i32, %c0_i32_0 : i32, i32
  }
  func.func @transform_7(%arg0: i32, %arg1: i32) -> (i32, i32) {
    %c0_i32 = arith.constant 0 : i32
    %c0_i32_0 = arith.constant 0 : i32
    %c0_i32_1 = arith.constant 0 : i32
    return %c0_i32, %c0_i32_0 : i32, i32
  }
  func.func @transform_8(%arg0: i32, %arg1: i32) -> (i32, i32, i32) {
    %c0_i32 = arith.constant 0 : i32
    %c0_i32_0 = arith.constant 0 : i32
    %c0_i32_1 = arith.constant 0 : i32
    return %arg1, %c0_i32, %c0_i32_0 : i32, i32, i32
  }
  func.func @transform_9(%arg0: i32, %arg1: i32) -> (i32, i32, i32) {
    %c0_i32 = arith.constant 0 : i32
    %c0_i32_0 = arith.constant 0 : i32
    %c0_i32_1 = arith.constant 0 : i32
    return %arg1, %c0_i32, %c0_i32_0 : i32, i32, i32
  }
  func.func @transform_10(%arg0: i32, %arg1: i32) -> (i32, i32, i32) {
    %c0_i32 = arith.constant 0 : i32
    %c0_i32_0 = arith.constant 0 : i32
    %c0_i32_1 = arith.constant 0 : i32
    return %arg1, %c0_i32, %c0_i32_0 : i32, i32, i32
  }
  func.func @transform_11(%arg0: i32, %arg1: i32) -> (i32, i32, i32) {
    %c0_i32 = arith.constant 0 : i32
    %c0_i32_0 = arith.constant 0 : i32
    %c0_i32_1 = arith.constant 0 : i32
    return %arg1, %c0_i32, %c0_i32_0 : i32, i32, i32
  }
  func.func @transform_12(%arg0: i32, %arg1: i32) -> (i32, i32, i32) {
    %c0_i32 = arith.constant 0 : i32
    %c0_i32_0 = arith.constant 0 : i32
    %c0_i32_1 = arith.constant 0 : i32
    return %arg1, %c0_i32, %c0_i32_0 : i32, i32, i32
  }
  func.func @transform_13(%arg0: i32, %arg1: i32) -> (i32, i32, i32) {
    %c0_i32 = arith.constant 0 : i32
    %c0_i32_0 = arith.constant 0 : i32
    %c0_i32_1 = arith.constant 0 : i32
    return %arg1, %c0_i32, %c0_i32_0 : i32, i32, i32
  }
  func.func @transform_14(%arg0: i32, %arg1: i32) -> (i32, i32, i32) {
    %c0_i32 = arith.constant 0 : i32
    %c0_i32_0 = arith.constant 0 : i32
    %c0_i32_1 = arith.constant 0 : i32
    return %arg1, %c0_i32, %c0_i32_0 : i32, i32, i32
  }
  func.func @transform_15(%arg0: i32, %arg1: i32) -> (i32, i32, i32) {
    %c0_i32 = arith.constant 0 : i32
    %c0_i32_0 = arith.constant 0 : i32
    %c0_i32_1 = arith.constant 0 : i32
    return %arg1, %c0_i32, %c0_i32_0 : i32, i32, i32
  }
  func.func @transform_16(%arg0: i32, %arg1: i32) -> (i32, i32, i32) {
    %c0_i32 = arith.constant 0 : i32
    %c0_i32_0 = arith.constant 0 : i32
    %c0_i32_1 = arith.constant 0 : i32
    return %arg1, %c0_i32, %c0_i32_0 : i32, i32, i32
  }
  func.func @transform_17(%arg0: i32, %arg1: i32) -> (i32, i32, i32) {
    %c0_i32 = arith.constant 0 : i32
    %c0_i32_0 = arith.constant 0 : i32
    %c0_i32_1 = arith.constant 0 : i32
    return %arg1, %c0_i32, %c0_i32_0 : i32, i32, i32
  }
  func.func @transform_18(%arg0: i32, %arg1: i32) -> (i32, i32, i32) {
    %c0_i32 = arith.constant 0 : i32
    %c0_i32_0 = arith.constant 0 : i32
    %c0_i32_1 = arith.constant 0 : i32
    return %arg1, %c0_i32, %c0_i32_0 : i32, i32, i32
  }
  func.func @transform_19(%arg0: i32, %arg1: i32) -> (i32, i32, i32) {
    %c0_i32 = arith.constant 0 : i32
    %c0_i32_0 = arith.constant 0 : i32
    %c0_i32_1 = arith.constant 0 : i32
    return %arg0, %c0_i32, %c0_i32_0 : i32, i32, i32
  }
}

</mosaic_0001>

<llo_original>
// kernel: vit_forward.1
$region0: #{vit_forward.1}
  #allocation0 [shape = 'u32[]', space=smem, size = 0x4, offset = 0x4, fixed_abs, tag = 'smem constant byte address 0x4 - core index']
  #allocation1 [shape = 'u32[144,128]{1,0:T(1,128)}', space=vmem, size = 0x12000, scoped, tag = 'internal scratch']
  #allocation2 [shape = 'f32[16,48]{1,0:T(8,128)}', space=vmem, size = 0x2000, scoped, tag = 'scratch operand']
  #allocation3 [shape = 'f32[16,64]{1,0:T(8,128)}', space=vmem, size = 0x2000, scoped, tag = 'scratch operand']
  %s0 = inlined_call_operand.vmem [shape: f32[4,8,96], index: 0, kind: input, shape index: {}]
  %s1 = inlined_call_operand.vmem [shape: f32[8,48], index: 1, kind: input, shape index: {}]
  %s2 = inlined_call_operand.vmem [shape: f32[1,96], index: 2, kind: input, shape index: {}]
  %s3 = inlined_call_operand.vmem [shape: f32[1,96], index: 3, kind: input, shape index: {}]
  %s4 = inlined_call_operand.vmem [shape: f32[96,48], index: 4, kind: input, shape index: {}]
  %s5 = inlined_call_operand.vmem [shape: f32[1,48], index: 5, kind: input, shape index: {}]
  %s6 = inlined_call_operand.vmem [shape: f32[1,48], index: 6, kind: input, shape index: {}]
  %s7 = inlined_call_operand.vmem [shape: f32[1,48], index: 7, kind: input, shape index: {}]
  %s8 = inlined_call_operand.vmem [shape: f32[2,1,48], index: 8, kind: input, shape index: {}]
  %s9 = inlined_call_operand.vmem [shape: f32[2,1,48], index: 9, kind: input, shape index: {}]
  %s10 = inlined_call_operand.vmem [shape: f32[2,48,192], index: 10, kind: input, shape index: {}]
  %s11 = inlined_call_operand.vmem [shape: f32[2,64,48], index: 11, kind: input, shape index: {}]
  %s12 = inlined_call_operand.vmem [shape: f32[2,1,48], index: 12, kind: input, shape index: {}]
  %s13 = inlined_call_operand.vmem [shape: f32[2,1,48], index: 13, kind: input, shape index: {}]
  %s14 = inlined_call_operand.vmem [shape: f32[2,1,48], index: 14, kind: input, shape index: {}]
  %s15 = inlined_call_operand.vmem [shape: f32[2,48,96], index: 15, kind: input, shape index: {}]
  %s16 = inlined_call_operand.vmem [shape: f32[2,1,96], index: 16, kind: input, shape index: {}]
  %s17 = inlined_call_operand.vmem [shape: f32[2,96,48], index: 17, kind: input, shape index: {}]
  %s18 = inlined_call_operand.vmem [shape: f32[2,1,48], index: 18, kind: input, shape index: {}]
  %s19 = inlined_call_operand.hbm [shape: f32[4,8,48], index: 19, kind: output, shape index: {}]
  %s20 = sld [smem:[#allocation0]]
  $region117: #{vit_forward.1} parent=0
    _
  %s22 = ssub.s32 1, %s20
  %s23 = scalar_select 0, %s22, %s20
  $region1: #{vit_forward.1} parent=0
    #allocation4 [shape = 'u8[16384]{0}', space=vmem, size = 0x4000, scoped, tag = 'output window, operand 0']
    #allocation5 [shape = 's32[2]{0}', space=sflag, size = 0x8, scoped, tag = 'scoped memory for vit_forward.1']
    %24 = vsyncpa [#allocation5], 0
    %s25 = scalar_lea.sflag [#allocation5], 1
    %26 = vsyncpa %s25, 0
    loop: start=0, step=1, limit=6
    $region2: #{vit_forward.1} parent=1 // loop_pre_header
      _
    $region3: #{vit_forward.1} parent=1 // loop_header
      %s28 = sphi 0, %s32
      %p29 = scmp.ge.s32.totalorder %s28, 6
      %s35 = sphi 0, %s47
      %s36 = sphi 0, %s43
      %s37 = sphi 0, %s35
      %s38 = sphi 0, %s36
      %s39 = sphi 0, %s37
      %s40 = sphi 0, %s38
      %s50 = sphi 0, %s52
      %s53 = sphi 0, %s50
      %s54 = sphi 0, %s53
      %s70 = sphi 0, %s54
      %s74 = sphi 0, %s74
      %s76 = sphi 0, %s74
      %s77 = sphi 0, %s76
      %s91 = sphi 0, %s77
      %s95 = sphi 0, %s95
      %s97 = sphi 0, %s95
      %s98 = sphi 0, %s97
      %s112 = sphi 0, %s98
      %s116 = sphi 0, %s116
      %s118 = sphi 0, %s116
      %s119 = sphi 0, %s118
      %s133 = sphi 0, %s119
      %s137 = sphi 0, %s137
      %s139 = sphi 0, %s137
      %s140 = sphi 0, %s139
      %s154 = sphi 0, %s140
      %s158 = sphi 0, %s158
      %s160 = sphi 0, %s158
      %s161 = sphi 0, %s160
      %s175 = sphi 0, %s161
      %s179 = sphi 0, %s179
      %s181 = sphi 0, %s179
      %s182 = sphi 0, %s181
      %s196 = sphi 0, %s182
      %s200 = sphi 0, %s200
      %s202 = sphi 0, %s200
      %s203 = sphi 0, %s202
      %s217 = sphi 0, %s203
      %s223 = sphi 0, %s225
      %s226 = sphi 0, %s223
      %s227 = sphi 0, %s226
      %s243 = sphi 0, %s227
      %s249 = sphi 0, %s251
      %s252 = sphi 0, %s249
      %s253 = sphi 0, %s252
      %s269 = sphi 0, %s253
      %s275 = sphi 0, %s277
      %s278 = sphi 0, %s275
      %s279 = sphi 0, %s278
      %s295 = sphi 0, %s279
      %s301 = sphi 0, %s303
      %s304 = sphi 0, %s301
      %s305 = sphi 0, %s304
      %s321 = sphi 0, %s305
      %s327 = sphi 0, %s329
      %s330 = sphi 0, %s327
      %s331 = sphi 0, %s330
      %s347 = sphi 0, %s331
      %s353 = sphi 0, %s355
      %s356 = sphi 0, %s353
      %s357 = sphi 0, %s356
      %s373 = sphi 0, %s357
      %s379 = sphi 0, %s381
      %s382 = sphi 0, %s379
      %s383 = sphi 0, %s382
      %s399 = sphi 0, %s383
      %s405 = sphi 0, %s407
      %s408 = sphi 0, %s405
      %s409 = sphi 0, %s408
      %s425 = sphi 0, %s409
      %s431 = sphi 0, %s433
      %s434 = sphi 0, %s431
      %s435 = sphi 0, %s434
      %s451 = sphi 0, %s435
      %s457 = sphi 0, %s459
      %s460 = sphi 0, %s457
      %s461 = sphi 0, %s460
      %s477 = sphi 0, %s461
      %s483 = sphi 0, %s485
      %s486 = sphi 0, %s483
      %s487 = sphi 0, %s486
      %s503 = sphi 0, %s487
      %s509 = sphi 0, %s511
      %s512 = sphi 0, %s509
      %s513 = sphi 0, %s512
      %s529 = sphi 0, %s513
    $region4: #{vit_forward.1} parent=1 // loop_header_branch
      %31 = sbr.rel (%p29) target = $region8
    $region5: #{vit_forward.1} parent=1 // loop_body
      %s33 = ssub.s32 %s28, 1
      %s34 = ssub.s32 %s28, 2
      %s41 = sadd.s32 1, %s36
      %p42 = scmp.ge.s32.totalorder %s41, 2
      %s43 = scalar_select %p42, 0, %s41
      %s44 = sadd.s32 1, %s35
      %s45 = scalar_select %p42, %s44, %s35
      %p46 = scmp.ge.s32.totalorder %s45, 2
      %s47 = scalar_select %p46, 0, %s45
      %s48 = ssub.s32 %s35, %s47
      %p49 = scmp.eq.s32.totalorder %s48, 0
      %s51 = sadd.s32 %s50, 1
      %s52 = scalar_select %p49, %s50, %s51
      %p55 = pneg %p49
      %p56 = scmp.eq.s32.totalorder %s28, 3
      %p57 = por %p55, %p56
      %p58 = scmp.ne.s32.totalorder %s50, %s53
      %p59 = scmp.eq.s32.totalorder %s28, 0
      %p60 = por %p58, %p59
      %p61 = scmp.ne.s32.totalorder %s50, %s53
      %p62 = scmp.eq.s32.totalorder %s33, 3
      %p63 = por %p61, %p62
      %p64 = scmp.ne.s32.totalorder %s53, %s54
      %p65 = scmp.eq.s32.totalorder %s33, 0
      %p66 = por %p64, %p65
      %p67 = scmp.ne.s32.totalorder %s53, %s54
      %p68 = scmp.eq.s32.totalorder %s34, 3
      %p69 = por %p67, %p68
      %p71 = scmp.ne.s32.totalorder %s54, %s70
      %p72 = scmp.eq.s32.totalorder %s34, 0
      %p73 = por %p71, %p72
      %s75 = sadd.s32 %s74, 1
      %p78 = scmp.eq.s32.totalorder %s28, 3
      %p79 = scmp.ne.s32.totalorder %s74, %s76
      %p80 = scmp.eq.s32.totalorder %s28, 0
      %p81 = por %p79, %p80
      %p82 = scmp.ne.s32.totalorder %s74, %s76
      %p83 = scmp.eq.s32.totalorder %s33, 3
      %p84 = por %p82, %p83
      %p85 = scmp.ne.s32.totalorder %s76, %s77
      %p86 = scmp.eq.s32.totalorder %s33, 0
      %p87 = por %p85, %p86
      %p88 = scmp.ne.s32.totalorder %s76, %s77
      %p89 = scmp.eq.s32.totalorder %s34, 3
      %p90 = por %p88, %p89
      %p92 = scmp.ne.s32.totalorder %s77, %s91
      %p93 = scmp.eq.s32.totalorder %s34, 0
      %p94 = por %p92, %p93
      %s96 = sadd.s32 %s95, 1
      %p99 = scmp.eq.s32.totalorder %s28, 3
      %p100 = scmp.ne.s32.totalorder %s95, %s97
      %p101 = scmp.eq.s32.totalorder %s28, 0
      %p102 = por %p100, %p101
      %p103 = scmp.ne.s32.totalorder %s95, %s97
      %p104 = scmp.eq.s32.totalorder %s33, 3
      %p105 = por %p103, %p104
      %p106 = scmp.ne.s32.totalorder %s97, %s98
      %p107 = scmp.eq.s32.totalorder %s33, 0
      %p108 = por %p106, %p107
      %p109 = scmp.ne.s32.totalorder %s97, %s98
      %p110 = scmp.eq.s32.totalorder %s34, 3
      %p111 = por %p109, %p110
      %p113 = scmp.ne.s32.totalorder %s98, %s112
      %p114 = scmp.eq.s32.totalorder %s34, 0
      %p115 = por %p113, %p114
      %s117 = sadd.s32 %s116, 1
      %p120 = scmp.eq.s32.totalorder %s28, 3
      %p121 = scmp.ne.s32.totalorder %s116, %s118
      %p122 = scmp.eq.s32.totalorder %s28, 0
      %p123 = por %p121, %p122
      %p124 = scmp.ne.s32.totalorder %s116, %s118
      %p125 = scmp.eq.s32.totalorder %s33, 3
      %p126 = por %p124, %p125
      %p127 = scmp.ne.s32.totalorder %s118, %s119
      %p128 = scmp.eq.s32.totalorder %s33, 0
      %p129 = por %p127, %p128
      %p130 = scmp.ne.s32.totalorder %s118, %s119
      %p131 = scmp.eq.s32.totalorder %s34, 3
      %p132 = por %p130, %p131
      %p134 = scmp.ne.s32.totalorder %s119, %s133
      %p135 = scmp.eq.s32.totalorder %s34, 0
      %p136 = por %p134, %p135
      %s138 = sadd.s32 %s137, 1
      %p141 = scmp.eq.s32.totalorder %s28, 3
      %p142 = scmp.ne.s32.totalorder %s137, %s139
      %p143 = scmp.eq.s32.totalorder %s28, 0
      %p144 = por %p142, %p143
      %p145 = scmp.ne.s32.totalorder %s137, %s139
      %p146 = scmp.eq.s32.totalorder %s33, 3
      %p147 = por %p145, %p146
      %p148 = scmp.ne.s32.totalorder %s139, %s140
      %p149 = scmp.eq.s32.totalorder %s33, 0
      %p150 = por %p148, %p149
      %p151 = scmp.ne.s32.totalorder %s139, %s140
      %p152 = scmp.eq.s32.totalorder %s34, 3
      %p153 = por %p151, %p152
      %p155 = scmp.ne.s32.totalorder %s140, %s154
      %p156 = scmp.eq.s32.totalorder %s34, 0
      %p157 = por %p155, %p156
      %s159 = sadd.s32 %s158, 1
      %p162 = scmp.eq.s32.totalorder %s28, 3
      %p163 = scmp.ne.s32.totalorder %s158, %s160
      %p164 = scmp.eq.s32.totalorder %s28, 0
      %p165 = por %p163, %p164
      %p166 = scmp.ne.s32.totalorder %s158, %s160
      %p167 = scmp.eq.s32.totalorder %s33, 3
      %p168 = por %p166, %p167
      %p169 = scmp.ne.s32.totalorder %s160, %s161
      %p170 = scmp.eq.s32.totalorder %s33, 0
      %p171 = por %p169, %p170
      %p172 = scmp.ne.s32.totalorder %s160, %s161
      %p173 = scmp.eq.s32.totalorder %s34, 3
      %p174 = por %p172, %p173
      %p176 = scmp.ne.s32.totalorder %s161, %s175
      %p177 = scmp.eq.s32.totalorder %s34, 0
      %p178 = por %p176, %p177
      %s180 = sadd.s32 %s179, 1
      %p183 = scmp.eq.s32.totalorder %s28, 3
      %p184 = scmp.ne.s32.totalorder %s179, %s181
      %p185 = scmp.eq.s32.totalorder %s28, 0
      %p186 = por %p184, %p185
      %p187 = scmp.ne.s32.totalorder %s179, %s181
      %p188 = scmp.eq.s32.totalorder %s33, 3
      %p189 = por %p187, %p188
      %p190 = scmp.ne.s32.totalorder %s181, %s182
      %p191 = scmp.eq.s32.totalorder %s33, 0
      %p192 = por %p190, %p191
      %p193 = scmp.ne.s32.totalorder %s181, %s182
      %p194 = scmp.eq.s32.totalorder %s34, 3
      %p195 = por %p193, %p194
      %p197 = scmp.ne.s32.totalorder %s182, %s196
      %p198 = scmp.eq.s32.totalorder %s34, 0
      %p199 = por %p197, %p198
      %s201 = sadd.s32 %s200, 1
      %p204 = scmp.eq.s32.totalorder %s28, 3
      %p205 = scmp.ne.s32.totalorder %s200, %s202
      %p206 = scmp.eq.s32.totalorder %s28, 0
      %p207 = por %p205, %p206
      %p208 = scmp.ne.s32.totalorder %s200, %s202
      %p209 = scmp.eq.s32.totalorder %s33, 3
      %p210 = por %p208, %p209
      %p211 = scmp.ne.s32.totalorder %s202, %s203
      %p212 = scmp.eq.s32.totalorder %s33, 0
      %p213 = por %p211, %p212
      %p214 = scmp.ne.s32.totalorder %s202, %s203
      %p215 = scmp.eq.s32.totalorder %s34, 3
      %p216 = por %p214, %p215
      %p218 = scmp.ne.s32.totalorder %s203, %s217
      %p219 = scmp.eq.s32.totalorder %s34, 0
      %p220 = por %p218, %p219
      %s221 = ssub.s32 %s36, %s43
      %p222 = scmp.eq.s32.totalorder %s221, 0
      %s224 = sadd.s32 %s223, 1
      %s225 = scalar_select %p222, %s223, %s224
      %p228 = pneg %p222
      %p229 = scmp.eq.s32.totalorder %s28, 3
      %p230 = por %p228, %p229
      %p231 = scmp.ne.s32.totalorder %s223, %s226
      %p232 = scmp.eq.s32.totalorder %s28, 0
      %p233 = por %p231, %p232
      %p234 = scmp.ne.s32.totalorder %s223, %s226
      %p235 = scmp.eq.s32.totalorder %s33, 3
      %p236 = por %p234, %p235
      %p237 = scmp.ne.s32.totalorder %s226, %s227
      %p238 = scmp.eq.s32.totalorder %s33, 0
      %p239 = por %p237, %p238
      %p240 = scmp.ne.s32.totalorder %s226, %s227
      %p241 = scmp.eq.s32.totalorder %s34, 3
      %p242 = por %p240, %p241
      %p244 = scmp.ne.s32.totalorder %s227, %s243
      %p245 = scmp.eq.s32.totalorder %s34, 0
      %p246 = por %p244, %p245
      %s247 = ssub.s32 %s36, %s43
      %p248 = scmp.eq.s32.totalorder %s247, 0
      %s250 = sadd.s32 %s249, 1
      %s251 = scalar_select %p248, %s249, %s250
      %p254 = pneg %p248
      %p255 = scmp.eq.s32.totalorder %s28, 3
      %p256 = por %p254, %p255
      %p257 = scmp.ne.s32.totalorder %s249, %s252
      %p258 = scmp.eq.s32.totalorder %s28, 0
      %p259 = por %p257, %p258
      %p260 = scmp.ne.s32.totalorder %s249, %s252
      %p261 = scmp.eq.s32.totalorder %s33, 3
      %p262 = por %p260, %p261
      %p263 = scmp.ne.s32.totalorder %s252, %s253
      %p264 = scmp.eq.s32.totalorder %s33, 0
      %p265 = por %p263, %p264
      %p266 = scmp.ne.s32.totalorder %s252, %s253
      %p267 = scmp.eq.s32.totalorder %s34, 3
      %p268 = por %p266, %p267
      %p270 = scmp.ne.s32.totalorder %s253, %s269
      %p271 = scmp.eq.s32.totalorder %s34, 0
      %p272 = por %p270, %p271
      %s273 = ssub.s32 %s36, %s43
      %p274 = scmp.eq.s32.totalorder %s273, 0
      %s276 = sadd.s32 %s275, 1
      %s277 = scalar_select %p274, %s275, %s276
      %p280 = pneg %p274
      %p281 = scmp.eq.s32.totalorder %s28, 3
      %p282 = por %p280, %p281
      %p283 = scmp.ne.s32.totalorder %s275, %s278
      %p284 = scmp.eq.s32.totalorder %s28, 0
      %p285 = por %p283, %p284
      %p286 = scmp.ne.s32.totalorder %s275, %s278
      %p287 = scmp.eq.s32.totalorder %s33, 3
      %p288 = por %p286, %p287
      %p289 = scmp.ne.s32.totalorder %s278, %s279
      %p290 = scmp.eq.s32.totalorder %s33, 0
      %p291 = por %p289, %p290
      %p292 = scmp.ne.s32.totalorder %s278, %s279
      %p293 = scmp.eq.s32.totalorder %s34, 3
      %p294 = por %p292, %p293
      %p296 = scmp.ne.s32.totalorder %s279, %s295
      %p297 = scmp.eq.s32.totalorder %s34, 0
      %p298 = por %p296, %p297
      %s299 = ssub.s32 %s36, %s43
      %p300 = scmp.eq.s32.totalorder %s299, 0
      %s302 = sadd.s32 %s301, 1
      %s303 = scalar_select %p300, %s301, %s302
      %p306 = pneg %p300
      %p307 = scmp.eq.s32.totalorder %s28, 3
      %p308 = por %p306, %p307
      %p309 = scmp.ne.s32.totalorder %s301, %s304
      %p310 = scmp.eq.s32.totalorder %s28, 0
      %p311 = por %p309, %p310
      %p312 = scmp.ne.s32.totalorder %s301, %s304
      %p313 = scmp.eq.s32.totalorder %s33, 3
      %p314 = por %p312, %p313
      %p315 = scmp.ne.s32.totalorder %s304, %s305
      %p316 = scmp.eq.s32.totalorder %s33, 0
      %p317 = por %p315, %p316
      %p318 = scmp.ne.s32.totalorder %s304, %s305
      %p319 = scmp.eq.s32.totalorder %s34, 3
      %p320 = por %p318, %p319
      %p322 = scmp.ne.s32.totalorder %s305, %s321
      %p323 = scmp.eq.s32.totalorder %s34, 0
      %p324 = por %p322, %p323
      %s325 = ssub.s32 %s36, %s43
      %p326 = scmp.eq.s32.totalorder %s325, 0
      %s328 = sadd.s32 %s327, 1
      %s329 = scalar_select %p326, %s327, %s328
      %p332 = pneg %p326
      %p333 = scmp.eq.s32.totalorder %s28, 3
      %p334 = por %p332, %p333
      %p335 = scmp.ne.s32.totalorder %s327, %s330
      %p336 = scmp.eq.s32.totalorder %s28, 0
      %p337 = por %p335, %p336
      %p338 = scmp.ne.s32.totalorder %s327, %s330
      %p339 = scmp.eq.s32.totalorder %s33, 3
      %p340 = por %p338, %p339
      %p341 = scmp.ne.s32.totalorder %s330, %s331
      %p342 = scmp.eq.s32.totalorder %s33, 0
      %p343 = por %p341, %p342
      %p344 = scmp.ne.s32.totalorder %s330, %s331
      %p345 = scmp.eq.s32.totalorder %s34, 3
      %p346 = por %p344, %p345
      %p348 = scmp.ne.s32.totalorder %s331, %s347
      %p349 = scmp.eq.s32.totalorder %s34, 0
      %p350 = por %p348, %p349
      %s351 = ssub.s32 %s36, %s43
      %p352 = scmp.eq.s32.totalorder %s351, 0
      %s354 = sadd.s32 %s353, 1
      %s355 = scalar_select %p352, %s353, %s354
      %p358 = pneg %p352
      %p359 = scmp.eq.s32.totalorder %s28, 3
      %p360 = por %p358, %p359
      %p361 = scmp.ne.s32.totalorder %s353, %s356
      %p362 = scmp.eq.s32.totalorder %s28, 0
      %p363 = por %p361, %p362
      %p364 = scmp.ne.s32.totalorder %s353, %s356
      %p365 = scmp.eq.s32.totalorder %s33, 3
      %p366 = por %p364, %p365
      %p367 = scmp.ne.s32.totalorder %s356, %s357
      %p368 = scmp.eq.s32.totalorder %s33, 0
      %p369 = por %p367, %p368
      %p370 = scmp.ne.s32.totalorder %s356, %s357
      %p371 = scmp.eq.s32.totalorder %s34, 3
      %p372 = por %p370, %p371
      %p374 = scmp.ne.s32.totalorder %s357, %s373
      %p375 = scmp.eq.s32.totalorder %s34, 0
      %p376 = por %p374, %p375
      %s377 = ssub.s32 %s36, %s43
      %p378 = scmp.eq.s32.totalorder %s377, 0
      %s380 = sadd.s32 %s379, 1
      %s381 = scalar_select %p378, %s379, %s380
      %p384 = pneg %p378
      %p385 = scmp.eq.s32.totalorder %s28, 3
      %p386 = por %p384, %p385
      %p387 = scmp.ne.s32.totalorder %s379, %s382
      %p388 = scmp.eq.s32.totalorder %s28, 0
      %p389 = por %p387, %p388
      %p390 = scmp.ne.s32.totalorder %s379, %s382
      %p391 = scmp.eq.s32.totalorder %s33, 3
      %p392 = por %p390, %p391
      %p393 = scmp.ne.s32.totalorder %s382, %s383
      %p394 = scmp.eq.s32.totalorder %s33, 0
      %p395 = por %p393, %p394
      %p396 = scmp.ne.s32.totalorder %s382, %s383
      %p397 = scmp.eq.s32.totalorder %s34, 3
      %p398 = por %p396, %p397
      %p400 = scmp.ne.s32.totalorder %s383, %s399
      %p401 = scmp.eq.s32.totalorder %s34, 0
      %p402 = por %p400, %p401
      %s403 = ssub.s32 %s36, %s43
      %p404 = scmp.eq.s32.totalorder %s403, 0
      %s406 = sadd.s32 %s405, 1
      %s407 = scalar_select %p404, %s405, %s406
      %p410 = pneg %p404
      %p411 = scmp.eq.s32.totalorder %s28, 3
      %p412 = por %p410, %p411
      %p413 = scmp.ne.s32.totalorder %s405, %s408
      %p414 = scmp.eq.s32.totalorder %s28, 0
      %p415 = por %p413, %p414
      %p416 = scmp.ne.s32.totalorder %s405, %s408
      %p417 = scmp.eq.s32.totalorder %s33, 3
      %p418 = por %p416, %p417
      %p419 = scmp.ne.s32.totalorder %s408, %s409
      %p420 = scmp.eq.s32.totalorder %s33, 0
      %p421 = por %p419, %p420
      %p422 = scmp.ne.s32.totalorder %s408, %s409
      %p423 = scmp.eq.s32.totalorder %s34, 3
      %p424 = por %p422, %p423
      %p426 = scmp.ne.s32.totalorder %s409, %s425
      %p427 = scmp.eq.s32.totalorder %s34, 0
      %p428 = por %p426, %p427
      %s429 = ssub.s32 %s36, %s43
      %p430 = scmp.eq.s32.totalorder %s429, 0
      %s432 = sadd.s32 %s431, 1
      %s433 = scalar_select %p430, %s431, %s432
      %p436 = pneg %p430
      %p437 = scmp.eq.s32.totalorder %s28, 3
      %p438 = por %p436, %p437
      %p439 = scmp.ne.s32.totalorder %s431, %s434
      %p440 = scmp.eq.s32.totalorder %s28, 0
      %p441 = por %p439, %p440
      %p442 = scmp.ne.s32.totalorder %s431, %s434
      %p443 = scmp.eq.s32.totalorder %s33, 3
      %p444 = por %p442, %p443
      %p445 = scmp.ne.s32.totalorder %s434, %s435
      %p446 = scmp.eq.s32.totalorder %s33, 0
      %p447 = por %p445, %p446
      %p448 = scmp.ne.s32.totalorder %s434, %s435
      %p449 = scmp.eq.s32.totalorder %s34, 3
      %p450 = por %p448, %p449
      %p452 = scmp.ne.s32.totalorder %s435, %s451
      %p453 = scmp.eq.s32.totalorder %s34, 0
      %p454 = por %p452, %p453
      %s455 = ssub.s32 %s36, %s43
      %p456 = scmp.eq.s32.totalorder %s455, 0
      %s458 = sadd.s32 %s457, 1
      %s459 = scalar_select %p456, %s457, %s458
      %p462 = pneg %p456
      %p463 = scmp.eq.s32.totalorder %s28, 3
      %p464 = por %p462, %p463
      %p465 = scmp.ne.s32.totalorder %s457, %s460
      %p466 = scmp.eq.s32.totalorder %s28, 0
      %p467 = por %p465, %p466
      %p468 = scmp.ne.s32.totalorder %s457, %s460
      %p469 = scmp.eq.s32.totalorder %s33, 3
      %p470 = por %p468, %p469
      %p471 = scmp.ne.s32.totalorder %s460, %s461
      %p472 = scmp.eq.s32.totalorder %s33, 0
      %p473 = por %p471, %p472
      %p474 = scmp.ne.s32.totalorder %s460, %s461
      %p475 = scmp.eq.s32.totalorder %s34, 3
      %p476 = por %p474, %p475
      %p478 = scmp.ne.s32.totalorder %s461, %s477
      %p479 = scmp.eq.s32.totalorder %s34, 0
      %p480 = por %p478, %p479
      %s481 = ssub.s32 %s36, %s43
      %p482 = scmp.eq.s32.totalorder %s481, 0
      %s484 = sadd.s32 %s483, 1
      %s485 = scalar_select %p482, %s483, %s484
      %p488 = pneg %p482
      %p489 = scmp.eq.s32.totalorder %s28, 3
      %p490 = por %p488, %p489
      %p491 = scmp.ne.s32.totalorder %s483, %s486
      %p492 = scmp.eq.s32.totalorder %s28, 0
      %p493 = por %p491, %p492
      %p494 = scmp.ne.s32.totalorder %s483, %s486
      %p495 = scmp.eq.s32.totalorder %s33, 3
      %p496 = por %p494, %p495
      %p497 = scmp.ne.s32.totalorder %s486, %s487
      %p498 = scmp.eq.s32.totalorder %s33, 0
      %p499 = por %p497, %p498
      %p500 = scmp.ne.s32.totalorder %s486, %s487
      %p501 = scmp.eq.s32.totalorder %s34, 3
      %p502 = por %p500, %p501
      %p504 = scmp.ne.s32.totalorder %s487, %s503
      %p505 = scmp.eq.s32.totalorder %s34, 0
      %p506 = por %p504, %p505
      %s507 = ssub.s32 %s35, %s47
      %p508 = scmp.eq.s32.totalorder %s507, 0
      %s510 = sadd.s32 %s509, 1
      %s511 = scalar_select %p508, %s509, %s510
      %p514 = pneg %p508
      %p515 = scmp.eq.s32.totalorder %s28, 3
      %p516 = por %p514, %p515
      %p517 = scmp.ne.s32.totalorder %s509, %s512
      %p518 = scmp.eq.s32.totalorder %s28, 0
      %p519 = por %p517, %p518
      %p520 = scmp.ne.s32.totalorder %s509, %s512
      %p521 = scmp.eq.s32.totalorder %s33, 3
      %p522 = por %p520, %p521
      %p523 = scmp.ne.s32.totalorder %s512, %s513
      %p524 = scmp.eq.s32.totalorder %s33, 0
      %p525 = por %p523, %p524
      %p526 = scmp.ne.s32.totalorder %s512, %s513
      %p527 = scmp.eq.s32.totalorder %s34, 3
      %p528 = por %p526, %p527
      %p530 = scmp.ne.s32.totalorder %s513, %s529
      %p531 = scmp.eq.s32.totalorder %s34, 0
      %p532 = por %p530, %p531
      %p533 = scmp.le.s32.totalorder 1, %s28
      %p534 = scmp.lt.s32.totalorder %s28, 5
      %p535 = pnand %p533, %p534
      %p536 = pneg %p535
      // Predicated region
      $region9: #{vit_forward.1} parent=5 // pred_check
        _
      $region10: #{vit_forward.1} parent=5 // pred_check_branch
        %538 = sbr.rel (%p535) target = $region12
      $region11: #{vit_forward.1} parent=5 // pred_region
        %s539 = ssub.s32 %s28, 1
        // Predicated region
        $region13: #{vit_forward.1} parent=11 // pred_check
          %p540 = pneg %p87
        $region14: #{vit_forward.1} parent=11 // pred_check_branch
          %542 = sbr.rel (%p540) target = $region16
        $region15: #{vit_forward.1} parent=11 // pred_region
          _
        $region16: #{vit_forward.1} parent=11 // pred_fallthru
          _
        // Predicated region
        $region17: #{vit_forward.1} parent=11 // pred_check
          %p543 = pneg %p108
        $region18: #{vit_forward.1} parent=11 // pred_check_branch
          %545 = sbr.rel (%p543) target = $region20
        $region19: #{vit_forward.1} parent=11 // pred_region
          _
        $region20: #{vit_forward.1} parent=11 // pred_fallthru
          _
        // Predicated region
        $region21: #{vit_forward.1} parent=11 // pred_check
          %p546 = pneg %p129
        $region22: #{vit_forward.1} parent=11 // pred_check_branch
          %548 = sbr.rel (%p546) target = $region24
        $region23: #{vit_forward.1} parent=11 // pred_region
          _
        $region24: #{vit_forward.1} parent=11 // pred_fallthru
          _
        // Predicated region
        $region25: #{vit_forward.1} parent=11 // pred_check
          %p549 = pneg %p150
        $region26: #{vit_forward.1} parent=11 // pred_check_branch
          %551 = sbr.rel (%p549) target = $region28
        $region27: #{vit_forward.1} parent=11 // pred_region
          _
        $region28: #{vit_forward.1} parent=11 // pred_fallthru
          _
        // Predicated region
        $region29: #{vit_forward.1} parent=11 // pred_check
          %p552 = pneg %p171
        $region30: #{vit_forward.1} parent=11 // pred_check_branch
          %554 = sbr.rel (%p552) target = $region32
        $region31: #{vit_forward.1} parent=11 // pred_region
          _
        $region32: #{vit_forward.1} parent=11 // pred_fallthru
          _
        // Predicated region
        $region33: #{vit_forward.1} parent=11 // pred_check
          %p555 = pneg %p192
        $region34: #{vit_forward.1} parent=11 // pred_check_branch
          %557 = sbr.rel (%p555) target = $region36
        $region35: #{vit_forward.1} parent=11 // pred_region
          _
        $region36: #{vit_forward.1} parent=11 // pred_fallthru
          _
        // Predicated region
        $region37: #{vit_forward.1} parent=11 // pred_check
          %p558 = pneg %p213
        $region38: #{vit_forward.1} parent=11 // pred_check_branch
          %560 = sbr.rel (%p558) target = $region40
        $region39: #{vit_forward.1} parent=11 // pred_region
          _
        $region40: #{vit_forward.1} parent=11 // pred_fallthru
          _
      $region12: #{vit_forward.1} parent=5 // pred_fallthru
        _
      %p561 = scmp.lt.s32.totalorder %s28, 4
      // Predicated region
      $region41: #{vit_forward.1} parent=5 // pred_check
        %p562 = pneg %p561
      $region42: #{vit_forward.1} parent=5 // pred_check_branch
        %564 = sbr.rel (%p562) target = $region44
      $region43: #{vit_forward.1} parent=5 // pred_region
        // Predicated region
        $region45: #{vit_forward.1} parent=43 // pred_check
          %p565 = pneg %p60
        $region46: #{vit_forward.1} parent=43 // pred_check_branch
          %567 = sbr.rel (%p565) target = $region48
        $region47: #{vit_forward.1} parent=43 // pred_region
          %s568 = smul.u32 2, %s35
          %p569 = scmp.lt.s32.totalorder %s568, 3
          %s570 = scalar_select %p569, %s568, 3
          %s571 = smul.addr %s570, 8
          %s572 = scalar_lea.vmem %s0, %s571
          %s573 = smul.u32 2, %s35
        $region48: #{vit_forward.1} parent=43 // pred_fallthru
          _
        // Predicated region
        $region49: #{vit_forward.1} parent=43 // pred_check
          %p574 = pneg %p233
        $region50: #{vit_forward.1} parent=43 // pred_check_branch
          %576 = sbr.rel (%p574) target = $region52
        $region51: #{vit_forward.1} parent=43 // pred_region
          %p577 = scmp.lt.s32.totalorder %s36, 1
          %s578 = scalar_select %p577, %s36, 1
          %s579 = scalar_lea.vmem %s8, %s578
        $region52: #{vit_forward.1} parent=43 // pred_fallthru
          _
        // Predicated region
        $region53: #{vit_forward.1} parent=43 // pred_check
          %p580 = pneg %p259
        $region54: #{vit_forward.1} parent=43 // pred_check_branch
          %582 = sbr.rel (%p580) target = $region56
        $region55: #{vit_forward.1} parent=43 // pred_region
          %p583 = scmp.lt.s32.totalorder %s36, 1
          %s584 = scalar_select %p583, %s36, 1
          %s585 = scalar_lea.vmem %s9, %s584
        $region56: #{vit_forward.1} parent=43 // pred_fallthru
          _
        // Predicated region
        $region57: #{vit_forward.1} parent=43 // pred_check
          %p586 = pneg %p285
        $region58: #{vit_forward.1} parent=43 // pred_check_branch
          %588 = sbr.rel (%p586) target = $region60
        $region59: #{vit_forward.1} parent=43 // pred_region
          %p589 = scmp.lt.s32.totalorder %s36, 1
          %s590 = scalar_select %p589, %s36, 1
          %s591 = smul.addr %s590, 12
          %s592 = smul.addr %s591, 8
          %s593 = scalar_lea.vmem %s10, %s592
        $region60: #{vit_forward.1} parent=43 // pred_fallthru
          _
        // Predicated region
        $region61: #{vit_forward.1} parent=43 // pred_check
          %p594 = pneg %p311
        $region62: #{vit_forward.1} parent=43 // pred_check_branch
          %596 = sbr.rel (%p594) target = $region64
        $region63: #{vit_forward.1} parent=43 // pred_region
          %p597 = scmp.lt.s32.totalorder %s36, 1
          %s598 = scalar_select %p597, %s36, 1
          %s599 = smul.addr %s598, 8
          %s600 = smul.addr %s599, 8
          %s601 = scalar_lea.vmem %s11, %s600
        $region64: #{vit_forward.1} parent=43 // pred_fallthru
          _
        // Predicated region
        $region65: #{vit_forward.1} parent=43 // pred_check
          %p602 = pneg %p337
        $region66: #{vit_forward.1} parent=43 // pred_check_branch
          %604 = sbr.rel (%p602) target = $region68
        $region67: #{vit_forward.1} parent=43 // pred_region
          %p605 = scmp.lt.s32.totalorder %s36, 1
          %s606 = scalar_select %p605, %s36, 1
          %s607 = scalar_lea.vmem %s12, %s606
        $region68: #{vit_forward.1} parent=43 // pred_fallthru
          _
        // Predicated region
        $region69: #{vit_forward.1} parent=43 // pred_check
          %p608 = pneg %p363
        $region70: #{vit_forward.1} parent=43 // pred_check_branch
          %610 = sbr.rel (%p608) target = $region72
        $region71: #{vit_forward.1} parent=43 // pred_region
          %p611 = scmp.lt.s32.totalorder %s36, 1
          %s612 = scalar_select %p611, %s36, 1
          %s613 = scalar_lea.vmem %s13, %s612
        $region72: #{vit_forward.1} parent=43 // pred_fallthru
          _
        // Predicated region
        $region73: #{vit_forward.1} parent=43 // pred_check
          %p614 = pneg %p389
        $region74: #{vit_forward.1} parent=43 // pred_check_branch
          %616 = sbr.rel (%p614) target = $region76
        $region75: #{vit_forward.1} parent=43 // pred_region
          %p617 = scmp.lt.s32.totalorder %s36, 1
          %s618 = scalar_select %p617, %s36, 1
          %s619 = scalar_lea.vmem %s14, %s618
        $region76: #{vit_forward.1} parent=43 // pred_fallthru
          _
        // Predicated region
        $region77: #{vit_forward.1} parent=43 // pred_check
          %p620 = pneg %p415
        $region78: #{vit_forward.1} parent=43 // pred_check_branch
          %622 = sbr.rel (%p620) target = $region80
        $region79: #{vit_forward.1} parent=43 // pred_region
          %p623 = scmp.lt.s32.totalorder %s36, 1
          %s624 = scalar_select %p623, %s36, 1
          %s625 = smul.addr %s624, 6
          %s626 = smul.addr %s625, 8
          %s627 = scalar_lea.vmem %s15, %s626
        $region80: #{vit_forward.1} parent=43 // pred_fallthru
          _
        // Predicated region
        $region81: #{vit_forward.1} parent=43 // pred_check
          %p628 = pneg %p441
        $region82: #{vit_forward.1} parent=43 // pred_check_branch
          %630 = sbr.rel (%p628) target = $region84
        $region83: #{vit_forward.1} parent=43 // pred_region
          %p631 = scmp.lt.s32.totalorder %s36, 1
          %s632 = scalar_select %p631, %s36, 1
          %s633 = scalar_lea.vmem %s16, %s632
        $region84: #{vit_forward.1} parent=43 // pred_fallthru
          _
        // Predicated region
        $region85: #{vit_forward.1} parent=43 // pred_check
          %p634 = pneg %p467
        $region86: #{vit_forward.1} parent=43 // pred_check_branch
          %636 = sbr.rel (%p634) target = $region88
        $region87: #{vit_forward.1} parent=43 // pred_region
          %p637 = scmp.lt.s32.totalorder %s36, 1
          %s638 = scalar_select %p637, %s36, 1
          %s639 = smul.addr %s638, 12
          %s640 = smul.addr %s639, 8
          %s641 = scalar_lea.vmem %s17, %s640
        $region88: #{vit_forward.1} parent=43 // pred_fallthru
          _
        // Predicated region
        $region89: #{vit_forward.1} parent=43 // pred_check
          %p642 = pneg %p493
        $region90: #{vit_forward.1} parent=43 // pred_check_branch
          %644 = sbr.rel (%p642) target = $region92
        $region91: #{vit_forward.1} parent=43 // pred_region
          %p645 = scmp.lt.s32.totalorder %s36, 1
          %s646 = scalar_select %p645, %s36, 1
          %s647 = scalar_lea.vmem %s18, %s646
        $region92: #{vit_forward.1} parent=43 // pred_fallthru
          _
      $region44: #{vit_forward.1} parent=5 // pred_fallthru
        _
      %p648 = scmp.le.s32.totalorder 1, %s28
      %p649 = scmp.lt.s32.totalorder %s28, 5
      %p650 = pnand %p648, %p649
      %p651 = pneg %p650
      // Predicated region
      $region93: #{vit_forward.1} parent=5 // pred_check
        _
      $region94: #{vit_forward.1} parent=5 // pred_check_branch
        %653 = sbr.rel (%p650) target = $region96
      $region95: #{vit_forward.1} parent=5 // pred_region
        %s654 = ssub.s32 %s28, 1
        %s655 = smul.u32 2, %s37
        %p656 = scmp.lt.s32.totalorder %s655, 3
        %s657 = scalar_select %p656, %s655, 3
        %s658 = smul.addr %s657, 8
        %s659 = scalar_lea.vmem %s0, %s658
        %p660 = pneg %p66
        %p661 = pneg %p63
        %p662 = pneg %p87
        %p663 = pneg %p84
        %p664 = pneg %p108
        %p665 = pneg %p105
        %p666 = pneg %p129
        %p667 = pneg %p126
        %p668 = pneg %p150
        %p669 = pneg %p147
        %p670 = pneg %p171
        %p671 = pneg %p168
        %p672 = pneg %p192
        %p673 = pneg %p189
        %p674 = pneg %p213
        %p675 = pneg %p210
        %p676 = scmp.lt.s32.totalorder %s38, 1
        %s677 = scalar_select %p676, %s38, 1
        %s678 = scalar_lea.vmem %s8, %s677
        %p679 = pneg %p239
        %p680 = pneg %p236
        %p681 = scmp.lt.s32.totalorder %s38, 1
        %s682 = scalar_select %p681, %s38, 1
        %s683 = scalar_lea.vmem %s9, %s682
        %p684 = pneg %p265
        %p685 = pneg %p262
        %p686 = scmp.lt.s32.totalorder %s38, 1
        %s687 = scalar_select %p686, %s38, 1
        %s688 = smul.addr %s687, 12
        %s689 = smul.addr %s688, 8
        %s690 = scalar_lea.vmem %s10, %s689
        %p691 = pneg %p291
        %p692 = pneg %p288
        %p693 = scmp.lt.s32.totalorder %s38, 1
        %s694 = scalar_select %p693, %s38, 1
        %s695 = smul.addr %s694, 8
        %s696 = smul.addr %s695, 8
        %s697 = scalar_lea.vmem %s11, %s696
        %p698 = pneg %p317
        %p699 = pneg %p314
        %p700 = scmp.lt.s32.totalorder %s38, 1
        %s701 = scalar_select %p700, %s38, 1
        %s702 = scalar_lea.vmem %s12, %s701
        %p703 = pneg %p343
        %p704 = pneg %p340
        %p705 = scmp.lt.s32.totalorder %s38, 1
        %s706 = scalar_select %p705, %s38, 1
        %s707 = scalar_lea.vmem %s13, %s706
        %p708 = pneg %p369
        %p709 = pneg %p366
        %p710 = scmp.lt.s32.totalorder %s38, 1
        %s711 = scalar_select %p710, %s38, 1
        %s712 = scalar_lea.vmem %s14, %s711
        %p713 = pneg %p395
        %p714 = pneg %p392
        %p715 = scmp.lt.s32.totalorder %s38, 1
        %s716 = scalar_select %p715, %s38, 1
        %s717 = smul.addr %s716, 6
        %s718 = smul.addr %s717, 8
        %s719 = scalar_lea.vmem %s15, %s718
        %p720 = pneg %p421
        %p721 = pneg %p418
        %p722 = scmp.lt.s32.totalorder %s38, 1
        %s723 = scalar_select %p722, %s38, 1
        %s724 = scalar_lea.vmem %s16, %s723
        %p725 = pneg %p447
        %p726 = pneg %p444
        %p727 = scmp.lt.s32.totalorder %s38, 1
        %s728 = scalar_select %p727, %s38, 1
        %s729 = smul.addr %s728, 12
        %s730 = smul.addr %s729, 8
        %s731 = scalar_lea.vmem %s17, %s730
        %p732 = pneg %p473
        %p733 = pneg %p470
        %p734 = scmp.lt.s32.totalorder %s38, 1
        %s735 = scalar_select %p734, %s38, 1
        %s736 = scalar_lea.vmem %s18, %s735
        %p737 = pneg %p499
        %p738 = pneg %p496
        %p739 = pneg %p525
        %p740 = pneg %p522
        %s741 = sand.u32 %s512, 1
        %s742 = scalar_lea.sflag [#allocation5], %s741
        %s743 = sand.u32 %s512, 1
        %s744 = smul.addr %s743, 16
        %s745 = scalar_lea.vmem [#allocation4], %s744
        %s746 = smul.u32 2, %s37
        %p747 = scmp.lt.s32.totalorder %s746, 3
        %s748 = scalar_select %p747, %s746, 3
        %s749 = smul.addr %s748, 8
        %s750 = scalar_lea.vmem %s0, %s749
        %s751 = smul.u32 2, %s37
        %p752 = scmp.lt.s32.totalorder %s38, 1
        %s753 = scalar_select %p752, %s38, 1
        %s754 = scalar_lea.vmem %s8, %s753
        %p755 = scmp.lt.s32.totalorder %s38, 1
        %s756 = scalar_select %p755, %s38, 1
        %s757 = scalar_lea.vmem %s9, %s756
        %p758 = scmp.lt.s32.totalorder %s38, 1
        %s759 = scalar_select %p758, %s38, 1
        %s760 = smul.addr %s759, 12
        %s761 = smul.addr %s760, 8
        %s762 = scalar_lea.vmem %s10, %s761
        %p763 = scmp.lt.s32.totalorder %s38, 1
        %s764 = scalar_select %p763, %s38, 1
        %s765 = smul.addr %s764, 8
        %s766 = smul.addr %s765, 8
        %s767 = scalar_lea.vmem %s11, %s766
        %p768 = scmp.lt.s32.totalorder %s38, 1
        %s769 = scalar_select %p768, %s38, 1
        %s770 = scalar_lea.vmem %s12, %s769
        %p771 = scmp.lt.s32.totalorder %s38, 1
        %s772 = scalar_select %p771, %s38, 1
        %s773 = scalar_lea.vmem %s13, %s772
        %p774 = scmp.lt.s32.totalorder %s38, 1
        %s775 = scalar_select %p774, %s38, 1
        %s776 = scalar_lea.vmem %s14, %s775
        %p777 = scmp.lt.s32.totalorder %s38, 1
        %s778 = scalar_select %p777, %s38, 1
        %s779 = smul.addr %s778, 6
        %s780 = smul.addr %s779, 8
        %s781 = scalar_lea.vmem %s15, %s780
        %p782 = scmp.lt.s32.totalorder %s38, 1
        %s783 = scalar_select %p782, %s38, 1
        %s784 = scalar_lea.vmem %s16, %s783
        %p785 = scmp.lt.s32.totalorder %s38, 1
        %s786 = scalar_select %p785, %s38, 1
        %s787 = smul.addr %s786, 12
        %s788 = smul.addr %s787, 8
        %s789 = scalar_lea.vmem %s17, %s788
        %p790 = scmp.lt.s32.totalorder %s38, 1
        %s791 = scalar_select %p790, %s38, 1
        %s792 = scalar_lea.vmem %s18, %s791
        %s793 = smul.u32 2, %s37
        %p794 = scmp.eq.s32.totalorder %s38, 0
        // Predicated region
        $region97: #{vit_forward.1} parent=95 // pred_check
          %p795 = pneg %p794
        $region98: #{vit_forward.1} parent=95 // pred_check_branch
          %797 = sbr.rel (%p795) target = $region100
        $region99: #{vit_forward.1} parent=95 // pred_region
          %v798 = vld [vmem:[%s750] sm:$0xff]
          %v799 = vld [vmem:[%s750 + $0x8] sm:$0xff]
          %v800 = vld [vmem:[%s2] sm:$0x1]
          %v801 = vld [vmem:[%s3] sm:$0x1]
          %vm802 = vcmask 785408
          %v803 = vsel %vm802, %v798, 0.0
          %804 = vadd.xlane.f32.xlu0 %v803
          %v805 = vpop.xlane.xlu0 %804
          %v806 = vsel %vm802, %v799, 0.0
          %807 = vadd.xlane.f32.xlu0 %v806
          %v808 = vpop.xlane.xlu0 %807
          %v809 = vrcp.pop 96.0
          %v810 = vmul.f32 %v805, %v809
          %v811 = vmul.f32 %v808, %v809
          %v812 = vsub.f32 %v798, %v810
          %v813 = vsub.f32 %v799, %v811
          %v814 = vmul.f32 %v812, %v812
          %v815 = vmul.f32 %v813, %v813
          %v816 = vsel %vm802, %v814, 0.0
          %817 = vadd.xlane.f32.xlu0 %v816
          %v818 = vpop.xlane.xlu0 %817
          %v819 = vsel %vm802, %v815, 0.0
          %820 = vadd.xlane.f32.xlu0 %v819
          %v821 = vpop.xlane.xlu0 %820
          %v822 = vmul.f32 %v818, %v809
          %v823 = vmul.f32 %v821, %v809
          %v824 = vadd.f32 %v822, 1e-05
          %v825 = vadd.f32 %v823, 1e-05
          %v826 = vrsqrt.pop %v824
          %v827 = vrsqrt.pop %v825
          %v828 = vmul.f32 %v812, %v826
          %v829 = vmul.f32 %v813, %v827
          %v831 = vlaneseq
          %v832 = vshrl.u32 %v831, 7
          %v833 = vsub.s32 0, %v832
          %v834 = vrot.slane %v800, %v833
          %v836 = vmul.f32 %v828, %v834
          %v837 = vmul.f32 %v829, %v834
          %v839 = vlaneseq
          %v840 = vshrl.u32 %v839, 7
          %v841 = vsub.s32 0, %v840
          %v842 = vrot.slane %v801, %v841
          %v844 = vadd.f32 %v836, %v842
          %v845 = vadd.f32 %v837, %v842
          %v846 = vld [vmem:[%s4] sm:$0xff]
          %v847 = vld [vmem:[%s4 + $0x8] sm:$0xff]
          %v848 = vld [vmem:[%s4 + $0x10] sm:$0xff]
          %v849 = vld [vmem:[%s4 + $0x18] sm:$0xff]
          %v850 = vld [vmem:[%s4 + $0x20] sm:$0xff]
          %v851 = vld [vmem:[%s4 + $0x28] sm:$0xff]
          %v852 = vld [vmem:[%s4 + $0x30] sm:$0xff]
          %v853 = vld [vmem:[%s4 + $0x38] sm:$0xff]
          %v854 = vld [vmem:[%s4 + $0x40] sm:$0xff]
          %v855 = vld [vmem:[%s4 + $0x48] sm:$0xff]
          %v856 = vld [vmem:[%s4 + $0x50] sm:$0xff]
          %v857 = vld [vmem:[%s4 + $0x58] sm:$0xff]
          %v858 = vld [vmem:[%s5] sm:$0x1]
          %v860 = vlaneseq
          %v861 = vshrl.u32 %v860, 7
          %v862 = vsub.s32 0, %v861
          %v863 = vrot.slane %v858, %v862
          %v866 = vsel %vm802, %v844, 0
          %v869 = vsel %vm802, %v845, 0
          %871 = vmatprep.subr.mxu0 0.0
          %872 = vmatpush1.msra.mxu0 %v846
          %873 = vmatprep.subr.mxu0 0.0
          %874 = vmatpush1.msra.mxu0 %v847
          %875 = vmatprep.subr.mxu0 0.0
          %876 = vmatpush1.msra.mxu0 %v848
          %877 = vmatprep.subr.mxu0 0.0
          %878 = vmatpush1.msra.mxu0 %v849
          %879 = vmatprep.subr.mxu0 0.0
          %880 = vmatpush1.msra.mxu0 %v850
          %881 = vmatprep.subr.mxu0 0.0
          %882 = vmatpush1.msra.mxu0 %v851
          %883 = vmatprep.subr.mxu0 0.0
          %884 = vmatpush1.msra.mxu0 %v852
          %885 = vmatprep.subr.mxu0 0.0
          %886 = vmatpush1.msra.mxu0 %v853
          %887 = vmatprep.subr.mxu0 0.0
          %888 = vmatpush1.msra.mxu0 %v854
          %889 = vmatprep.subr.mxu0 0.0
          %890 = vmatpush1.msra.mxu0 %v855
          %891 = vmatprep.subr.mxu0 0.0
          %892 = vmatpush1.msra.mxu0 %v856
          %893 = vmatprep.subr.mxu0 0.0
          %894 = vmatpush1.msra.mxu0 %v857
          %895 = vmatprep.subr.mxu0 0.0
          %896 = vmatpush1.msra.mxu0 0.0
          %897 = vmatprep.subr.mxu0 0.0
          %898 = vmatpush1.msra.mxu0 0.0
          %899 = vmatprep.subr.mxu0 0.0
          %900 = vmatpush1.msra.mxu0 0.0
          %901 = vmatprep.subr.mxu0 0.0
          %902 = vmatpush1.msra.mxu0 0.0
          %903 = vmatprep.subr.mxu0 0.0
          %904 = vmatpush1.msra.mxu0 0.0
          %905 = vmatprep.subr.mxu0 0.0
          %906 = vmatpush1.msra.mxu0 0.0
          %907 = vmatprep.subr.mxu0 0.0
          %908 = vmatpush1.msra.mxu0 0.0
          %909 = vmatprep.subr.mxu0 0.0
          %910 = vmatpush1.msra.mxu0 0.0
          %911 = vmatprep.subr.mxu0 0.0
          %912 = vmatpush1.msra.mxu0 0.0
          %913 = vmatprep.subr.mxu0 0.0
          %914 = vmatpush1.msra.mxu0 0.0
          %915 = vmatprep.subr.mxu0 0.0
          %916 = vmatpush1.msra.mxu0 0.0
          %917 = vmatprep.subr.mxu0 0.0
          %918 = vmatpush1.msra.mxu0 0.0
          %919 = vmatprep.subr.mxu0 0.0
          %920 = vmatpush1.msra.mxu0 0.0
          %921 = vmatprep.subr.mxu0 0.0
          %922 = vmatpush1.msra.mxu0 0.0
          %923 = vmatprep.subr.mxu0 0.0
          %924 = vmatpush1.msra.mxu0 0.0
          %925 = vmatprep.subr.mxu0 0.0
          %926 = vmatpush1.msra.mxu0 0.0
          %927 = vmatprep.subr.mxu0 0.0
          %928 = vmatpush1.msra.mxu0 0.0
          %929 = vmatprep.subr.mxu0 0.0
          %930 = vmatpush1.msra.mxu0 0.0
          %931 = vmatprep.subr.mxu0 0.0
          %932 = vmatpush1.msra.mxu0 0.0
          %933 = vmatprep.subr.mxu0 0.0
          %934 = vmatpush1.msra.mxu0 0.0
          %935 = vmatprep.mubr.f32.mxu0 0.0
          %936 = vmatmul.mubr.f32.gmra.mrb[0].mxu0 %v866
          %v937 = vpop.f32.mrb[0].mxu0
          %v938 = vadd.f32 %v863, %v937
          %v939 = vpop.f32.mrb[0].mxu0
          %940 = vmatprep.mubr.f32.mxu0 0.0
          %941 = vmatmul.mubr.f32.gmra.mrb[0].mxu0 %v869
          %v942 = vpop.f32.mrb[0].mxu0
          %v943 = vadd.f32 %v863, %v942
          %v944 = vpop.f32.mrb[0].mxu0
          %945 = vdwg.mxu0
          %v946 = vld [vmem:[%s6] sm:$0x1]
          %v947 = vld [vmem:[%s7] sm:$0x1]
          %vm948 = vcmask 392192
          %v949 = vsel %vm948, %v938, 0.0
          %950 = vadd.xlane.f32.xlu0 %v949
          %v951 = vpop.xlane.xlu0 %950
          %v952 = vsel %vm948, %v943, 0.0
          %953 = vadd.xlane.f32.xlu0 %v952
          %v954 = vpop.xlane.xlu0 %953
          %v955 = vrcp.pop 48.0
          %v956 = vmul.f32 %v951, %v955
          %v957 = vmul.f32 %v954, %v955
          %v958 = vsub.f32 %v938, %v956
          %v959 = vsub.f32 %v943, %v957
          %v960 = vmul.f32 %v958, %v958
          %v961 = vmul.f32 %v959, %v959
          %v962 = vsel %vm948, %v960, 0.0
          %963 = vadd.xlane.f32.xlu0 %v962
          %v964 = vpop.xlane.xlu0 %963
          %v965 = vsel %vm948, %v961, 0.0
          %966 = vadd.xlane.f32.xlu0 %v965
          %v967 = vpop.xlane.xlu0 %966
          %v968 = vmul.f32 %v964, %v955
          %v969 = vmul.f32 %v967, %v955
          %v970 = vadd.f32 %v968, 1e-05
          %v971 = vadd.f32 %v969, 1e-05
          %v972 = vrsqrt.pop %v970
          %v973 = vrsqrt.pop %v971
          %v974 = vmul.f32 %v958, %v972
          %v975 = vmul.f32 %v959, %v973
          %v977 = vlaneseq
          %v978 = vshrl.u32 %v977, 7
          %v979 = vsub.s32 0, %v978
          %v980 = vrot.slane %v946, %v979
          %v982 = vmul.f32 %v974, %v980
          %v983 = vmul.f32 %v975, %v980
          %v985 = vlaneseq
          %v986 = vshrl.u32 %v985, 7
          %v987 = vsub.s32 0, %v986
          %v988 = vrot.slane %v947, %v987
          %v990 = vadd.f32 %v982, %v988
          %v991 = vadd.f32 %v983, %v988
          %v992 = vld [vmem:[%s1] sm:$0xff]
          %v993 = vadd.f32 %v990, %v992
          %v994 = vadd.f32 %v991, %v992
          %995 = vst.msk [vmem:[#allocation2] sm:$0xff] %vm948, %v993
          %996 = vst.msk [vmem:[#allocation2 + $0x8] sm:$0xff] %vm948, %v994
        $region100: #{vit_forward.1} parent=95 // pred_fallthru
          _
        %v997 = vld [vmem:[#allocation2] sm:$0xff]
        %v998 = vld [vmem:[#allocation2 + $0x8] sm:$0xff]
        %v999 = vld [vmem:[%s754] sm:$0x1]
        %v1000 = vld [vmem:[%s757] sm:$0x1]
        %vm1001 = vcmask 392192
        %v1002 = vsel %vm1001, %v997, 0.0
        %1003 = vadd.xlane.f32.xlu0 %v1002
        %v1004 = vpop.xlane.xlu0 %1003
        %v1005 = vsel %vm1001, %v998, 0.0
        %1006 = vadd.xlane.f32.xlu0 %v1005
        %v1007 = vpop.xlane.xlu0 %1006
        %v1008 = vrcp.pop 48.0
        %v1009 = vmul.f32 %v1004, %v1008
        %v1010 = vmul.f32 %v1007, %v1008
        %v1011 = vsub.f32 %v997, %v1009
        %v1012 = vsub.f32 %v998, %v1010
        %v1013 = vmul.f32 %v1011, %v1011
        %v1014 = vmul.f32 %v1012, %v1012
        %v1015 = vsel %vm1001, %v1013, 0.0
        %1016 = vadd.xlane.f32.xlu0 %v1015
        %v1017 = vpop.xlane.xlu0 %1016
        %v1018 = vsel %vm1001, %v1014, 0.0
        %1019 = vadd.xlane.f32.xlu0 %v1018
        %v1020 = vpop.xlane.xlu0 %1019
        %v1021 = vmul.f32 %v1017, %v1008
        %v1022 = vmul.f32 %v1020, %v1008
        %v1023 = vadd.f32 %v1021, 1e-05
        %v1024 = vadd.f32 %v1022, 1e-05
        %v1025 = vrsqrt.pop %v1023
        %v1026 = vrsqrt.pop %v1024
        %v1027 = vmul.f32 %v1011, %v1025
        %v1028 = vmul.f32 %v1012, %v1026
        %v1030 = vlaneseq
        %v1031 = vshrl.u32 %v1030, 7
        %v1032 = vsub.s32 0, %v1031
        %v1033 = vrot.slane %v999, %v1032
        %v1035 = vmul.f32 %v1027, %v1033
        %v1036 = vmul.f32 %v1028, %v1033
        %v1038 = vlaneseq
        %v1039 = vshrl.u32 %v1038, 7
        %v1040 = vsub.s32 0, %v1039
        %v1041 = vrot.slane %v1000, %v1040
        %v1043 = vadd.f32 %v1035, %v1041
        %v1044 = vadd.f32 %v1036, %v1041
        %v1045 = vld [vmem:[%s762] sm:$0xff]
        %v1046 = vld [vmem:[%s762 + $0x8] sm:$0xff]
        %v1047 = vld [vmem:[%s762 + $0x10] sm:$0xff]
        %v1048 = vld [vmem:[%s762 + $0x18] sm:$0xff]
        %v1049 = vld [vmem:[%s762 + $0x20] sm:$0xff]
        %v1050 = vld [vmem:[%s762 + $0x28] sm:$0xff]
        %v1051 = vld [vmem:[%s762 + $0x30] sm:$0xff]
        %v1052 = vld [vmem:[%s762 + $0x38] sm:$0xff]
        %v1053 = vld [vmem:[%s762 + $0x40] sm:$0xff]
        %v1054 = vld [vmem:[%s762 + $0x48] sm:$0xff]
        %v1055 = vld [vmem:[%s762 + $0x50] sm:$0xff]
        %v1056 = vld [vmem:[%s762 + $0x58] sm:$0xff]
        %v1058 = vsel %vm1001, %v1043, 0
        %v1061 = vsel %vm1001, %v1044, 0
        %1063 = vmatprep.subr.mxu0 %v1046
        %1064 = vmatpush1.msra.mxu0 %v1045
        %1065 = vmatprep.subr.mxu0 %v1048
        %1066 = vmatpush1.msra.mxu0 %v1047
        %1067 = vmatprep.subr.mxu0 %v1050
        %1068 = vmatpush1.msra.mxu0 %v1049
        %1069 = vmatprep.subr.mxu0 %v1052
        %1070 = vmatpush1.msra.mxu0 %v1051
        %1071 = vmatprep.subr.mxu0 %v1054
        %1072 = vmatpush1.msra.mxu0 %v1053
        %1073 = vmatprep.subr.mxu0 %v1056
        %1074 = vmatpush1.msra.mxu0 %v1055
        %1075 = vmatprep.subr.mxu0 0.0
        %1076 = vmatpush1.msra.mxu0 0.0
        %1077 = vmatprep.subr.mxu0 0.0
        %1078 = vmatpush1.msra.mxu0 0.0
        %1079 = vmatprep.subr.mxu0 0.0
        %1080 = vmatpush1.msra.mxu0 0.0
        %1081 = vmatprep.subr.mxu0 0.0
        %1082 = vmatpush1.msra.mxu0 0.0
        %1083 = vmatprep.subr.mxu0 0.0
        %1084 = vmatpush1.msra.mxu0 0.0
        %1085 = vmatprep.subr.mxu0 0.0
        %1086 = vmatpush1.msra.mxu0 0.0
        %1087 = vmatprep.subr.mxu0 0.0
        %1088 = vmatpush1.msra.mxu0 0.0
        %1089 = vmatprep.subr.mxu0 0.0
        %1090 = vmatpush1.msra.mxu0 0.0
        %1091 = vmatprep.subr.mxu0 0.0
        %1092 = vmatpush1.msra.mxu0 0.0
        %1093 = vmatprep.subr.mxu0 0.0
        %1094 = vmatpush1.msra.mxu0 0.0
        %1095 = vmatprep.subr.mxu0 0.0
        %1096 = vmatpush1.msra.mxu0 0.0
        %1097 = vmatprep.subr.mxu0 0.0
        %1098 = vmatpush1.msra.mxu0 0.0
        %1099 = vmatprep.subr.mxu0 0.0
        %1100 = vmatpush1.msra.mxu0 0.0
        %1101 = vmatprep.subr.mxu0 0.0
        %1102 = vmatpush1.msra.mxu0 0.0
        %1103 = vmatprep.subr.mxu0 0.0
        %1104 = vmatpush1.msra.mxu0 0.0
        %1105 = vmatprep.subr.mxu0 0.0
        %1106 = vmatpush1.msra.mxu0 0.0
        %1107 = vmatprep.subr.mxu0 0.0
        %1108 = vmatpush1.msra.mxu0 0.0
        %1109 = vmatprep.subr.mxu0 0.0
        %1110 = vmatpush1.msra.mxu0 0.0
        %1111 = vmatprep.subr.mxu0 0.0
        %1112 = vmatpush1.msra.mxu0 0.0
        %1113 = vmatprep.subr.mxu0 0.0
        %1114 = vmatpush1.msra.mxu0 0.0
        %1115 = vmatprep.subr.mxu0 0.0
        %1116 = vmatpush1.msra.mxu0 0.0
        %1117 = vmatprep.subr.mxu0 0.0
        %1118 = vmatpush1.msra.mxu0 0.0
        %1119 = vmatprep.subr.mxu0 0.0
        %1120 = vmatpush1.msra.mxu0 0.0
        %1121 = vmatprep.subr.mxu0 0.0
        %1122 = vmatpush1.msra.mxu0 0.0
        %1123 = vmatprep.subr.mxu0 0.0
        %1124 = vmatpush1.msra.mxu0 0.0
        %1125 = vmatprep.subr.mxu0 0.0
        %1126 = vmatpush1.msra.mxu0 0.0
        %1127 = vmatprep.mubr.f32.mxu0 0.0
        %1128 = vmatmul.mubr.f32.gmra.mrb[0].mxu0 %v1058
        %v1129 = vpop.f32.mrb[0].mxu0
        %v1130 = vadd.f32 0.0, %v1129
        %v1131 = vpop.f32.mrb[0].mxu0
        %v1132 = vadd.f32 0.0, %v1131
        %1133 = vmatprep.mubr.f32.mxu0 0.0
        %1134 = vmatmul.mubr.f32.gmra.mrb[0].mxu0 %v1061
        %v1135 = vpop.f32.mrb[0].mxu0
        %v1136 = vadd.f32 0.0, %v1135
        %v1137 = vpop.f32.mrb[0].mxu0
        %v1138 = vadd.f32 0.0, %v1137
        %1139 = vdwg.mxu0
        %1141 = vrot.lane.b32.xlu0 %v1130, 64
        %v1142 = vpop.permute.xlu0 %1141
        %vm1143 = vcmask 130048
        %v1144 = vsel %vm1143, %v1130, 0
        %v1146 = vsel %vm1143, %v1142, 0
        %1148 = vmatprep.subr.mxu0 0.0
        %1149 = vmatpush1.xpose.msra.mxu0 %v1146
        %1150 = vmatprep.subr.mxu0 0.0
        %1151 = vmatpush1.xpose.msra.mxu0 0.0
        %1152 = vmatprep.subr.mxu0 0.0
        %1153 = vmatpush1.xpose.msra.mxu0 0.0
        %1154 = vmatprep.subr.mxu0 0.0
        %1155 = vmatpush1.xpose.msra.mxu0 0.0
        %1156 = vmatprep.subr.mxu0 0.0
        %1157 = vmatpush1.xpose.msra.mxu0 0.0
        %1158 = vmatprep.subr.mxu0 0.0
        %1159 = vmatpush1.xpose.msra.mxu0 0.0
        %1160 = vmatprep.subr.mxu0 0.0
        %1161 = vmatpush1.xpose.msra.mxu0 0.0
        %1162 = vmatprep.subr.mxu0 0.0
        %1163 = vmatpush1.xpose.msra.mxu0 0.0
        %1164 = vmatprep.subr.mxu0 0.0
        %1165 = vmatpush1.xpose.msra.mxu0 0.0
        %1166 = vmatprep.subr.mxu0 0.0
        %1167 = vmatpush1.xpose.msra.mxu0 0.0
        %1168 = vmatprep.subr.mxu0 0.0
        %1169 = vmatpush1.xpose.msra.mxu0 0.0
        %1170 = vmatprep.subr.mxu0 0.0
        %1171 = vmatpush1.xpose.msra.mxu0 0.0
        %1172 = vmatprep.subr.mxu0 0.0
        %1173 = vmatpush1.xpose.msra.mxu0 0.0
        %1174 = vmatprep.subr.mxu0 0.0
        %1175 = vmatpush1.xpose.msra.mxu0 0.0
        %1176 = vmatprep.subr.mxu0 0.0
        %1177 = vmatpush1.xpose.msra.mxu0 0.0
        %1178 = vmatprep.subr.mxu0 0.0
        %1179 = vmatpush1.xpose.msra.mxu0 0.0
        %1180 = vmatprep.subr.mxu0 0.0
        %1181 = vmatpush1.xpose.msra.mxu0 0.0
        %1182 = vmatprep.subr.mxu0 0.0
        %1183 = vmatpush1.xpose.msra.mxu0 0.0
        %1184 = vmatprep.subr.mxu0 0.0
        %1185 = vmatpush1.xpose.msra.mxu0 0.0
        %1186 = vmatprep.subr.mxu0 0.0
        %1187 = vmatpush1.xpose.msra.mxu0 0.0
        %1188 = vmatprep.subr.mxu0 0.0
        %1189 = vmatpush1.xpose.msra.mxu0 0.0
        %1190 = vmatprep.subr.mxu0 0.0
        %1191 = vmatpush1.xpose.msra.mxu0 0.0
        %1192 = vmatprep.subr.mxu0 0.0
        %1193 = vmatpush1.xpose.msra.mxu0 0.0
        %1194 = vmatprep.subr.mxu0 0.0
        %1195 = vmatpush1.xpose.msra.mxu0 0.0
        %1196 = vmatprep.subr.mxu0 0.0
        %1197 = vmatpush1.xpose.msra.mxu0 0.0
        %1198 = vmatprep.subr.mxu0 0.0
        %1199 = vmatpush1.xpose.msra.mxu0 0.0
        %1200 = vmatprep.subr.mxu0 0.0
        %1201 = vmatpush1.xpose.msra.mxu0 0.0
        %1202 = vmatprep.subr.mxu0 0.0
        %1203 = vmatpush1.xpose.msra.mxu0 0.0
        %1204 = vmatprep.subr.mxu0 0.0
        %1205 = vmatpush1.xpose.msra.mxu0 0.0
        %1206 = vmatprep.subr.mxu0 0.0
        %1207 = vmatpush1.xpose.msra.mxu0 0.0
        %1208 = vmatprep.subr.mxu0 0.0
        %1209 = vmatpush1.xpose.msra.mxu0 0.0
        %1210 = vmatprep.subr.mxu0 0.0
        %1211 = vmatpush1.xpose.msra.mxu0 0.0
        %1212 = vmatprep.mubr.f32.mxu0 0.0
        %1213 = vmatmul.mubr.f32.gmra.mrb[0].mxu0 %v1144
        %v1214 = vpop.f32.mrb[0].mxu0
        %v1215 = vadd.f32 0.0, %v1214
        %v1216 = vpop.f32.mrb[0].mxu0
        %1217 = vdwg.mxu0
        %v1218 = vmul.f32 %v1215, 0.25
        %vm1219 = vcmask 64512
        %v1220 = vsel %vm1219, %v1218, -inf
        %1221 = vmax.xlane.f32.xlu0 %v1220
        %v1222 = vpop.xlane.xlu0 %1221
        %v1223 = vsub.f32 %v1218, %v1222
        %v1224 = vmul.f32 %v1223, 1.442695
        %v1225 = vpow.pop %v1224
        %v1226 = vsel %vm1219, %v1225, 0.0
        %1227 = vadd.xlane.f32.xlu0 %v1226
        %v1228 = vpop.xlane.xlu0 %1227
        %v1229 = vrcp.pop %v1228
        %v1230 = vmul.f32 %v1225, %v1229
        %v1232 = vsel %vm1219, %v1230, 0
        %1234 = vmatprep.subr.mxu0 0.0
        %1235 = vmatpush1.msra.mxu0 %v1132
        %1236 = vmatprep.subr.mxu0 0.0
        %1237 = vmatpush1.msra.mxu0 0.0
        %1238 = vmatprep.subr.mxu0 0.0
        %1239 = vmatpush1.msra.mxu0 0.0
        %1240 = vmatprep.subr.mxu0 0.0
        %1241 = vmatpush1.msra.mxu0 0.0
        %1242 = vmatprep.subr.mxu0 0.0
        %1243 = vmatpush1.msra.mxu0 0.0
        %1244 = vmatprep.subr.mxu0 0.0
        %1245 = vmatpush1.msra.mxu0 0.0
        %1246 = vmatprep.subr.mxu0 0.0
        %1247 = vmatpush1.msra.mxu0 0.0
        %1248 = vmatprep.subr.mxu0 0.0
        %1249 = vmatpush1.msra.mxu0 0.0
        %1250 = vmatprep.subr.mxu0 0.0
        %1251 = vmatpush1.msra.mxu0 0.0
        %1252 = vmatprep.subr.mxu0 0.0
        %1253 = vmatpush1.msra.mxu0 0.0
        %1254 = vmatprep.subr.mxu0 0.0
        %1255 = vmatpush1.msra.mxu0 0.0
        %1256 = vmatprep.subr.mxu0 0.0
        %1257 = vmatpush1.msra.mxu0 0.0
        %1258 = vmatprep.subr.mxu0 0.0
        %1259 = vmatpush1.msra.mxu0 0.0
        %1260 = vmatprep.subr.mxu0 0.0
        %1261 = vmatpush1.msra.mxu0 0.0
        %1262 = vmatprep.subr.mxu0 0.0
        %1263 = vmatpush1.msra.mxu0 0.0
        %1264 = vmatprep.subr.mxu0 0.0
        %1265 = vmatpush1.msra.mxu0 0.0
        %1266 = vmatprep.subr.mxu0 0.0
        %1267 = vmatpush1.msra.mxu0 0.0
        %1268 = vmatprep.subr.mxu0 0.0
        %1269 = vmatpush1.msra.mxu0 0.0
        %1270 = vmatprep.subr.mxu0 0.0
        %1271 = vmatpush1.msra.mxu0 0.0
        %1272 = vmatprep.subr.mxu0 0.0
        %1273 = vmatpush1.msra.mxu0 0.0
        %1274 = vmatprep.subr.mxu0 0.0
        %1275 = vmatpush1.msra.mxu0 0.0
        %1276 = vmatprep.subr.mxu0 0.0
        %1277 = vmatpush1.msra.mxu0 0.0
        %1278 = vmatprep.subr.mxu0 0.0
        %1279 = vmatpush1.msra.mxu0 0.0
        %1280 = vmatprep.subr.mxu0 0.0
        %1281 = vmatpush1.msra.mxu0 0.0
        %1282 = vmatprep.subr.mxu0 0.0
        %1283 = vmatpush1.msra.mxu0 0.0
        %1284 = vmatprep.subr.mxu0 0.0
        %1285 = vmatpush1.msra.mxu0 0.0
        %1286 = vmatprep.subr.mxu0 0.0
        %1287 = vmatpush1.msra.mxu0 0.0
        %1288 = vmatprep.subr.mxu0 0.0
        %1289 = vmatpush1.msra.mxu0 0.0
        %1290 = vmatprep.subr.mxu0 0.0
        %1291 = vmatpush1.msra.mxu0 0.0
        %1292 = vmatprep.subr.mxu0 0.0
        %1293 = vmatpush1.msra.mxu0 0.0
        %1294 = vmatprep.subr.mxu0 0.0
        %1295 = vmatpush1.msra.mxu0 0.0
        %1296 = vmatprep.subr.mxu0 0.0
        %1297 = vmatpush1.msra.mxu0 0.0
        %1298 = vmatprep.mubr.f32.mxu0 0.0
        %1299 = vmatmul.mubr.f32.gmra.mrb[0].mxu0 %v1232
        %v1300 = vpop.f32.mrb[0].mxu0
        %v1301 = vadd.f32 0.0, %v1300
        %v1302 = vpop.f32.mrb[0].mxu0
        %1303 = vdwg.mxu0
        %1304 = vst.msk [vmem:[#allocation3] sm:$0xff] %vm1143, %v1301
        %1305 = vrot.lane.b32.xlu0 %v1130, 112
        %v1306 = vpop.permute.xlu0 %1305
        %1307 = vrot.lane.b32.xlu0 %v1130, 48
        %v1308 = vpop.permute.xlu0 %1307
        %v1309 = vsel %vm1143, %v1306, 0
        %v1311 = vsel %vm1143, %v1308, 0
        %1313 = vmatprep.subr.mxu0 0.0
        %1314 = vmatpush1.xpose.msra.mxu0 %v1311
        %1315 = vmatprep.subr.mxu0 0.0
        %1316 = vmatpush1.xpose.msra.mxu0 0.0
        %1317 = vmatprep.subr.mxu0 0.0
        %1318 = vmatpush1.xpose.msra.mxu0 0.0
        %1319 = vmatprep.subr.mxu0 0.0
        %1320 = vmatpush1.xpose.msra.mxu0 0.0
        %1321 = vmatprep.subr.mxu0 0.0
        %1322 = vmatpush1.xpose.msra.mxu0 0.0
        %1323 = vmatprep.subr.mxu0 0.0
        %1324 = vmatpush1.xpose.msra.mxu0 0.0
        %1325 = vmatprep.subr.mxu0 0.0
        %1326 = vmatpush1.xpose.msra.mxu0 0.0
        %1327 = vmatprep.subr.mxu0 0.0
        %1328 = vmatpush1.xpose.msra.mxu0 0.0
        %1329 = vmatprep.subr.mxu0 0.0
        %1330 = vmatpush1.xpose.msra.mxu0 0.0
        %1331 = vmatprep.subr.mxu0 0.0
        %1332 = vmatpush1.xpose.msra.mxu0 0.0
        %1333 = vmatprep.subr.mxu0 0.0
        %1334 = vmatpush1.xpose.msra.mxu0 0.0
        %1335 = vmatprep.subr.mxu0 0.0
        %1336 = vmatpush1.xpose.msra.mxu0 0.0
        %1337 = vmatprep.subr.mxu0 0.0
        %1338 = vmatpush1.xpose.msra.mxu0 0.0
        %1339 = vmatprep.subr.mxu0 0.0
        %1340 = vmatpush1.xpose.msra.mxu0 0.0
        %1341 = vmatprep.subr.mxu0 0.0
        %1342 = vmatpush1.xpose.msra.mxu0 0.0
        %1343 = vmatprep.subr.mxu0 0.0
        %1344 = vmatpush1.xpose.msra.mxu0 0.0
        %1345 = vmatprep.subr.mxu0 0.0
        %1346 = vmatpush1.xpose.msra.mxu0 0.0
        %1347 = vmatprep.subr.mxu0 0.0
        %1348 = vmatpush1.xpose.msra.mxu0 0.0
        %1349 = vmatprep.subr.mxu0 0.0
        %1350 = vmatpush1.xpose.msra.mxu0 0.0
        %1351 = vmatprep.subr.mxu0 0.0
        %1352 = vmatpush1.xpose.msra.mxu0 0.0
        %1353 = vmatprep.subr.mxu0 0.0
        %1354 = vmatpush1.xpose.msra.mxu0 0.0
        %1355 = vmatprep.subr.mxu0 0.0
        %1356 = vmatpush1.xpose.msra.mxu0 0.0
        %1357 = vmatprep.subr.mxu0 0.0
        %1358 = vmatpush1.xpose.msra.mxu0 0.0
        %1359 = vmatprep.subr.mxu0 0.0
        %1360 = vmatpush1.xpose.msra.mxu0 0.0
        %1361 = vmatprep.subr.mxu0 0.0
        %1362 = vmatpush1.xpose.msra.mxu0 0.0
        %1363 = vmatprep.subr.mxu0 0.0
        %1364 = vmatpush1.xpose.msra.mxu0 0.0
        %1365 = vmatprep.subr.mxu0 0.0
        %1366 = vmatpush1.xpose.msra.mxu0 0.0
        %1367 = vmatprep.subr.mxu0 0.0
        %1368 = vmatpush1.xpose.msra.mxu0 0.0
        %1369 = vmatprep.subr.mxu0 0.0
        %1370 = vmatpush1.xpose.msra.mxu0 0.0
        %1371 = vmatprep.subr.mxu0 0.0
        %1372 = vmatpush1.xpose.msra.mxu0 0.0
        %1373 = vmatprep.subr.mxu0 0.0
        %1374 = vmatpush1.xpose.msra.mxu0 0.0
        %1375 = vmatprep.subr.mxu0 0.0
        %1376 = vmatpush1.xpose.msra.mxu0 0.0
        %1377 = vmatprep.mubr.f32.mxu0 0.0
        %1378 = vmatmul.mubr.f32.gmra.mrb[0].mxu0 %v1309
        %v1379 = vpop.f32.mrb[0].mxu0
        %v1380 = vadd.f32 0.0, %v1379
        %v1381 = vpop.f32.mrb[0].mxu0
        %1382 = vdwg.mxu0
        %v1383 = vmul.f32 %v1380, 0.25
        %v1384 = vsel %vm1219, %v1383, -inf
        %1385 = vmax.xlane.f32.xlu0 %v1384
        %v1386 = vpop.xlane.xlu0 %1385
        %v1387 = vsub.f32 %v1383, %v1386
        %v1388 = vmul.f32 %v1387, 1.442695
        %v1389 = vpow.pop %v1388
        %v1390 = vsel %vm1219, %v1389, 0.0
        %1391 = vadd.xlane.f32.xlu0 %v1390
        %v1392 = vpop.xlane.xlu0 %1391
        %v1393 = vrcp.pop %v1392
        %v1394 = vmul.f32 %v1389, %v1393
        %1396 = vrot.lane.b32.xlu0 %v1132, 112
        %v1397 = vpop.permute.xlu0 %1396
        %v1400 = vsel %vm1219, %v1394, 0
        %1402 = vmatprep.subr.mxu0 0.0
        %1403 = vmatpush1.msra.mxu0 %v1397
        %1404 = vmatprep.subr.mxu0 0.0
        %1405 = vmatpush1.msra.mxu0 0.0
        %1406 = vmatprep.subr.mxu0 0.0
        %1407 = vmatpush1.msra.mxu0 0.0
        %1408 = vmatprep.subr.mxu0 0.0
        %1409 = vmatpush1.msra.mxu0 0.0
        %1410 = vmatprep.subr.mxu0 0.0
        %1411 = vmatpush1.msra.mxu0 0.0
        %1412 = vmatprep.subr.mxu0 0.0
        %1413 = vmatpush1.msra.mxu0 0.0
        %1414 = vmatprep.subr.mxu0 0.0
        %1415 = vmatpush1.msra.mxu0 0.0
        %1416 = vmatprep.subr.mxu0 0.0
        %1417 = vmatpush1.msra.mxu0 0.0
        %1418 = vmatprep.subr.mxu0 0.0
        %1419 = vmatpush1.msra.mxu0 0.0
        %1420 = vmatprep.subr.mxu0 0.0
        %1421 = vmatpush1.msra.mxu0 0.0
        %1422 = vmatprep.subr.mxu0 0.0
        %1423 = vmatpush1.msra.mxu0 0.0
        %1424 = vmatprep.subr.mxu0 0.0
        %1425 = vmatpush1.msra.mxu0 0.0
        %1426 = vmatprep.subr.mxu0 0.0
        %1427 = vmatpush1.msra.mxu0 0.0
        %1428 = vmatprep.subr.mxu0 0.0
        %1429 = vmatpush1.msra.mxu0 0.0
        %1430 = vmatprep.subr.mxu0 0.0
        %1431 = vmatpush1.msra.mxu0 0.0
        %1432 = vmatprep.subr.mxu0 0.0
        %1433 = vmatpush1.msra.mxu0 0.0
        %1434 = vmatprep.subr.mxu0 0.0
        %1435 = vmatpush1.msra.mxu0 0.0
        %1436 = vmatprep.subr.mxu0 0.0
        %1437 = vmatpush1.msra.mxu0 0.0
        %1438 = vmatprep.subr.mxu0 0.0
        %1439 = vmatpush1.msra.mxu0 0.0
        %1440 = vmatprep.subr.mxu0 0.0
        %1441 = vmatpush1.msra.mxu0 0.0
        %1442 = vmatprep.subr.mxu0 0.0
        %1443 = vmatpush1.msra.mxu0 0.0
        %1444 = vmatprep.subr.mxu0 0.0
        %1445 = vmatpush1.msra.mxu0 0.0
        %1446 = vmatprep.subr.mxu0 0.0
        %1447 = vmatpush1.msra.mxu0 0.0
        %1448 = vmatprep.subr.mxu0 0.0
        %1449 = vmatpush1.msra.mxu0 0.0
        %1450 = vmatprep.subr.mxu0 0.0
        %1451 = vmatpush1.msra.mxu0 0.0
        %1452 = vmatprep.subr.mxu0 0.0
        %1453 = vmatpush1.msra.mxu0 0.0
        %1454 = vmatprep.subr.mxu0 0.0
        %1455 = vmatpush1.msra.mxu0 0.0
        %1456 = vmatprep.subr.mxu0 0.0
        %1457 = vmatpush1.msra.mxu0 0.0
        %1458 = vmatprep.subr.mxu0 0.0
        %1459 = vmatpush1.msra.mxu0 0.0
        %1460 = vmatprep.subr.mxu0 0.0
        %1461 = vmatpush1.msra.mxu0 0.0
        %1462 = vmatprep.subr.mxu0 0.0
        %1463 = vmatpush1.msra.mxu0 0.0
        %1464 = vmatprep.subr.mxu0 0.0
        %1465 = vmatpush1.msra.mxu0 0.0
        %1466 = vmatprep.mubr.f32.mxu0 0.0
        %1467 = vmatmul.mubr.f32.gmra.mrb[0].mxu0 %v1400
        %v1468 = vpop.f32.mrb[0].mxu0
        %v1469 = vadd.f32 0.0, %v1468
        %v1470 = vpop.f32.mrb[0].mxu0
        %1471 = vdwg.mxu0
        %1473 = vrot.lane.b32.xlu0 %v1469, 16
        %v1474 = vpop.permute.xlu0 %1473
        %vm1476 = vcmask 261248
        %1477 = vst.msk [vmem:[#allocation3] sm:$0xff] %vm1476, %v1474
        %1478 = vrot.lane.b32.xlu0 %v1130, 96
        %v1479 = vpop.permute.xlu0 %1478
        %1480 = vrot.lane.b32.xlu0 %v1130, 32
        %v1481 = vpop.permute.xlu0 %1480
        %v1482 = vsel %vm1143, %v1479, 0
        %v1484 = vsel %vm1143, %v1481, 0
        %1486 = vmatprep.subr.mxu0 0.0
        %1487 = vmatpush1.xpose.msra.mxu0 %v1484
        %1488 = vmatprep.subr.mxu0 0.0
        %1489 = vmatpush1.xpose.msra.mxu0 0.0
        %1490 = vmatprep.subr.mxu0 0.0
        %1491 = vmatpush1.xpose.msra.mxu0 0.0
        %1492 = vmatprep.subr.mxu0 0.0
        %1493 = vmatpush1.xpose.msra.mxu0 0.0
        %1494 = vmatprep.subr.mxu0 0.0
        %1495 = vmatpush1.xpose.msra.mxu0 0.0
        %1496 = vmatprep.subr.mxu0 0.0
        %1497 = vmatpush1.xpose.msra.mxu0 0.0
        %1498 = vmatprep.subr.mxu0 0.0
        %1499 = vmatpush1.xpose.msra.mxu0 0.0
        %1500 = vmatprep.subr.mxu0 0.0
        %1501 = vmatpush1.xpose.msra.mxu0 0.0
        %1502 = vmatprep.subr.mxu0 0.0
        %1503 = vmatpush1.xpose.msra.mxu0 0.0
        %1504 = vmatprep.subr.mxu0 0.0
        %1505 = vmatpush1.xpose.msra.mxu0 0.0
        %1506 = vmatprep.subr.mxu0 0.0
        %1507 = vmatpush1.xpose.msra.mxu0 0.0
        %1508 = vmatprep.subr.mxu0 0.0
        %1509 = vmatpush1.xpose.msra.mxu0 0.0
        %1510 = vmatprep.subr.mxu0 0.0
        %1511 = vmatpush1.xpose.msra.mxu0 0.0
        %1512 = vmatprep.subr.mxu0 0.0
        %1513 = vmatpush1.xpose.msra.mxu0 0.0
        %1514 = vmatprep.subr.mxu0 0.0
        %1515 = vmatpush1.xpose.msra.mxu0 0.0
        %1516 = vmatprep.subr.mxu0 0.0
        %1517 = vmatpush1.xpose.msra.mxu0 0.0
        %1518 = vmatprep.subr.mxu0 0.0
        %1519 = vmatpush1.xpose.msra.mxu0 0.0
        %1520 = vmatprep.subr.mxu0 0.0
        %1521 = vmatpush1.xpose.msra.mxu0 0.0
        %1522 = vmatprep.subr.mxu0 0.0
        %1523 = vmatpush1.xpose.msra.mxu0 0.0
        %1524 = vmatprep.subr.mxu0 0.0
        %1525 = vmatpush1.xpose.msra.mxu0 0.0
        %1526 = vmatprep.subr.mxu0 0.0
        %1527 = vmatpush1.xpose.msra.mxu0 0.0
        %1528 = vmatprep.subr.mxu0 0.0
        %1529 = vmatpush1.xpose.msra.mxu0 0.0
        %1530 = vmatprep.subr.mxu0 0.0
        %1531 = vmatpush1.xpose.msra.mxu0 0.0
        %1532 = vmatprep.subr.mxu0 0.0
        %1533 = vmatpush1.xpose.msra.mxu0 0.0
        %1534 = vmatprep.subr.mxu0 0.0
        %1535 = vmatpush1.xpose.msra.mxu0 0.0
        %1536 = vmatprep.subr.mxu0 0.0
        %1537 = vmatpush1.xpose.msra.mxu0 0.0
        %1538 = vmatprep.subr.mxu0 0.0
        %1539 = vmatpush1.xpose.msra.mxu0 0.0
        %1540 = vmatprep.subr.mxu0 0.0
        %1541 = vmatpush1.xpose.msra.mxu0 0.0
        %1542 = vmatprep.subr.mxu0 0.0
        %1543 = vmatpush1.xpose.msra.mxu0 0.0
        %1544 = vmatprep.subr.mxu0 0.0
        %1545 = vmatpush1.xpose.msra.mxu0 0.0
        %1546 = vmatprep.subr.mxu0 0.0
        %1547 = vmatpush1.xpose.msra.mxu0 0.0
        %1548 = vmatprep.subr.mxu0 0.0
        %1549 = vmatpush1.xpose.msra.mxu0 0.0
        %1550 = vmatprep.mubr.f32.mxu0 0.0
        %1551 = vmatmul.mubr.f32.gmra.mrb[0].mxu0 %v1482
        %v1552 = vpop.f32.mrb[0].mxu0
        %v1553 = vadd.f32 0.0, %v1552
        %v1554 = vpop.f32.mrb[0].mxu0
        %1555 = vdwg.mxu0
        %v1556 = vmul.f32 %v1553, 0.25
        %v1557 = vsel %vm1219, %v1556, -inf
        %1558 = vmax.xlane.f32.xlu0 %v1557
        %v1559 = vpop.xlane.xlu0 %1558
        %v1560 = vsub.f32 %v1556, %v1559
        %v1561 = vmul.f32 %v1560, 1.442695
        %v1562 = vpow.pop %v1561
        %v1563 = vsel %vm1219, %v1562, 0.0
        %1564 = vadd.xlane.f32.xlu0 %v1563
        %v1565 = vpop.xlane.xlu0 %1564
        %v1566 = vrcp.pop %v1565
        %v1567 = vmul.f32 %v1562, %v1566
        %1568 = vrot.lane.b32.xlu0 %v1132, 96
        %v1569 = vpop.permute.xlu0 %1568
        %v1572 = vsel %vm1219, %v1567, 0
        %1574 = vmatprep.subr.mxu0 0.0
        %1575 = vmatpush1.msra.mxu0 %v1569
        %1576 = vmatprep.subr.mxu0 0.0
        %1577 = vmatpush1.msra.mxu0 0.0
        %1578 = vmatprep.subr.mxu0 0.0
        %1579 = vmatpush1.msra.mxu0 0.0
        %1580 = vmatprep.subr.mxu0 0.0
        %1581 = vmatpush1.msra.mxu0 0.0
        %1582 = vmatprep.subr.mxu0 0.0
        %1583 = vmatpush1.msra.mxu0 0.0
        %1584 = vmatprep.subr.mxu0 0.0
        %1585 = vmatpush1.msra.mxu0 0.0
        %1586 = vmatprep.subr.mxu0 0.0
        %1587 = vmatpush1.msra.mxu0 0.0
        %1588 = vmatprep.subr.mxu0 0.0
        %1589 = vmatpush1.msra.mxu0 0.0
        %1590 = vmatprep.subr.mxu0 0.0
        %1591 = vmatpush1.msra.mxu0 0.0
        %1592 = vmatprep.subr.mxu0 0.0
        %1593 = vmatpush1.msra.mxu0 0.0
        %1594 = vmatprep.subr.mxu0 0.0
        %1595 = vmatpush1.msra.mxu0 0.0
        %1596 = vmatprep.subr.mxu0 0.0
        %1597 = vmatpush1.msra.mxu0 0.0
        %1598 = vmatprep.subr.mxu0 0.0
        %1599 = vmatpush1.msra.mxu0 0.0
        %1600 = vmatprep.subr.mxu0 0.0
        %1601 = vmatpush1.msra.mxu0 0.0
        %1602 = vmatprep.subr.mxu0 0.0
        %1603 = vmatpush1.msra.mxu0 0.0
        %1604 = vmatprep.subr.mxu0 0.0
        %1605 = vmatpush1.msra.mxu0 0.0
        %1606 = vmatprep.subr.mxu0 0.0
        %1607 = vmatpush1.msra.mxu0 0.0
        %1608 = vmatprep.subr.mxu0 0.0
        %1609 = vmatpush1.msra.mxu0 0.0
        %1610 = vmatprep.subr.mxu0 0.0
        %1611 = vmatpush1.msra.mxu0 0.0
        %1612 = vmatprep.subr.mxu0 0.0
        %1613 = vmatpush1.msra.mxu0 0.0
        %1614 = vmatprep.subr.mxu0 0.0
        %1615 = vmatpush1.msra.mxu0 0.0
        %1616 = vmatprep.subr.mxu0 0.0
        %1617 = vmatpush1.msra.mxu0 0.0
        %1618 = vmatprep.subr.mxu0 0.0
        %1619 = vmatpush1.msra.mxu0 0.0
        %1620 = vmatprep.subr.mxu0 0.0
        %1621 = vmatpush1.msra.mxu0 0.0
        %1622 = vmatprep.subr.mxu0 0.0
        %1623 = vmatpush1.msra.mxu0 0.0
        %1624 = vmatprep.subr.mxu0 0.0
        %1625 = vmatpush1.msra.mxu0 0.0
        %1626 = vmatprep.subr.mxu0 0.0
        %1627 = vmatpush1.msra.mxu0 0.0
        %1628 = vmatprep.subr.mxu0 0.0
        %1629 = vmatpush1.msra.mxu0 0.0
        %1630 = vmatprep.subr.mxu0 0.0
        %1631 = vmatpush1.msra.mxu0 0.0
        %1632 = vmatprep.subr.mxu0 0.0
        %1633 = vmatpush1.msra.mxu0 0.0
        %1634 = vmatprep.subr.mxu0 0.0
        %1635 = vmatpush1.msra.mxu0 0.0
        %1636 = vmatprep.subr.mxu0 0.0
        %1637 = vmatpush1.msra.mxu0 0.0
        %1638 = vmatprep.mubr.f32.mxu0 0.0
        %1639 = vmatmul.mubr.f32.gmra.mrb[0].mxu0 %v1572
        %v1640 = vpop.f32.mrb[0].mxu0
        %v1641 = vadd.f32 0.0, %v1640
        %v1642 = vpop.f32.mrb[0].mxu0
        %1643 = vdwg.mxu0
        %1645 = vrot.lane.b32.xlu0 %v1641, 32
        %v1646 = vpop.permute.xlu0 %1645
        %vm1648 = vcmask 392448
        %1649 = vst.msk [vmem:[#allocation3] sm:$0xff] %vm1648, %v1646
        %1650 = vrot.lane.b32.xlu0 %v1130, 80
        %v1651 = vpop.permute.xlu0 %1650
        %1652 = vrot.lane.b32.xlu0 %v1130, 16
        %v1653 = vpop.permute.xlu0 %1652
        %v1654 = vsel %vm1143, %v1651, 0
        %v1656 = vsel %vm1143, %v1653, 0
        %1658 = vmatprep.subr.mxu0 0.0
        %1659 = vmatpush1.xpose.msra.mxu0 %v1656
        %1660 = vmatprep.subr.mxu0 0.0
        %1661 = vmatpush1.xpose.msra.mxu0 0.0
        %1662 = vmatprep.subr.mxu0 0.0
        %1663 = vmatpush1.xpose.msra.mxu0 0.0
        %1664 = vmatprep.subr.mxu0 0.0
        %1665 = vmatpush1.xpose.msra.mxu0 0.0
        %1666 = vmatprep.subr.mxu0 0.0
        %1667 = vmatpush1.xpose.msra.mxu0 0.0
        %1668 = vmatprep.subr.mxu0 0.0
        %1669 = vmatpush1.xpose.msra.mxu0 0.0
        %1670 = vmatprep.subr.mxu0 0.0
        %1671 = vmatpush1.xpose.msra.mxu0 0.0
        %1672 = vmatprep.subr.mxu0 0.0
        %1673 = vmatpush1.xpose.msra.mxu0 0.0
        %1674 = vmatprep.subr.mxu0 0.0
        %1675 = vmatpush1.xpose.msra.mxu0 0.0
        %1676 = vmatprep.subr.mxu0 0.0
        %1677 = vmatpush1.xpose.msra.mxu0 0.0
        %1678 = vmatprep.subr.mxu0 0.0
        %1679 = vmatpush1.xpose.msra.mxu0 0.0
        %1680 = vmatprep.subr.mxu0 0.0
        %1681 = vmatpush1.xpose.msra.mxu0 0.0
        %1682 = vmatprep.subr.mxu0 0.0
        %1683 = vmatpush1.xpose.msra.mxu0 0.0
        %1684 = vmatprep.subr.mxu0 0.0
        %1685 = vmatpush1.xpose.msra.mxu0 0.0
        %1686 = vmatprep.subr.mxu0 0.0
        %1687 = vmatpush1.xpose.msra.mxu0 0.0
        %1688 = vmatprep.subr.mxu0 0.0
        %1689 = vmatpush1.xpose.msra.mxu0 0.0
        %1690 = vmatprep.subr.mxu0 0.0
        %1691 = vmatpush1.xpose.msra.mxu0 0.0
        %1692 = vmatprep.subr.mxu0 0.0
        %1693 = vmatpush1.xpose.msra.mxu0 0.0
        %1694 = vmatprep.subr.mxu0 0.0
        %1695 = vmatpush1.xpose.msra.mxu0 0.0
        %1696 = vmatprep.subr.mxu0 0.0
        %1697 = vmatpush1.xpose.msra.mxu0 0.0
        %1698 = vmatprep.subr.mxu0 0.0
        %1699 = vmatpush1.xpose.msra.mxu0 0.0
        %1700 = vmatprep.subr.mxu0 0.0
        %1701 = vmatpush1.xpose.msra.mxu0 0.0
        %1702 = vmatprep.subr.mxu0 0.0
        %1703 = vmatpush1.xpose.msra.mxu0 0.0
        %1704 = vmatprep.subr.mxu0 0.0
        %1705 = vmatpush1.xpose.msra.mxu0 0.0
        %1706 = vmatprep.subr.mxu0 0.0
        %1707 = vmatpush1.xpose.msra.mxu0 0.0
        %1708 = vmatprep.subr.mxu0 0.0
        %1709 = vmatpush1.xpose.msra.mxu0 0.0
        %1710 = vmatprep.subr.mxu0 0.0
        %1711 = vmatpush1.xpose.msra.mxu0 0.0
        %1712 = vmatprep.subr.mxu0 0.0
        %1713 = vmatpush1.xpose.msra.mxu0 0.0
        %1714 = vmatprep.subr.mxu0 0.0
        %1715 = vmatpush1.xpose.msra.mxu0 0.0
        %1716 = vmatprep.subr.mxu0 0.0
        %1717 = vmatpush1.xpose.msra.mxu0 0.0
        %1718 = vmatprep.subr.mxu0 0.0
        %1719 = vmatpush1.xpose.msra.mxu0 0.0
        %1720 = vmatprep.subr.mxu0 0.0
        %1721 = vmatpush1.xpose.msra.mxu0 0.0
        %1722 = vmatprep.mubr.f32.mxu0 0.0
        %1723 = vmatmul.mubr.f32.gmra.mrb[0].mxu0 %v1654
        %v1724 = vpop.f32.mrb[0].mxu0
        %v1725 = vadd.f32 0.0, %v1724
        %v1726 = vpop.f32.mrb[0].mxu0
        %1727 = vdwg.mxu0
        %v1728 = vmul.f32 %v1725, 0.25
        %v1729 = vsel %vm1219, %v1728, -inf
        %1730 = vmax.xlane.f32.xlu0 %v1729
        %v1731 = vpop.xlane.xlu0 %1730
        %v1732 = vsub.f32 %v1728, %v1731
        %v1733 = vmul.f32 %v1732, 1.442695
        %v1734 = vpow.pop %v1733
        %v1735 = vsel %vm1219, %v1734, 0.0
        %1736 = vadd.xlane.f32.xlu0 %v1735
        %v1737 = vpop.xlane.xlu0 %1736
        %v1738 = vrcp.pop %v1737
        %v1739 = vmul.f32 %v1734, %v1738
        %1740 = vrot.lane.b32.xlu0 %v1132, 80
        %v1741 = vpop.permute.xlu0 %1740
        %v1744 = vsel %vm1219, %v1739, 0
        %1746 = vmatprep.subr.mxu0 0.0
        %1747 = vmatpush1.msra.mxu0 %v1741
        %1748 = vmatprep.subr.mxu0 0.0
        %1749 = vmatpush1.msra.mxu0 0.0
        %1750 = vmatprep.subr.mxu0 0.0
        %1751 = vmatpush1.msra.mxu0 0.0
        %1752 = vmatprep.subr.mxu0 0.0
        %1753 = vmatpush1.msra.mxu0 0.0
        %1754 = vmatprep.subr.mxu0 0.0
        %1755 = vmatpush1.msra.mxu0 0.0
        %1756 = vmatprep.subr.mxu0 0.0
        %1757 = vmatpush1.msra.mxu0 0.0
        %1758 = vmatprep.subr.mxu0 0.0
        %1759 = vmatpush1.msra.mxu0 0.0
        %1760 = vmatprep.subr.mxu0 0.0
        %1761 = vmatpush1.msra.mxu0 0.0
        %1762 = vmatprep.subr.mxu0 0.0
        %1763 = vmatpush1.msra.mxu0 0.0
        %1764 = vmatprep.subr.mxu0 0.0
        %1765 = vmatpush1.msra.mxu0 0.0
        %1766 = vmatprep.subr.mxu0 0.0
        %1767 = vmatpush1.msra.mxu0 0.0
        %1768 = vmatprep.subr.mxu0 0.0
        %1769 = vmatpush1.msra.mxu0 0.0
        %1770 = vmatprep.subr.mxu0 0.0
        %1771 = vmatpush1.msra.mxu0 0.0
        %1772 = vmatprep.subr.mxu0 0.0
        %1773 = vmatpush1.msra.mxu0 0.0
        %1774 = vmatprep.subr.mxu0 0.0
        %1775 = vmatpush1.msra.mxu0 0.0
        %1776 = vmatprep.subr.mxu0 0.0
        %1777 = vmatpush1.msra.mxu0 0.0
        %1778 = vmatprep.subr.mxu0 0.0
        %1779 = vmatpush1.msra.mxu0 0.0
        %1780 = vmatprep.subr.mxu0 0.0
        %1781 = vmatpush1.msra.mxu0 0.0
        %1782 = vmatprep.subr.mxu0 0.0
        %1783 = vmatpush1.msra.mxu0 0.0
        %1784 = vmatprep.subr.mxu0 0.0
        %1785 = vmatpush1.msra.mxu0 0.0
        %1786 = vmatprep.subr.mxu0 0.0
        %1787 = vmatpush1.msra.mxu0 0.0
        %1788 = vmatprep.subr.mxu0 0.0
        %1789 = vmatpush1.msra.mxu0 0.0
        %1790 = vmatprep.subr.mxu0 0.0
        %1791 = vmatpush1.msra.mxu0 0.0
        %1792 = vmatprep.subr.mxu0 0.0
        %1793 = vmatpush1.msra.mxu0 0.0
        %1794 = vmatprep.subr.mxu0 0.0
        %1795 = vmatpush1.msra.mxu0 0.0
        %1796 = vmatprep.subr.mxu0 0.0
        %1797 = vmatpush1.msra.mxu0 0.0
        %1798 = vmatprep.subr.mxu0 0.0
        %1799 = vmatpush1.msra.mxu0 0.0
        %1800 = vmatprep.subr.mxu0 0.0
        %1801 = vmatpush1.msra.mxu0 0.0
        %1802 = vmatprep.subr.mxu0 0.0
        %1803 = vmatpush1.msra.mxu0 0.0
        %1804 = vmatprep.subr.mxu0 0.0
        %1805 = vmatpush1.msra.mxu0 0.0
        %1806 = vmatprep.subr.mxu0 0.0
        %1807 = vmatpush1.msra.mxu0 0.0
        %1808 = vmatprep.subr.mxu0 0.0
        %1809 = vmatpush1.msra.mxu0 0.0
        %1810 = vmatprep.mubr.f32.mxu0 0.0
        %1811 = vmatmul.mubr.f32.gmra.mrb[0].mxu0 %v1744
        %v1812 = vpop.f32.mrb[0].mxu0
        %v1813 = vadd.f32 0.0, %v1812
        %v1814 = vpop.f32.mrb[0].mxu0
        %1815 = vdwg.mxu0
        %1817 = vrot.lane.b32.xlu0 %v1813, 48
        %v1818 = vpop.permute.xlu0 %1817
        %vm1820 = vcmask 523648
        %1821 = vst.msk [vmem:[#allocation3] sm:$0xff] %vm1820, %v1818
        %1823 = vrot.lane.b32.xlu0 %v1136, 64
        %v1824 = vpop.permute.xlu0 %1823
        %v1825 = vsel %vm1143, %v1136, 0
        %v1827 = vsel %vm1143, %v1824, 0
        %1829 = vmatprep.subr.mxu0 0.0
        %1830 = vmatpush1.xpose.msra.mxu0 %v1827
        %1831 = vmatprep.subr.mxu0 0.0
        %1832 = vmatpush1.xpose.msra.mxu0 0.0
        %1833 = vmatprep.subr.mxu0 0.0
        %1834 = vmatpush1.xpose.msra.mxu0 0.0
        %1835 = vmatprep.subr.mxu0 0.0
        %1836 = vmatpush1.xpose.msra.mxu0 0.0
        %1837 = vmatprep.subr.mxu0 0.0
        %1838 = vmatpush1.xpose.msra.mxu0 0.0
        %1839 = vmatprep.subr.mxu0 0.0
        %1840 = vmatpush1.xpose.msra.mxu0 0.0
        %1841 = vmatprep.subr.mxu0 0.0
        %1842 = vmatpush1.xpose.msra.mxu0 0.0
        %1843 = vmatprep.subr.mxu0 0.0
        %1844 = vmatpush1.xpose.msra.mxu0 0.0
        %1845 = vmatprep.subr.mxu0 0.0
        %1846 = vmatpush1.xpose.msra.mxu0 0.0
        %1847 = vmatprep.subr.mxu0 0.0
        %1848 = vmatpush1.xpose.msra.mxu0 0.0
        %1849 = vmatprep.subr.mxu0 0.0
        %1850 = vmatpush1.xpose.msra.mxu0 0.0
        %1851 = vmatprep.subr.mxu0 0.0
        %1852 = vmatpush1.xpose.msra.mxu0 0.0
        %1853 = vmatprep.subr.mxu0 0.0
        %1854 = vmatpush1.xpose.msra.mxu0 0.0
        %1855 = vmatprep.subr.mxu0 0.0
        %1856 = vmatpush1.xpose.msra.mxu0 0.0
        %1857 = vmatprep.subr.mxu0 0.0
        %1858 = vmatpush1.xpose.msra.mxu0 0.0
        %1859 = vmatprep.subr.mxu0 0.0
        %1860 = vmatpush1.xpose.msra.mxu0 0.0
        %1861 = vmatprep.subr.mxu0 0.0
        %1862 = vmatpush1.xpose.msra.mxu0 0.0
        %1863 = vmatprep.subr.mxu0 0.0
        %1864 = vmatpush1.xpose.msra.mxu0 0.0
        %1865 = vmatprep.subr.mxu0 0.0
        %1866 = vmatpush1.xpose.msra.mxu0 0.0
        %1867 = vmatprep.subr.mxu0 0.0
        %1868 = vmatpush1.xpose.msra.mxu0 0.0
        %1869 = vmatprep.subr.mxu0 0.0
        %1870 = vmatpush1.xpose.msra.mxu0 0.0
        %1871 = vmatprep.subr.mxu0 0.0
        %1872 = vmatpush1.xpose.msra.mxu0 0.0
        %1873 = vmatprep.subr.mxu0 0.0
        %1874 = vmatpush1.xpose.msra.mxu0 0.0
        %1875 = vmatprep.subr.mxu0 0.0
        %1876 = vmatpush1.xpose.msra.mxu0 0.0
        %1877 = vmatprep.subr.mxu0 0.0
        %1878 = vmatpush1.xpose.msra.mxu0 0.0
        %1879 = vmatprep.subr.mxu0 0.0
        %1880 = vmatpush1.xpose.msra.mxu0 0.0
        %1881 = vmatprep.subr.mxu0 0.0
        %1882 = vmatpush1.xpose.msra.mxu0 0.0
        %1883 = vmatprep.subr.mxu0 0.0
        %1884 = vmatpush1.xpose.msra.mxu0 0.0
        %1885 = vmatprep.subr.mxu0 0.0
        %1886 = vmatpush1.xpose.msra.mxu0 0.0
        %1887 = vmatprep.subr.mxu0 0.0
        %1888 = vmatpush1.xpose.msra.mxu0 0.0
        %1889 = vmatprep.subr.mxu0 0.0
        %1890 = vmatpush1.xpose.msra.mxu0 0.0
        %1891 = vmatprep.subr.mxu0 0.0
        %1892 = vmatpush1.xpose.msra.mxu0 0.0
        %1893 = vmatprep.mubr.f32.mxu0 0.0
        %1894 = vmatmul.mubr.f32.gmra.mrb[0].mxu0 %v1825
        %v1895 = vpop.f32.mrb[0].mxu0
        %v1896 = vadd.f32 0.0, %v1895
        %v1897 = vpop.f32.mrb[0].mxu0
        %1898 = vdwg.mxu0
        %v1899 = vmul.f32 %v1896, 0.25
        %v1900 = vsel %vm1219, %v1899, -inf
        %1901 = vmax.xlane.f32.xlu0 %v1900
        %v1902 = vpop.xlane.xlu0 %1901
        %v1903 = vsub.f32 %v1899, %v1902
        %v1904 = vmul.f32 %v1903, 1.442695
        %v1905 = vpow.pop %v1904
        %v1906 = vsel %vm1219, %v1905, 0.0
        %1907 = vadd.xlane.f32.xlu0 %v1906
        %v1908 = vpop.xlane.xlu0 %1907
        %v1909 = vrcp.pop %v1908
        %v1910 = vmul.f32 %v1905, %v1909
        %v1912 = vsel %vm1219, %v1910, 0
        %1914 = vmatprep.subr.mxu0 0.0
        %1915 = vmatpush1.msra.mxu0 %v1138
        %1916 = vmatprep.subr.mxu0 0.0
        %1917 = vmatpush1.msra.mxu0 0.0
        %1918 = vmatprep.subr.mxu0 0.0
        %1919 = vmatpush1.msra.mxu0 0.0
        %1920 = vmatprep.subr.mxu0 0.0
        %1921 = vmatpush1.msra.mxu0 0.0
        %1922 = vmatprep.subr.mxu0 0.0
        %1923 = vmatpush1.msra.mxu0 0.0
        %1924 = vmatprep.subr.mxu0 0.0
        %1925 = vmatpush1.msra.mxu0 0.0
        %1926 = vmatprep.subr.mxu0 0.0
        %1927 = vmatpush1.msra.mxu0 0.0
        %1928 = vmatprep.subr.mxu0 0.0
        %1929 = vmatpush1.msra.mxu0 0.0
        %1930 = vmatprep.subr.mxu0 0.0
        %1931 = vmatpush1.msra.mxu0 0.0
        %1932 = vmatprep.subr.mxu0 0.0
        %1933 = vmatpush1.msra.mxu0 0.0
        %1934 = vmatprep.subr.mxu0 0.0
        %1935 = vmatpush1.msra.mxu0 0.0
        %1936 = vmatprep.subr.mxu0 0.0
        %1937 = vmatpush1.msra.mxu0 0.0
        %1938 = vmatprep.subr.mxu0 0.0
        %1939 = vmatpush1.msra.mxu0 0.0
        %1940 = vmatprep.subr.mxu0 0.0
        %1941 = vmatpush1.msra.mxu0 0.0
        %1942 = vmatprep.subr.mxu0 0.0
        %1943 = vmatpush1.msra.mxu0 0.0
        %1944 = vmatprep.subr.mxu0 0.0
        %1945 = vmatpush1.msra.mxu0 0.0
        %1946 = vmatprep.subr.mxu0 0.0
        %1947 = vmatpush1.msra.mxu0 0.0
        %1948 = vmatprep.subr.mxu0 0.0
        %1949 = vmatpush1.msra.mxu0 0.0
        %1950 = vmatprep.subr.mxu0 0.0
        %1951 = vmatpush1.msra.mxu0 0.0
        %1952 = vmatprep.subr.mxu0 0.0
        %1953 = vmatpush1.msra.mxu0 0.0
        %1954 = vmatprep.subr.mxu0 0.0
        %1955 = vmatpush1.msra.mxu0 0.0
        %1956 = vmatprep.subr.mxu0 0.0
        %1957 = vmatpush1.msra.mxu0 0.0
        %1958 = vmatprep.subr.mxu0 0.0
        %1959 = vmatpush1.msra.mxu0 0.0
        %1960 = vmatprep.subr.mxu0 0.0
        %1961 = vmatpush1.msra.mxu0 0.0
        %1962 = vmatprep.subr.mxu0 0.0
        %1963 = vmatpush1.msra.mxu0 0.0
        %1964 = vmatprep.subr.mxu0 0.0
        %1965 = vmatpush1.msra.mxu0 0.0
        %1966 = vmatprep.subr.mxu0 0.0
        %1967 = vmatpush1.msra.mxu0 0.0
        %1968 = vmatprep.subr.mxu0 0.0
        %1969 = vmatpush1.msra.mxu0 0.0
        %1970 = vmatprep.subr.mxu0 0.0
        %1971 = vmatpush1.msra.mxu0 0.0
        %1972 = vmatprep.subr.mxu0 0.0
        %1973 = vmatpush1.msra.mxu0 0.0
        %1974 = vmatprep.subr.mxu0 0.0
        %1975 = vmatpush1.msra.mxu0 0.0
        %1976 = vmatprep.subr.mxu0 0.0
        %1977 = vmatpush1.msra.mxu0 0.0
        %1978 = vmatprep.mubr.f32.mxu0 0.0
        %1979 = vmatmul.mubr.f32.gmra.mrb[0].mxu0 %v1912
        %v1980 = vpop.f32.mrb[0].mxu0
        %v1981 = vadd.f32 0.0, %v1980
        %v1982 = vpop.f32.mrb[0].mxu0
        %1983 = vdwg.mxu0
        %1984 = vst.msk [vmem:[#allocation3 + $0x8] sm:$0xff] %vm1143, %v1981
        %1985 = vrot.lane.b32.xlu0 %v1136, 112
        %v1986 = vpop.permute.xlu0 %1985
        %1987 = vrot.lane.b32.xlu0 %v1136, 48
        %v1988 = vpop.permute.xlu0 %1987
        %v1989 = vsel %vm1143, %v1986, 0
        %v1991 = vsel %vm1143, %v1988, 0
        %1993 = vmatprep.subr.mxu0 0.0
        %1994 = vmatpush1.xpose.msra.mxu0 %v1991
        %1995 = vmatprep.subr.mxu0 0.0
        %1996 = vmatpush1.xpose.msra.mxu0 0.0
        %1997 = vmatprep.subr.mxu0 0.0
        %1998 = vmatpush1.xpose.msra.mxu0 0.0
        %1999 = vmatprep.subr.mxu0 0.0
        %2000 = vmatpush1.xpose.msra.mxu0 0.0
        %2001 = vmatprep.subr.mxu0 0.0
        %2002 = vmatpush1.xpose.msra.mxu0 0.0
        %2003 = vmatprep.subr.mxu0 0.0
        %2004 = vmatpush1.xpose.msra.mxu0 0.0
        %2005 = vmatprep.subr.mxu0 0.0
        %2006 = vmatpush1.xpose.msra.mxu0 0.0
        %2007 = vmatprep.subr.mxu0 0.0
        %2008 = vmatpush1.xpose.msra.mxu0 0.0
        %2009 = vmatprep.subr.mxu0 0.0
        %2010 = vmatpush1.xpose.msra.mxu0 0.0
        %2011 = vmatprep.subr.mxu0 0.0
        %2012 = vmatpush1.xpose.msra.mxu0 0.0
        %2013 = vmatprep.subr.mxu0 0.0
        %2014 = vmatpush1.xpose.msra.mxu0 0.0
        %2015 = vmatprep.subr.mxu0 0.0
        %2016 = vmatpush1.xpose.msra.mxu0 0.0
        %2017 = vmatprep.subr.mxu0 0.0
        %2018 = vmatpush1.xpose.msra.mxu0 0.0
        %2019 = vmatprep.subr.mxu0 0.0
        %2020 = vmatpush1.xpose.msra.mxu0 0.0
        %2021 = vmatprep.subr.mxu0 0.0
        %2022 = vmatpush1.xpose.msra.mxu0 0.0
        %2023 = vmatprep.subr.mxu0 0.0
        %2024 = vmatpush1.xpose.msra.mxu0 0.0
        %2025 = vmatprep.subr.mxu0 0.0
        %2026 = vmatpush1.xpose.msra.mxu0 0.0
        %2027 = vmatprep.subr.mxu0 0.0
        %2028 = vmatpush1.xpose.msra.mxu0 0.0
        %2029 = vmatprep.subr.mxu0 0.0
        %2030 = vmatpush1.xpose.msra.mxu0 0.0
        %2031 = vmatprep.subr.mxu0 0.0
        %2032 = vmatpush1.xpose.msra.mxu0 0.0
        %2033 = vmatprep.subr.mxu0 0.0
        %2034 = vmatpush1.xpose.msra.mxu0 0.0
        %2035 = vmatprep.subr.mxu0 0.0
        %2036 = vmatpush1.xpose.msra.mxu0 0.0
        %2037 = vmatprep.subr.mxu0 0.0
        %2038 = vmatpush1.xpose.msra.mxu0 0.0
        %2039 = vmatprep.subr.mxu0 0.0
        %2040 = vmatpush1.xpose.msra.mxu0 0.0
        %2041 = vmatprep.subr.mxu0 0.0
        %2042 = vmatpush1.xpose.msra.mxu0 0.0
        %2043 = vmatprep.subr.mxu0 0.0
        %2044 = vmatpush1.xpose.msra.mxu0 0.0
        %2045 = vmatprep.subr.mxu0 0.0
        %2046 = vmatpush1.xpose.msra.mxu0 0.0
        %2047 = vmatprep.subr.mxu0 0.0
        %2048 = vmatpush1.xpose.msra.mxu0 0.0
        %2049 = vmatprep.subr.mxu0 0.0
        %2050 = vmatpush1.xpose.msra.mxu0 0.0
        %2051 = vmatprep.subr.mxu0 0.0
        %2052 = vmatpush1.xpose.msra.mxu0 0.0
        %2053 = vmatprep.subr.mxu0 0.0
        %2054 = vmatpush1.xpose.msra.mxu0 0.0
        %2055 = vmatprep.subr.mxu0 0.0
        %2056 = vmatpush1.xpose.msra.mxu0 0.0
        %2057 = vmatprep.mubr.f32.mxu0 0.0
        %2058 = vmatmul.mubr.f32.gmra.mrb[0].mxu0 %v1989
        %v2059 = vpop.f32.mrb[0].mxu0
        %v2060 = vadd.f32 0.0, %v2059
        %v2061 = vpop.f32.mrb[0].mxu0
        %2062 = vdwg.mxu0
        %v2063 = vmul.f32 %v2060, 0.25
        %v2064 = vsel %vm1219, %v2063, -inf
        %2065 = vmax.xlane.f32.xlu0 %v2064
        %v2066 = vpop.xlane.xlu0 %2065
        %v2067 = vsub.f32 %v2063, %v2066
        %v2068 = vmul.f32 %v2067, 1.442695
        %v2069 = vpow.pop %v2068
        %v2070 = vsel %vm1219, %v2069, 0.0
        %2071 = vadd.xlane.f32.xlu0 %v2070
        %v2072 = vpop.xlane.xlu0 %2071
        %v2073 = vrcp.pop %v2072
        %v2074 = vmul.f32 %v2069, %v2073
        %2076 = vrot.lane.b32.xlu0 %v1138, 112
        %v2077 = vpop.permute.xlu0 %2076
        %v2080 = vsel %vm1219, %v2074, 0
        %2082 = vmatprep.subr.mxu0 0.0
        %2083 = vmatpush1.msra.mxu0 %v2077
        %2084 = vmatprep.subr.mxu0 0.0
        %2085 = vmatpush1.msra.mxu0 0.0
        %2086 = vmatprep.subr.mxu0 0.0
        %2087 = vmatpush1.msra.mxu0 0.0
        %2088 = vmatprep.subr.mxu0 0.0
        %2089 = vmatpush1.msra.mxu0 0.0
        %2090 = vmatprep.subr.mxu0 0.0
        %2091 = vmatpush1.msra.mxu0 0.0
        %2092 = vmatprep.subr.mxu0 0.0
        %2093 = vmatpush1.msra.mxu0 0.0
        %2094 = vmatprep.subr.mxu0 0.0
        %2095 = vmatpush1.msra.mxu0 0.0
        %2096 = vmatprep.subr.mxu0 0.0
        %2097 = vmatpush1.msra.mxu0 0.0
        %2098 = vmatprep.subr.mxu0 0.0
        %2099 = vmatpush1.msra.mxu0 0.0
        %2100 = vmatprep.subr.mxu0 0.0
        %2101 = vmatpush1.msra.mxu0 0.0
        %2102 = vmatprep.subr.mxu0 0.0
        %2103 = vmatpush1.msra.mxu0 0.0
        %2104 = vmatprep.subr.mxu0 0.0
        %2105 = vmatpush1.msra.mxu0 0.0
        %2106 = vmatprep.subr.mxu0 0.0
        %2107 = vmatpush1.msra.mxu0 0.0
        %2108 = vmatprep.subr.mxu0 0.0
        %2109 = vmatpush1.msra.mxu0 0.0
        %2110 = vmatprep.subr.mxu0 0.0
        %2111 = vmatpush1.msra.mxu0 0.0
        %2112 = vmatprep.subr.mxu0 0.0
        %2113 = vmatpush1.msra.mxu0 0.0
        %2114 = vmatprep.subr.mxu0 0.0
        %2115 = vmatpush1.msra.mxu0 0.0
        %2116 = vmatprep.subr.mxu0 0.0
        %2117 = vmatpush1.msra.mxu0 0.0
        %2118 = vmatprep.subr.mxu0 0.0
        %2119 = vmatpush1.msra.mxu0 0.0
        %2120 = vmatprep.subr.mxu0 0.0
        %2121 = vmatpush1.msra.mxu0 0.0
        %2122 = vmatprep.subr.mxu0 0.0
        %2123 = vmatpush1.msra.mxu0 0.0
        %2124 = vmatprep.subr.mxu0 0.0
        %2125 = vmatpush1.msra.mxu0 0.0
        %2126 = vmatprep.subr.mxu0 0.0
        %2127 = vmatpush1.msra.mxu0 0.0
        %2128 = vmatprep.subr.mxu0 0.0
        %2129 = vmatpush1.msra.mxu0 0.0
        %2130 = vmatprep.subr.mxu0 0.0
        %2131 = vmatpush1.msra.mxu0 0.0
        %2132 = vmatprep.subr.mxu0 0.0
        %2133 = vmatpush1.msra.mxu0 0.0
        %2134 = vmatprep.subr.mxu0 0.0
        %2135 = vmatpush1.msra.mxu0 0.0
        %2136 = vmatprep.subr.mxu0 0.0
        %2137 = vmatpush1.msra.mxu0 0.0
        %2138 = vmatprep.subr.mxu0 0.0
        %2139 = vmatpush1.msra.mxu0 0.0
        %2140 = vmatprep.subr.mxu0 0.0
        %2141 = vmatpush1.msra.mxu0 0.0
        %2142 = vmatprep.subr.mxu0 0.0
        %2143 = vmatpush1.msra.mxu0 0.0
        %2144 = vmatprep.subr.mxu0 0.0
        %2145 = vmatpush1.msra.mxu0 0.0
        %2146 = vmatprep.mubr.f32.mxu0 0.0
        %2147 = vmatmul.mubr.f32.gmra.mrb[0].mxu0 %v2080
        %v2148 = vpop.f32.mrb[0].mxu0
        %v2149 = vadd.f32 0.0, %v2148
        %v2150 = vpop.f32.mrb[0].mxu0
        %2151 = vdwg.mxu0
        %2153 = vrot.lane.b32.xlu0 %v2149, 16
        %v2154 = vpop.permute.xlu0 %2153
        %2156 = vst.msk [vmem:[#allocation3 + $0x8] sm:$0xff] %vm1476, %v2154
        %2157 = vrot.lane.b32.xlu0 %v1136, 96
        %v2158 = vpop.permute.xlu0 %2157
        %2159 = vrot.lane.b32.xlu0 %v1136, 32
        %v2160 = vpop.permute.xlu0 %2159
        %v2161 = vsel %vm1143, %v2158, 0
        %v2163 = vsel %vm1143, %v2160, 0
        %2165 = vmatprep.subr.mxu0 0.0
        %2166 = vmatpush1.xpose.msra.mxu0 %v2163
        %2167 = vmatprep.subr.mxu0 0.0
        %2168 = vmatpush1.xpose.msra.mxu0 0.0
        %2169 = vmatprep.subr.mxu0 0.0
        %2170 = vmatpush1.xpose.msra.mxu0 0.0
        %2171 = vmatprep.subr.mxu0 0.0
        %2172 = vmatpush1.xpose.msra.mxu0 0.0
        %2173 = vmatprep.subr.mxu0 0.0
        %2174 = vmatpush1.xpose.msra.mxu0 0.0
        %2175 = vmatprep.subr.mxu0 0.0
        %2176 = vmatpush1.xpose.msra.mxu0 0.0
        %2177 = vmatprep.subr.mxu0 0.0
        %2178 = vmatpush1.xpose.msra.mxu0 0.0
        %2179 = vmatprep.subr.mxu0 0.0
        %2180 = vmatpush1.xpose.msra.mxu0 0.0
        %2181 = vmatprep.subr.mxu0 0.0
        %2182 = vmatpush1.xpose.msra.mxu0 0.0
        %2183 = vmatprep.subr.mxu0 0.0
        %2184 = vmatpush1.xpose.msra.mxu0 0.0
        %2185 = vmatprep.subr.mxu0 0.0
        %2186 = vmatpush1.xpose.msra.mxu0 0.0
        %2187 = vmatprep.subr.mxu0 0.0
        %2188 = vmatpush1.xpose.msra.mxu0 0.0
        %2189 = vmatprep.subr.mxu0 0.0
        %2190 = vmatpush1.xpose.msra.mxu0 0.0
        %2191 = vmatprep.subr.mxu0 0.0
        %2192 = vmatpush1.xpose.msra.mxu0 0.0
        %2193 = vmatprep.subr.mxu0 0.0
        %2194 = vmatpush1.xpose.msra.mxu0 0.0
        %2195 = vmatprep.subr.mxu0 0.0
        %2196 = vmatpush1.xpose.msra.mxu0 0.0
        %2197 = vmatprep.subr.mxu0 0.0
        %2198 = vmatpush1.xpose.msra.mxu0 0.0
        %2199 = vmatprep.subr.mxu0 0.0
        %2200 = vmatpush1.xpose.msra.mxu0 0.0
        %2201 = vmatprep.subr.mxu0 0.0
        %2202 = vmatpush1.xpose.msra.mxu0 0.0
        %2203 = vmatprep.subr.mxu0 0.0
        %2204 = vmatpush1.xpose.msra.mxu0 0.0
        %2205 = vmatprep.subr.mxu0 0.0
        %2206 = vmatpush1.xpose.msra.mxu0 0.0
        %2207 = vmatprep.subr.mxu0 0.0
        %2208 = vmatpush1.xpose.msra.mxu0 0.0
        %2209 = vmatprep.subr.mxu0 0.0
        %2210 = vmatpush1.xpose.msra.mxu0 0.0
        %2211 = vmatprep.subr.mxu0 0.0
        %2212 = vmatpush1.xpose.msra.mxu0 0.0
        %2213 = vmatprep.subr.mxu0 0.0
        %2214 = vmatpush1.xpose.msra.mxu0 0.0
        %2215 = vmatprep.subr.mxu0 0.0
        %2216 = vmatpush1.xpose.msra.mxu0 0.0
        %2217 = vmatprep.subr.mxu0 0.0
        %2218 = vmatpush1.xpose.msra.mxu0 0.0
        %2219 = vmatprep.subr.mxu0 0.0
        %2220 = vmatpush1.xpose.msra.mxu0 0.0
        %2221 = vmatprep.subr.mxu0 0.0
        %2222 = vmatpush1.xpose.msra.mxu0 0.0
        %2223 = vmatprep.subr.mxu0 0.0
        %2224 = vmatpush1.xpose.msra.mxu0 0.0
        %2225 = vmatprep.subr.mxu0 0.0
        %2226 = vmatpush1.xpose.msra.mxu0 0.0
        %2227 = vmatprep.subr.mxu0 0.0
        %2228 = vmatpush1.xpose.msra.mxu0 0.0
        %2229 = vmatprep.mubr.f32.mxu0 0.0
        %2230 = vmatmul.mubr.f32.gmra.mrb[0].mxu0 %v2161
        %v2231 = vpop.f32.mrb[0].mxu0
        %v2232 = vadd.f32 0.0, %v2231
        %v2233 = vpop.f32.mrb[0].mxu0
        %2234 = vdwg.mxu0
        %v2235 = vmul.f32 %v2232, 0.25
        %v2236 = vsel %vm1219, %v2235, -inf
        %2237 = vmax.xlane.f32.xlu0 %v2236
        %v2238 = vpop.xlane.xlu0 %2237
        %v2239 = vsub.f32 %v2235, %v2238
        %v2240 = vmul.f32 %v2239, 1.442695
        %v2241 = vpow.pop %v2240
        %v2242 = vsel %vm1219, %v2241, 0.0
        %2243 = vadd.xlane.f32.xlu0 %v2242
        %v2244 = vpop.xlane.xlu0 %2243
        %v2245 = vrcp.pop %v2244
        %v2246 = vmul.f32 %v2241, %v2245
        %2247 = vrot.lane.b32.xlu0 %v1138, 96
        %v2248 = vpop.permute.xlu0 %2247
        %v2251 = vsel %vm1219, %v2246, 0
        %2253 = vmatprep.subr.mxu0 0.0
        %2254 = vmatpush1.msra.mxu0 %v2248
        %2255 = vmatprep.subr.mxu0 0.0
        %2256 = vmatpush1.msra.mxu0 0.0
        %2257 = vmatprep.subr.mxu0 0.0
        %2258 = vmatpush1.msra.mxu0 0.0
        %2259 = vmatprep.subr.mxu0 0.0
        %2260 = vmatpush1.msra.mxu0 0.0
        %2261 = vmatprep.subr.mxu0 0.0
        %2262 = vmatpush1.msra.mxu0 0.0
        %2263 = vmatprep.subr.mxu0 0.0
        %2264 = vmatpush1.msra.mxu0 0.0
        %2265 = vmatprep.subr.mxu0 0.0
        %2266 = vmatpush1.msra.mxu0 0.0
        %2267 = vmatprep.subr.mxu0 0.0
        %2268 = vmatpush1.msra.mxu0 0.0
        %2269 = vmatprep.subr.mxu0 0.0
        %2270 = vmatpush1.msra.mxu0 0.0
        %2271 = vmatprep.subr.mxu0 0.0
        %2272 = vmatpush1.msra.mxu0 0.0
        %2273 = vmatprep.subr.mxu0 0.0
        %2274 = vmatpush1.msra.mxu0 0.0
        %2275 = vmatprep.subr.mxu0 0.0
        %2276 = vmatpush1.msra.mxu0 0.0
        %2277 = vmatprep.subr.mxu0 0.0
        %2278 = vmatpush1.msra.mxu0 0.0
        %2279 = vmatprep.subr.mxu0 0.0
        %2280 = vmatpush1.msra.mxu0 0.0
        %2281 = vmatprep.subr.mxu0 0.0
        %2282 = vmatpush1.msra.mxu0 0.0
        %2283 = vmatprep.subr.mxu0 0.0
        %2284 = vmatpush1.msra.mxu0 0.0
        %2285 = vmatprep.subr.mxu0 0.0
        %2286 = vmatpush1.msra.mxu0 0.0
        %2287 = vmatprep.subr.mxu0 0.0
        %2288 = vmatpush1.msra.mxu0 0.0
        %2289 = vmatprep.subr.mxu0 0.0
        %2290 = vmatpush1.msra.mxu0 0.0
        %2291 = vmatprep.subr.mxu0 0.0
        %2292 = vmatpush1.msra.mxu0 0.0
        %2293 = vmatprep.subr.mxu0 0.0
        %2294 = vmatpush1.msra.mxu0 0.0
        %2295 = vmatprep.subr.mxu0 0.0
        %2296 = vmatpush1.msra.mxu0 0.0
        %2297 = vmatprep.subr.mxu0 0.0
        %2298 = vmatpush1.msra.mxu0 0.0
        %2299 = vmatprep.subr.mxu0 0.0
        %2300 = vmatpush1.msra.mxu0 0.0
        %2301 = vmatprep.subr.mxu0 0.0
        %2302 = vmatpush1.msra.mxu0 0.0
        %2303 = vmatprep.subr.mxu0 0.0
        %2304 = vmatpush1.msra.mxu0 0.0
        %2305 = vmatprep.subr.mxu0 0.0
        %2306 = vmatpush1.msra.mxu0 0.0
        %2307 = vmatprep.subr.mxu0 0.0
        %2308 = vmatpush1.msra.mxu0 0.0
        %2309 = vmatprep.subr.mxu0 0.0
        %2310 = vmatpush1.msra.mxu0 0.0
        %2311 = vmatprep.subr.mxu0 0.0
        %2312 = vmatpush1.msra.mxu0 0.0
        %2313 = vmatprep.subr.mxu0 0.0
        %2314 = vmatpush1.msra.mxu0 0.0
        %2315 = vmatprep.subr.mxu0 0.0
        %2316 = vmatpush1.msra.mxu0 0.0
        %2317 = vmatprep.mubr.f32.mxu0 0.0
        %2318 = vmatmul.mubr.f32.gmra.mrb[0].mxu0 %v2251
        %v2319 = vpop.f32.mrb[0].mxu0
        %v2320 = vadd.f32 0.0, %v2319
        %v2321 = vpop.f32.mrb[0].mxu0
        %2322 = vdwg.mxu0
        %2324 = vrot.lane.b32.xlu0 %v2320, 32
        %v2325 = vpop.permute.xlu0 %2324
        %2327 = vst.msk [vmem:[#allocation3 + $0x8] sm:$0xff] %vm1648, %v2325
        %2328 = vrot.lane.b32.xlu0 %v1136, 80
        %v2329 = vpop.permute.xlu0 %2328
        %2330 = vrot.lane.b32.xlu0 %v1136, 16
        %v2331 = vpop.permute.xlu0 %2330
        %v2332 = vsel %vm1143, %v2329, 0
        %v2334 = vsel %vm1143, %v2331, 0
        %2336 = vmatprep.subr.mxu0 0.0
        %2337 = vmatpush1.xpose.msra.mxu0 %v2334
        %2338 = vmatprep.subr.mxu0 0.0
        %2339 = vmatpush1.xpose.msra.mxu0 0.0
        %2340 = vmatprep.subr.mxu0 0.0
        %2341 = vmatpush1.xpose.msra.mxu0 0.0
        %2342 = vmatprep.subr.mxu0 0.0
        %2343 = vmatpush1.xpose.msra.mxu0 0.0
        %2344 = vmatprep.subr.mxu0 0.0
        %2345 = vmatpush1.xpose.msra.mxu0 0.0
        %2346 = vmatprep.subr.mxu0 0.0
        %2347 = vmatpush1.xpose.msra.mxu0 0.0
        %2348 = vmatprep.subr.mxu0 0.0
        %2349 = vmatpush1.xpose.msra.mxu0 0.0
        %2350 = vmatprep.subr.mxu0 0.0
        %2351 = vmatpush1.xpose.msra.mxu0 0.0
        %2352 = vmatprep.subr.mxu0 0.0
        %2353 = vmatpush1.xpose.msra.mxu0 0.0
        %2354 = vmatprep.subr.mxu0 0.0
        %2355 = vmatpush1.xpose.msra.mxu0 0.0
        %2356 = vmatprep.subr.mxu0 0.0
        %2357 = vmatpush1.xpose.msra.mxu0 0.0
        %2358 = vmatprep.subr.mxu0 0.0
        %2359 = vmatpush1.xpose.msra.mxu0 0.0
        %2360 = vmatprep.subr.mxu0 0.0
        %2361 = vmatpush1.xpose.msra.mxu0 0.0
        %2362 = vmatprep.subr.mxu0 0.0
        %2363 = vmatpush1.xpose.msra.mxu0 0.0
        %2364 = vmatprep.subr.mxu0 0.0
        %2365 = vmatpush1.xpose.msra.mxu0 0.0
        %2366 = vmatprep.subr.mxu0 0.0
        %2367 = vmatpush1.xpose.msra.mxu0 0.0
        %2368 = vmatprep.subr.mxu0 0.0
        %2369 = vmatpush1.xpose.msra.mxu0 0.0
        %2370 = vmatprep.subr.mxu0 0.0
        %2371 = vmatpush1.xpose.msra.mxu0 0.0
        %2372 = vmatprep.subr.mxu0 0.0
        %2373 = vmatpush1.xpose.msra.mxu0 0.0
        %2374 = vmatprep.subr.mxu0 0.0
        %2375 = vmatpush1.xpose.msra.mxu0 0.0
        %2376 = vmatprep.subr.mxu0 0.0
        %2377 = vmatpush1.xpose.msra.mxu0 0.0
        %2378 = vmatprep.subr.mxu0 0.0
        %2379 = vmatpush1.xpose.msra.mxu0 0.0
        %2380 = vmatprep.subr.mxu0 0.0
        %2381 = vmatpush1.xpose.msra.mxu0 0.0
        %2382 = vmatprep.subr.mxu0 0.0
        %2383 = vmatpush1.xpose.msra.mxu0 0.0
        %2384 = vmatprep.subr.mxu0 0.0
        %2385 = vmatpush1.xpose.msra.mxu0 0.0
        %2386 = vmatprep.subr.mxu0 0.0
        %2387 = vmatpush1.xpose.msra.mxu0 0.0
        %2388 = vmatprep.subr.mxu0 0.0
        %2389 = vmatpush1.xpose.msra.mxu0 0.0
        %2390 = vmatprep.subr.mxu0 0.0
        %2391 = vmatpush1.xpose.msra.mxu0 0.0
        %2392 = vmatprep.subr.mxu0 0.0
        %2393 = vmatpush1.xpose.msra.mxu0 0.0
        %2394 = vmatprep.subr.mxu0 0.0
        %2395 = vmatpush1.xpose.msra.mxu0 0.0
        %2396 = vmatprep.subr.mxu0 0.0
        %2397 = vmatpush1.xpose.msra.mxu0 0.0
        %2398 = vmatprep.subr.mxu0 0.0
        %2399 = vmatpush1.xpose.msra.mxu0 0.0
        %2400 = vmatprep.mubr.f32.mxu0 0.0
        %2401 = vmatmul.mubr.f32.gmra.mrb[0].mxu0 %v2332
        %v2402 = vpop.f32.mrb[0].mxu0
        %v2403 = vadd.f32 0.0, %v2402
        %v2404 = vpop.f32.mrb[0].mxu0
        %2405 = vdwg.mxu0
        %v2406 = vmul.f32 %v2403, 0.25
        %v2407 = vsel %vm1219, %v2406, -inf
        %2408 = vmax.xlane.f32.xlu0 %v2407
        %v2409 = vpop.xlane.xlu0 %2408
        %v2410 = vsub.f32 %v2406, %v2409
        %v2411 = vmul.f32 %v2410, 1.442695
        %v2412 = vpow.pop %v2411
        %v2413 = vsel %vm1219, %v2412, 0.0
        %2414 = vadd.xlane.f32.xlu0 %v2413
        %v2415 = vpop.xlane.xlu0 %2414
        %v2416 = vrcp.pop %v2415
        %v2417 = vmul.f32 %v2412, %v2416
        %2418 = vrot.lane.b32.xlu0 %v1138, 80
        %v2419 = vpop.permute.xlu0 %2418
        %v2422 = vsel %vm1219, %v2417, 0
        %2424 = vmatprep.subr.mxu0 0.0
        %2425 = vmatpush1.msra.mxu0 %v2419
        %2426 = vmatprep.subr.mxu0 0.0
        %2427 = vmatpush1.msra.mxu0 0.0
        %2428 = vmatprep.subr.mxu0 0.0
        %2429 = vmatpush1.msra.mxu0 0.0
        %2430 = vmatprep.subr.mxu0 0.0
        %2431 = vmatpush1.msra.mxu0 0.0
        %2432 = vmatprep.subr.mxu0 0.0
        %2433 = vmatpush1.msra.mxu0 0.0
        %2434 = vmatprep.subr.mxu0 0.0
        %2435 = vmatpush1.msra.mxu0 0.0
        %2436 = vmatprep.subr.mxu0 0.0
        %2437 = vmatpush1.msra.mxu0 0.0
        %2438 = vmatprep.subr.mxu0 0.0
        %2439 = vmatpush1.msra.mxu0 0.0
        %2440 = vmatprep.subr.mxu0 0.0
        %2441 = vmatpush1.msra.mxu0 0.0
        %2442 = vmatprep.subr.mxu0 0.0
        %2443 = vmatpush1.msra.mxu0 0.0
        %2444 = vmatprep.subr.mxu0 0.0
        %2445 = vmatpush1.msra.mxu0 0.0
        %2446 = vmatprep.subr.mxu0 0.0
        %2447 = vmatpush1.msra.mxu0 0.0
        %2448 = vmatprep.subr.mxu0 0.0
        %2449 = vmatpush1.msra.mxu0 0.0
        %2450 = vmatprep.subr.mxu0 0.0
        %2451 = vmatpush1.msra.mxu0 0.0
        %2452 = vmatprep.subr.mxu0 0.0
        %2453 = vmatpush1.msra.mxu0 0.0
        %2454 = vmatprep.subr.mxu0 0.0
        %2455 = vmatpush1.msra.mxu0 0.0
        %2456 = vmatprep.subr.mxu0 0.0
        %2457 = vmatpush1.msra.mxu0 0.0
        %2458 = vmatprep.subr.mxu0 0.0
        %2459 = vmatpush1.msra.mxu0 0.0
        %2460 = vmatprep.subr.mxu0 0.0
        %2461 = vmatpush1.msra.mxu0 0.0
        %2462 = vmatprep.subr.mxu0 0.0
        %2463 = vmatpush1.msra.mxu0 0.0
        %2464 = vmatprep.subr.mxu0 0.0
        %2465 = vmatpush1.msra.mxu0 0.0
        %2466 = vmatprep.subr.mxu0 0.0
        %2467 = vmatpush1.msra.mxu0 0.0
        %2468 = vmatprep.subr.mxu0 0.0
        %2469 = vmatpush1.msra.mxu0 0.0
        %2470 = vmatprep.subr.mxu0 0.0
        %2471 = vmatpush1.msra.mxu0 0.0
        %2472 = vmatprep.subr.mxu0 0.0
        %2473 = vmatpush1.msra.mxu0 0.0
        %2474 = vmatprep.subr.mxu0 0.0
        %2475 = vmatpush1.msra.mxu0 0.0
        %2476 = vmatprep.subr.mxu0 0.0
        %2477 = vmatpush1.msra.mxu0 0.0
        %2478 = vmatprep.subr.mxu0 0.0
        %2479 = vmatpush1.msra.mxu0 0.0
        %2480 = vmatprep.subr.mxu0 0.0
        %2481 = vmatpush1.msra.mxu0 0.0
        %2482 = vmatprep.subr.mxu0 0.0
        %2483 = vmatpush1.msra.mxu0 0.0
        %2484 = vmatprep.subr.mxu0 0.0
        %2485 = vmatpush1.msra.mxu0 0.0
        %2486 = vmatprep.subr.mxu0 0.0
        %2487 = vmatpush1.msra.mxu0 0.0
        %2488 = vmatprep.mubr.f32.mxu0 0.0
        %2489 = vmatmul.mubr.f32.gmra.mrb[0].mxu0 %v2422
        %v2490 = vpop.f32.mrb[0].mxu0
        %v2491 = vadd.f32 0.0, %v2490
        %v2492 = vpop.f32.mrb[0].mxu0
        %2493 = vdwg.mxu0
        %2495 = vrot.lane.b32.xlu0 %v2491, 48
        %v2496 = vpop.permute.xlu0 %2495
        %2498 = vst.msk [vmem:[#allocation3 + $0x8] sm:$0xff] %vm1820, %v2496
        %v2499 = vld [vmem:[#allocation3] sm:$0xff]
        %v2500 = vld [vmem:[#allocation3 + $0x8] sm:$0xff]
        %v2501 = vld [vmem:[%s767] sm:$0xff]
        %v2502 = vld [vmem:[%s767 + $0x8] sm:$0xff]
        %v2503 = vld [vmem:[%s767 + $0x10] sm:$0xff]
        %v2504 = vld [vmem:[%s767 + $0x18] sm:$0xff]
        %v2505 = vld [vmem:[%s767 + $0x20] sm:$0xff]
        %v2506 = vld [vmem:[%s767 + $0x28] sm:$0xff]
        %v2507 = vld [vmem:[%s767 + $0x30] sm:$0xff]
        %v2508 = vld [vmem:[%s767 + $0x38] sm:$0xff]
        %vm2509 = vcmask 523264
        %v2511 = vsel %vm2509, %v2499, 0
        %v2514 = vsel %vm2509, %v2500, 0
        %2516 = vmatprep.subr.mxu0 0.0
        %2517 = vmatpush1.msra.mxu0 %v2501
        %2518 = vmatprep.subr.mxu0 0.0
        %2519 = vmatpush1.msra.mxu0 %v2502
        %2520 = vmatprep.subr.mxu0 0.0
        %2521 = vmatpush1.msra.mxu0 %v2503
        %2522 = vmatprep.subr.mxu0 0.0
        %2523 = vmatpush1.msra.mxu0 %v2504
        %2524 = vmatprep.subr.mxu0 0.0
        %2525 = vmatpush1.msra.mxu0 %v2505
        %2526 = vmatprep.subr.mxu0 0.0
        %2527 = vmatpush1.msra.mxu0 %v2506
        %2528 = vmatprep.subr.mxu0 0.0
        %2529 = vmatpush1.msra.mxu0 %v2507
        %2530 = vmatprep.subr.mxu0 0.0
        %2531 = vmatpush1.msra.mxu0 %v2508
        %2532 = vmatprep.subr.mxu0 0.0
        %2533 = vmatpush1.msra.mxu0 0.0
        %2534 = vmatprep.subr.mxu0 0.0
        %2535 = vmatpush1.msra.mxu0 0.0
        %2536 = vmatprep.subr.mxu0 0.0
        %2537 = vmatpush1.msra.mxu0 0.0
        %2538 = vmatprep.subr.mxu0 0.0
        %2539 = vmatpush1.msra.mxu0 0.0
        %2540 = vmatprep.subr.mxu0 0.0
        %2541 = vmatpush1.msra.mxu0 0.0
        %2542 = vmatprep.subr.mxu0 0.0
        %2543 = vmatpush1.msra.mxu0 0.0
        %2544 = vmatprep.subr.mxu0 0.0
        %2545 = vmatpush1.msra.mxu0 0.0
        %2546 = vmatprep.subr.mxu0 0.0
        %2547 = vmatpush1.msra.mxu0 0.0
        %2548 = vmatprep.subr.mxu0 0.0
        %2549 = vmatpush1.msra.mxu0 0.0
        %2550 = vmatprep.subr.mxu0 0.0
        %2551 = vmatpush1.msra.mxu0 0.0
        %2552 = vmatprep.subr.mxu0 0.0
        %2553 = vmatpush1.msra.mxu0 0.0
        %2554 = vmatprep.subr.mxu0 0.0
        %2555 = vmatpush1.msra.mxu0 0.0
        %2556 = vmatprep.subr.mxu0 0.0
        %2557 = vmatpush1.msra.mxu0 0.0
        %2558 = vmatprep.subr.mxu0 0.0
        %2559 = vmatpush1.msra.mxu0 0.0
        %2560 = vmatprep.subr.mxu0 0.0
        %2561 = vmatpush1.msra.mxu0 0.0
        %2562 = vmatprep.subr.mxu0 0.0
        %2563 = vmatpush1.msra.mxu0 0.0
        %2564 = vmatprep.subr.mxu0 0.0
        %2565 = vmatpush1.msra.mxu0 0.0
        %2566 = vmatprep.subr.mxu0 0.0
        %2567 = vmatpush1.msra.mxu0 0.0
        %2568 = vmatprep.subr.mxu0 0.0
        %2569 = vmatpush1.msra.mxu0 0.0
        %2570 = vmatprep.subr.mxu0 0.0
        %2571 = vmatpush1.msra.mxu0 0.0
        %2572 = vmatprep.subr.mxu0 0.0
        %2573 = vmatpush1.msra.mxu0 0.0
        %2574 = vmatprep.subr.mxu0 0.0
        %2575 = vmatpush1.msra.mxu0 0.0
        %2576 = vmatprep.subr.mxu0 0.0
        %2577 = vmatpush1.msra.mxu0 0.0
        %2578 = vmatprep.subr.mxu0 0.0
        %2579 = vmatpush1.msra.mxu0 0.0
        %2580 = vmatprep.mubr.f32.mxu0 0.0
        %2581 = vmatmul.mubr.f32.gmra.mrb[0].mxu0 %v2511
        %v2582 = vpop.f32.mrb[0].mxu0
        %v2583 = vadd.f32 0.0, %v2582
        %v2584 = vpop.f32.mrb[0].mxu0
        %2585 = vmatprep.mubr.f32.mxu0 0.0
        %2586 = vmatmul.mubr.f32.gmra.mrb[0].mxu0 %v2514
        %v2587 = vpop.f32.mrb[0].mxu0
        %v2588 = vadd.f32 0.0, %v2587
        %v2589 = vpop.f32.mrb[0].mxu0
        %2590 = vdwg.mxu0
        %v2591 = vadd.f32 %v997, %v2583
        %v2592 = vadd.f32 %v998, %v2588
        %v2593 = vld [vmem:[%s770] sm:$0x1]
        %v2595 = vlaneseq
        %v2596 = vshrl.u32 %v2595, 7
        %v2597 = vsub.s32 0, %v2596
        %v2598 = vrot.slane %v2593, %v2597
        %v2600 = vadd.f32 %v2591, %v2598
        %v2601 = vadd.f32 %v2592, %v2598
        %v2602 = vld [vmem:[%s773] sm:$0x1]
        %v2603 = vld [vmem:[%s776] sm:$0x1]
        %v2604 = vsel %vm1001, %v2600, 0.0
        %2605 = vadd.xlane.f32.xlu0 %v2604
        %v2606 = vpop.xlane.xlu0 %2605
        %v2607 = vsel %vm1001, %v2601, 0.0
        %2608 = vadd.xlane.f32.xlu0 %v2607
        %v2609 = vpop.xlane.xlu0 %2608
        %v2610 = vmul.f32 %v2606, %v1008
        %v2611 = vmul.f32 %v2609, %v1008
        %v2612 = vsub.f32 %v2600, %v2610
        %v2613 = vsub.f32 %v2601, %v2611
        %v2614 = vmul.f32 %v2612, %v2612
        %v2615 = vmul.f32 %v2613, %v2613
        %v2616 = vsel %vm1001, %v2614, 0.0
        %2617 = vadd.xlane.f32.xlu0 %v2616
        %v2618 = vpop.xlane.xlu0 %2617
        %v2619 = vsel %vm1001, %v2615, 0.0
        %2620 = vadd.xlane.f32.xlu0 %v2619
        %v2621 = vpop.xlane.xlu0 %2620
        %v2622 = vmul.f32 %v2618, %v1008
        %v2623 = vmul.f32 %v2621, %v1008
        %v2624 = vadd.f32 %v2622, 1e-05
        %v2625 = vadd.f32 %v2623, 1e-05
        %v2626 = vrsqrt.pop %v2624
        %v2627 = vrsqrt.pop %v2625
        %v2628 = vmul.f32 %v2612, %v2626
        %v2629 = vmul.f32 %v2613, %v2627
        %v2631 = vlaneseq
        %v2632 = vshrl.u32 %v2631, 7
        %v2633 = vsub.s32 0, %v2632
        %v2634 = vrot.slane %v2602, %v2633
        %v2636 = vmul.f32 %v2628, %v2634
        %v2637 = vmul.f32 %v2629, %v2634
        %v2639 = vlaneseq
        %v2640 = vshrl.u32 %v2639, 7
        %v2641 = vsub.s32 0, %v2640
        %v2642 = vrot.slane %v2603, %v2641
        %v2644 = vadd.f32 %v2636, %v2642
        %v2645 = vadd.f32 %v2637, %v2642
        %v2646 = vld [vmem:[%s781] sm:$0xff]
        %v2647 = vld [vmem:[%s781 + $0x8] sm:$0xff]
        %v2648 = vld [vmem:[%s781 + $0x10] sm:$0xff]
        %v2649 = vld [vmem:[%s781 + $0x18] sm:$0xff]
        %v2650 = vld [vmem:[%s781 + $0x20] sm:$0xff]
        %v2651 = vld [vmem:[%s781 + $0x28] sm:$0xff]
        %v2652 = vld [vmem:[%s784] sm:$0x1]
        %v2654 = vlaneseq
        %v2655 = vshrl.u32 %v2654, 7
        %v2656 = vsub.s32 0, %v2655
        %v2657 = vrot.slane %v2652, %v2656
        %v2660 = vsel %vm1001, %v2644, 0
        %v2663 = vsel %vm1001, %v2645, 0
        %2665 = vmatprep.subr.mxu0 0.0
        %2666 = vmatpush1.msra.mxu0 %v2646
        %2667 = vmatprep.subr.mxu0 0.0
        %2668 = vmatpush1.msra.mxu0 %v2647
        %2669 = vmatprep.subr.mxu0 0.0
        %2670 = vmatpush1.msra.mxu0 %v2648
        %2671 = vmatprep.subr.mxu0 0.0
        %2672 = vmatpush1.msra.mxu0 %v2649
        %2673 = vmatprep.subr.mxu0 0.0
        %2674 = vmatpush1.msra.mxu0 %v2650
        %2675 = vmatprep.subr.mxu0 0.0
        %2676 = vmatpush1.msra.mxu0 %v2651
        %2677 = vmatprep.subr.mxu0 0.0
        %2678 = vmatpush1.msra.mxu0 0.0
        %2679 = vmatprep.subr.mxu0 0.0
        %2680 = vmatpush1.msra.mxu0 0.0
        %2681 = vmatprep.subr.mxu0 0.0
        %2682 = vmatpush1.msra.mxu0 0.0
        %2683 = vmatprep.subr.mxu0 0.0
        %2684 = vmatpush1.msra.mxu0 0.0
        %2685 = vmatprep.subr.mxu0 0.0
        %2686 = vmatpush1.msra.mxu0 0.0
        %2687 = vmatprep.subr.mxu0 0.0
        %2688 = vmatpush1.msra.mxu0 0.0
        %2689 = vmatprep.subr.mxu0 0.0
        %2690 = vmatpush1.msra.mxu0 0.0
        %2691 = vmatprep.subr.mxu0 0.0
        %2692 = vmatpush1.msra.mxu0 0.0
        %2693 = vmatprep.subr.mxu0 0.0
        %2694 = vmatpush1.msra.mxu0 0.0
        %2695 = vmatprep.subr.mxu0 0.0
        %2696 = vmatpush1.msra.mxu0 0.0
        %2697 = vmatprep.subr.mxu0 0.0
        %2698 = vmatpush1.msra.mxu0 0.0
        %2699 = vmatprep.subr.mxu0 0.0
        %2700 = vmatpush1.msra.mxu0 0.0
        %2701 = vmatprep.subr.mxu0 0.0
        %2702 = vmatpush1.msra.mxu0 0.0
        %2703 = vmatprep.subr.mxu0 0.0
        %2704 = vmatpush1.msra.mxu0 0.0
        %2705 = vmatprep.subr.mxu0 0.0
        %2706 = vmatpush1.msra.mxu0 0.0
        %2707 = vmatprep.subr.mxu0 0.0
        %2708 = vmatpush1.msra.mxu0 0.0
        %2709 = vmatprep.subr.mxu0 0.0
        %2710 = vmatpush1.msra.mxu0 0.0
        %2711 = vmatprep.subr.mxu0 0.0
        %2712 = vmatpush1.msra.mxu0 0.0
        %2713 = vmatprep.subr.mxu0 0.0
        %2714 = vmatpush1.msra.mxu0 0.0
        %2715 = vmatprep.subr.mxu0 0.0
        %2716 = vmatpush1.msra.mxu0 0.0
        %2717 = vmatprep.subr.mxu0 0.0
        %2718 = vmatpush1.msra.mxu0 0.0
        %2719 = vmatprep.subr.mxu0 0.0
        %2720 = vmatpush1.msra.mxu0 0.0
        %2721 = vmatprep.subr.mxu0 0.0
        %2722 = vmatpush1.msra.mxu0 0.0
        %2723 = vmatprep.subr.mxu0 0.0
        %2724 = vmatpush1.msra.mxu0 0.0
        %2725 = vmatprep.subr.mxu0 0.0
        %2726 = vmatpush1.msra.mxu0 0.0
        %2727 = vmatprep.subr.mxu0 0.0
        %2728 = vmatpush1.msra.mxu0 0.0
        %2729 = vmatprep.mubr.f32.mxu0 0.0
        %2730 = vmatmul.mubr.f32.gmra.mrb[0].mxu0 %v2660
        %v2731 = vpop.f32.mrb[0].mxu0
        %v2732 = vadd.f32 %v2657, %v2731
        %v2733 = vpop.f32.mrb[0].mxu0
        %2734 = vmatprep.mubr.f32.mxu0 0.0
        %2735 = vmatmul.mubr.f32.gmra.mrb[0].mxu0 %v2663
        %v2736 = vpop.f32.mrb[0].mxu0
        %v2737 = vadd.f32 %v2657, %v2736
        %v2738 = vpop.f32.mrb[0].mxu0
        %2739 = vdwg.mxu0
        %v2740 = vmul.f32 %v2732, 0.5
        %v2741 = vmul.f32 %v2737, 0.5
        %v2742 = vmul.f32 %v2732, 0.70710677
        %v2743 = vmul.f32 %v2737, 0.70710677
        %v2744 = verf.f32.pop %v2742
        %v2745 = verf.f32.pop %v2743
        %v2746 = vadd.f32 %v2744, 1.0
        %v2747 = vadd.f32 %v2745, 1.0
        %v2748 = vmul.f32 %v2740, %v2746
        %v2749 = vmul.f32 %v2741, %v2747
        %v2750 = vld [vmem:[%s789] sm:$0xff]
        %v2751 = vld [vmem:[%s789 + $0x8] sm:$0xff]
        %v2752 = vld [vmem:[%s789 + $0x10] sm:$0xff]
        %v2753 = vld [vmem:[%s789 + $0x18] sm:$0xff]
        %v2754 = vld [vmem:[%s789 + $0x20] sm:$0xff]
        %v2755 = vld [vmem:[%s789 + $0x28] sm:$0xff]
        %v2756 = vld [vmem:[%s789 + $0x30] sm:$0xff]
        %v2757 = vld [vmem:[%s789 + $0x38] sm:$0xff]
        %v2758 = vld [vmem:[%s789 + $0x40] sm:$0xff]
        %v2759 = vld [vmem:[%s789 + $0x48] sm:$0xff]
        %v2760 = vld [vmem:[%s789 + $0x50] sm:$0xff]
        %v2761 = vld [vmem:[%s789 + $0x58] sm:$0xff]
        %vm2762 = vcmask 785408
        %v2764 = vsel %vm2762, %v2748, 0
        %v2767 = vsel %vm2762, %v2749, 0
        %2769 = vmatprep.subr.mxu0 0.0
        %2770 = vmatpush1.msra.mxu0 %v2750
        %2771 = vmatprep.subr.mxu0 0.0
        %2772 = vmatpush1.msra.mxu0 %v2751
        %2773 = vmatprep.subr.mxu0 0.0
        %2774 = vmatpush1.msra.mxu0 %v2752
        %2775 = vmatprep.subr.mxu0 0.0
        %2776 = vmatpush1.msra.mxu0 %v2753
        %2777 = vmatprep.subr.mxu0 0.0
        %2778 = vmatpush1.msra.mxu0 %v2754
        %2779 = vmatprep.subr.mxu0 0.0
        %2780 = vmatpush1.msra.mxu0 %v2755
        %2781 = vmatprep.subr.mxu0 0.0
        %2782 = vmatpush1.msra.mxu0 %v2756
        %2783 = vmatprep.subr.mxu0 0.0
        %2784 = vmatpush1.msra.mxu0 %v2757
        %2785 = vmatprep.subr.mxu0 0.0
        %2786 = vmatpush1.msra.mxu0 %v2758
        %2787 = vmatprep.subr.mxu0 0.0
        %2788 = vmatpush1.msra.mxu0 %v2759
        %2789 = vmatprep.subr.mxu0 0.0
        %2790 = vmatpush1.msra.mxu0 %v2760
        %2791 = vmatprep.subr.mxu0 0.0
        %2792 = vmatpush1.msra.mxu0 %v2761
        %2793 = vmatprep.subr.mxu0 0.0
        %2794 = vmatpush1.msra.mxu0 0.0
        %2795 = vmatprep.subr.mxu0 0.0
        %2796 = vmatpush1.msra.mxu0 0.0
        %2797 = vmatprep.subr.mxu0 0.0
        %2798 = vmatpush1.msra.mxu0 0.0
        %2799 = vmatprep.subr.mxu0 0.0
        %2800 = vmatpush1.msra.mxu0 0.0
        %2801 = vmatprep.subr.mxu0 0.0
        %2802 = vmatpush1.msra.mxu0 0.0
        %2803 = vmatprep.subr.mxu0 0.0
        %2804 = vmatpush1.msra.mxu0 0.0
        %2805 = vmatprep.subr.mxu0 0.0
        %2806 = vmatpush1.msra.mxu0 0.0
        %2807 = vmatprep.subr.mxu0 0.0
        %2808 = vmatpush1.msra.mxu0 0.0
        %2809 = vmatprep.subr.mxu0 0.0
        %2810 = vmatpush1.msra.mxu0 0.0
        %2811 = vmatprep.subr.mxu0 0.0
        %2812 = vmatpush1.msra.mxu0 0.0
        %2813 = vmatprep.subr.mxu0 0.0
        %2814 = vmatpush1.msra.mxu0 0.0
        %2815 = vmatprep.subr.mxu0 0.0
        %2816 = vmatpush1.msra.mxu0 0.0
        %2817 = vmatprep.subr.mxu0 0.0
        %2818 = vmatpush1.msra.mxu0 0.0
        %2819 = vmatprep.subr.mxu0 0.0
        %2820 = vmatpush1.msra.mxu0 0.0
        %2821 = vmatprep.subr.mxu0 0.0
        %2822 = vmatpush1.msra.mxu0 0.0
        %2823 = vmatprep.subr.mxu0 0.0
        %2824 = vmatpush1.msra.mxu0 0.0
        %2825 = vmatprep.subr.mxu0 0.0
        %2826 = vmatpush1.msra.mxu0 0.0
        %2827 = vmatprep.subr.mxu0 0.0
        %2828 = vmatpush1.msra.mxu0 0.0
        %2829 = vmatprep.subr.mxu0 0.0
        %2830 = vmatpush1.msra.mxu0 0.0
        %2831 = vmatprep.subr.mxu0 0.0
        %2832 = vmatpush1.msra.mxu0 0.0
        %2833 = vmatprep.mubr.f32.mxu0 0.0
        %2834 = vmatmul.mubr.f32.gmra.mrb[0].mxu0 %v2764
        %v2835 = vpop.f32.mrb[0].mxu0
        %v2836 = vadd.f32 0.0, %v2835
        %v2837 = vpop.f32.mrb[0].mxu0
        %2838 = vmatprep.mubr.f32.mxu0 0.0
        %2839 = vmatmul.mubr.f32.gmra.mrb[0].mxu0 %v2767
        %v2840 = vpop.f32.mrb[0].mxu0
        %v2841 = vadd.f32 0.0, %v2840
        %v2842 = vpop.f32.mrb[0].mxu0
        %2843 = vdwg.mxu0
        %v2844 = vadd.f32 %v2600, %v2836
        %v2845 = vadd.f32 %v2601, %v2841
        %v2846 = vld [vmem:[%s792] sm:$0x1]
        %v2848 = vlaneseq
        %v2849 = vshrl.u32 %v2848, 7
        %v2850 = vsub.s32 0, %v2849
        %v2851 = vrot.slane %v2846, %v2850
        %v2853 = vadd.f32 %v2844, %v2851
        %v2854 = vadd.f32 %v2845, %v2851
        %2855 = vst.msk [vmem:[#allocation2] sm:$0xff] %vm1001, %v2853
        %2856 = vst.msk [vmem:[#allocation2 + $0x8] sm:$0xff] %vm1001, %v2854
        %p2857 = scmp.eq.s32.totalorder %s38, 1
        // Predicated region
        $region101: #{vit_forward.1} parent=95 // pred_check
          %p2858 = pneg %p2857
        $region102: #{vit_forward.1} parent=95 // pred_check_branch
          %2860 = sbr.rel (%p2858) target = $region104
        $region103: #{vit_forward.1} parent=95 // pred_region
          %2861 = vst.msk [vmem:[%s745] sm:$0xff] %vm1001, %v2853
          %2862 = vst.msk [vmem:[%s745 + $0x8] sm:$0xff] %vm1001, %v2854
        $region104: #{vit_forward.1} parent=95 // pred_fallthru
          _
        %s2863 = sand.u32 %s512, 1
        %s2864 = scalar_lea.sflag [#allocation5], %s2863
        %s2865 = sand.u32 %s512, 1
        %s2866 = smul.addr %s2865, 16
        %s2867 = scalar_lea.vmem [#allocation4], %s2866
        // Predicated region
        $region105: #{vit_forward.1} parent=95 // pred_check
          %p2868 = pneg %p522
        $region106: #{vit_forward.1} parent=95 // pred_check_branch
          %2870 = sbr.rel (%p2868) target = $region108
        $region107: #{vit_forward.1} parent=95 // pred_region
          %s2871 = smul.u32 2, %s37
          %s2873 = ssub.s32 256, 256
          %2874 = vsyncadd %s2864, %s2873
          %s2875 = smul.addr %s2871, 128
          %s2876 = scalar_lea.hbm %s19, %s2875
          %s2877 = sshll.u32 %s2867, 4
          %s2878 = int_to_ptr.vmem [resolvable:$true] %s2877
          %2883 = dma.vmem_to_hbm [thread:$0]  %s2878, 256, %s2876, %s2864, 128, 128, 8
        $region108: #{vit_forward.1} parent=95 // pred_fallthru
          _
      $region96: #{vit_forward.1} parent=5 // pred_fallthru
        _
      %p2884 = scmp.le.s32.totalorder 2, %s28
      // Predicated region
      $region109: #{vit_forward.1} parent=5 // pred_check
        %p2885 = pneg %p2884
      $region110: #{vit_forward.1} parent=5 // pred_check_branch
        %2887 = sbr.rel (%p2885) target = $region112
      $region111: #{vit_forward.1} parent=5 // pred_region
        %s2888 = ssub.s32 %s28, 2
        // Predicated region
        $region113: #{vit_forward.1} parent=111 // pred_check
          %p2889 = pneg %p528
        $region114: #{vit_forward.1} parent=111 // pred_check_branch
          %2891 = sbr.rel (%p2889) target = $region116
        $region115: #{vit_forward.1} parent=111 // pred_region
          %s2892 = sand.u32 %s513, 1
          %s2893 = scalar_lea.sflag [#allocation5], %s2892
          %s2894 = sand.u32 %s513, 1
          %s2895 = smul.addr %s2894, 16
          %s2896 = scalar_lea.vmem [#allocation4], %s2895
          %2897 = dma.done %s2893, 256
        $region116: #{vit_forward.1} parent=111 // pred_fallthru
          _
      $region112: #{vit_forward.1} parent=5 // pred_fallthru
        _
    $region6: #{vit_forward.1} parent=1 // loop_footer
      %s32 = sadd.s32 1, %s28
    $region7: #{vit_forward.1} parent=1 // loop_footer_branch
      %27 = sbr.rel target = $region3
    $region8: #{vit_forward.1} parent=1 // loop_exit
      _
    %2898 = vsyncpa [#allocation5], 1
    %s2899 = scalar_lea.sflag [#allocation5], 1
    %2900 = vsyncpa %s2899, 1

</llo_original>
